<compile_context>
chip_gen: v7x
topology: tpu7x:2x2x1
jax: 0.10.0
libtpu: 0.0.40
codegen_flags: <defaults>
</compile_context>

<pallas_src>
import functools
import math

import jax
import jax.numpy as jnp
from jax.experimental import pallas as pl
from jax.experimental.pallas import tpu as pltpu


# ------------------------- in-kernel math helpers -------------------------

def _gelu(x):
    # tanh-approximate GELU
    c = 0.7978845608028654  # sqrt(2/pi)
    return 0.5 * x * (1.0 + jnp.tanh(c * (x + 0.044715 * x * x * x)))


def _layernorm(x, g, b, eps=1e-5):
    mu = jnp.mean(x, axis=-1, keepdims=True)
    var = jnp.mean((x - mu) ** 2, axis=-1, keepdims=True)
    return (x - mu) * jax.lax.rsqrt(var + eps) * g + b


# ------------------------------- kernel -----------------------------------

def _make_kernel(S, D, TV, H):
    Dh = D // H
    inv_sqrt_dh = 1.0 / math.sqrt(Dh)
    bf = jnp.bfloat16

    def kernel(x_ref, mask_ref, labels_ref,
               wqkv, bqkv, wo, bo,
               ln1g, ln1b, w1, b1, w2, b2, ln2g, ln2b,
               wd, bd, lnmg, lnmb,
               wdec_t, bdec_t,
               logits_ref, part_ref,
               t_scr, m_scr, l_scr, pick_scr):
        v = pl.program_id(1)
        nv = pl.num_programs(1)
        lbl = labels_ref[0]                                   # (S, 1) int32

        # ---------- encoder + MLM transform: once per batch row (vocab step 0) ----------
        @pl.when(v == 0)
        def _():
            x = x_ref[0]                                      # (S, D) f32
            x_bf = x.astype(bf)

            # fused QKV projection: one (S,D)x(D,3D) bf16 MXU matmul, f32 accumulation
            qkv = jnp.dot(x_bf, wqkv[...],
                          preferred_element_type=jnp.float32) + bqkv[...]   # (S, 3D) f32
            qkv_bf = qkv.astype(bf)

            def split_heads(z):                               # (S, D) bf16 -> (H, S, Dh)
                return jnp.transpose(z.reshape(S, H, Dh), (1, 0, 2))

            q = split_heads(qkv_bf[:, :D])
            k = split_heads(qkv_bf[:, D:2 * D])
            vh = split_heads(qkv_bf[:, 2 * D:])

            # batched multi-head attention (heads as MXU batch dim), bf16 operands
            scores = jnp.einsum('hqd,hkd->hqk', q, k,
                                preferred_element_type=jnp.float32)         # (H, S, S) f32
            add_mask = (1.0 - mask_ref[0]) * (-10000.0)        # (1, S): implicit broadcast
            scores = scores * inv_sqrt_dh + add_mask[None]
            scores = scores - jnp.max(scores, axis=-1, keepdims=True)
            p = jnp.exp(scores)
            p = p * pl.reciprocal(jnp.sum(p, axis=-1, keepdims=True), approx=True)
            ctx = jnp.einsum('hqk,hkd->hqd', p.astype(bf), vh,
                             preferred_element_type=jnp.float32)            # (H, S, Dh)
            ctx = jnp.transpose(ctx, (1, 0, 2)).reshape(S, D)

            attn_out = jnp.dot(ctx.astype(bf), wo[...],
                               preferred_element_type=jnp.float32) + bo[...]
            h1 = _layernorm(x + attn_out, ln1g[...], ln1b[...])
            ffh = _gelu(jnp.dot(h1.astype(bf), w1[...],
                                preferred_element_type=jnp.float32) + b1[...])
            ff = jnp.dot(ffh.astype(bf), w2[...],
                         preferred_element_type=jnp.float32) + b2[...]
            h2 = _layernorm(h1 + ff, ln2g[...], ln2b[...])     # sequence_output (S, D)

            # MLM transform: dense -> gelu -> LayerNorm; keep resident in bf16 scratch
            t = _gelu(jnp.dot(h2.astype(bf), wd[...],
                              preferred_element_type=jnp.float32) + bd[...])
            t_scr[...] = _layernorm(t, lnmg[...], lnmb[...]).astype(bf)

            # reset online-logsumexp / label-pick accumulators
            m_scr[...] = jnp.full((S, 1), -1e30, jnp.float32)
            l_scr[...] = jnp.zeros((S, 1), jnp.float32)
            pick_scr[...] = jnp.zeros((S, 1), jnp.float32)

        # ---------- decoder vocab tile + streaming cross-entropy (every vocab step) -------
        logits = jnp.dot(t_scr[...], wdec_t[...],
                         preferred_element_type=jnp.float32) + bdec_t[...]  # (S, TV) f32
        logits_ref[0] = logits                                 # lane-dense (TV % 128 == 0)

        # online logsumexp (padded vocab lanes carry -1e9 bias -> exp underflows to 0)
        m_prev = m_scr[...]
        m_new = jnp.maximum(m_prev, jnp.max(logits, axis=-1, keepdims=True))
        l_scr[...] = (l_scr[...] * jnp.exp(m_prev - m_new)
                      + jnp.sum(jnp.exp(logits - m_new), axis=-1, keepdims=True))
        m_scr[...] = m_new

        # fused label-pick in the same sweep: (1,TV) iota broadcast against (S,1) labels
        col = jax.lax.broadcasted_iota(jnp.int32, (1, TV), 1) + v * TV
        pick_scr[...] += jnp.sum(jnp.where(col == lbl, logits, 0.0),
                                 axis=-1, keepdims=True)

        # ---------- finalize per-batch loss partials on the last vocab tile ----------
        @pl.when(v == nv - 1)
        def _():
            lse = m_scr[...] + jnp.log(l_scr[...])             # (S, 1)
            valid = (lbl != -1).astype(jnp.float32)            # (S, 1), ignore_index = -1
            loss_sum = jnp.sum((lse - pick_scr[...]) * valid)  # scalar
            cnt_sum = jnp.sum(valid)                           # scalar
            lane = jax.lax.broadcasted_iota(jnp.int32, (8, 128), 1)
            part_ref[0] = (jnp.where(lane == 0, loss_sum, 0.0)
                           + jnp.where(lane == 1, cnt_sum, 0.0))

    return kernel


# ------------------------------- wrapper -----------------------------------

def bert_for_masked_lm(weights, input_vec, attention_mask, masked_labels, *, num_heads,
                       vocab_tile=2048):
    (wq, bq, wk, bk, wv, bv, wo, bo, ln1g, ln1b, w1, b1, w2, b2,
     ln2g, ln2b, wd, bd, lnmg, lnmb, wdec, bdec) = weights
    B, S, D = input_vec.shape
    V = wdec.shape[-1]

    # vocab tiling: lane-dense tiles, streamed with online logsumexp
    v_lanes = ((V + 127) // 128) * 128
    TV = min(vocab_tile, v_lanes)
    Vp = ((V + TV - 1) // TV) * TV
    NV = Vp // TV

    bf = jnp.bfloat16
    # fuse QKV; cast big matmul weights to bf16 (f32 MXU accumulation); pad decoder to Vp lanes
    wqkv = jnp.concatenate([wq, wk, wv], axis=1).astype(bf)               # (D, 3D)
    bqkv = jnp.concatenate([bq, bk, bv], axis=1)                          # (1, 3D)
    wdec_p = jnp.pad(wdec, ((0, 0), (0, Vp - V))).astype(bf)              # (D, Vp)
    bdec_p = jnp.pad(bdec, ((0, 0), (0, Vp - V)), constant_values=-1e9)   # mask padded lanes

    resident = [wqkv, bqkv, wo.astype(bf), bo, ln1g, ln1b,
                w1.astype(bf), b1, w2.astype(bf), b2, ln2g, ln2b,
                wd.astype(bf), bd, lnmg, lnmb]

    kernel = _make_kernel(S, D, TV, num_heads)

    in_specs = [
        pl.BlockSpec((1, S, D), lambda b, v: (b, 0, 0)),   # input_vec   (per-batch tile)
        pl.BlockSpec((1, 1, S), lambda b, v: (b, 0, 0)),   # attention_mask
        pl.BlockSpec((1, S, 1), lambda b, v: (b, 0, 0)),   # masked_labels
    ]
    # resident weights: constant block index -> single buffer (halves weight VMEM, no DMA cost)
    for w in resident:
        in_specs.append(pl.BlockSpec(
            w.shape, functools.partial(lambda b, v, nd: (0,) * nd, nd=w.ndim),
            pipeline_mode=pl.Buffered(1)))
    # decoder weight / bias streamed over the vocab grid axis (default double buffering)
    in_specs.append(pl.BlockSpec((D, TV), lambda b, v: (0, v)))
    in_specs.append(pl.BlockSpec((1, TV), lambda b, v: (0, v)))

    out_shape = (jax.ShapeDtypeStruct((B, S, Vp), jnp.float32),   # padded logits
                 jax.ShapeDtypeStruct((B, 8, 128), jnp.float32))  # per-batch (nll_sum, count)
    out_specs = (pl.BlockSpec((1, S, TV), lambda b, v: (b, 0, v)),
                 pl.BlockSpec((1, 8, 128), lambda b, v: (b, 0, 0)))

    scratch_shapes = [
        pltpu.VMEM((S, D), bf),           # MLM-transformed hidden, resident across vocab tiles
        pltpu.VMEM((S, 1), jnp.float32),  # running max
        pltpu.VMEM((S, 1), jnp.float32),  # running exp-sum
        pltpu.VMEM((S, 1), jnp.float32),  # picked label logit
    ]

    # scoped-VMEM budget computed from the chosen tiles (+ headroom); defaults are 16/32 MiB
    nbytes = lambda a: a.size * a.dtype.itemsize
    tile_bytes = (sum(nbytes(w) for w in resident)               # single-buffered weights
                  + 2 * (D * TV * 2 + TV * 4)                    # decoder tile (dbl-buffered)
                  + 2 * (S * D * 4 + S * 4 + S * 4)              # per-batch input blocks
                  + 2 * (S * TV * 4) + 2 * (8 * 128 * 4)         # output blocks
                  + S * D * 2 + 3 * S * 128 * 4)                 # scratch
    vmem_limit = int(min(110 * 2 ** 20, max(32 * 2 ** 20, 2 * tile_bytes + (4 << 20))))

    logits_p, parts = pl.pallas_call(
        kernel,
        out_shape=out_shape,
        grid=(B, NV),
        in_specs=in_specs,
        out_specs=out_specs,
        scratch_shapes=scratch_shapes,
        compiler_params=pltpu.CompilerParams(
            dimension_semantics=("parallel", "arbitrary"),
            vmem_limit_bytes=vmem_limit),
    )(input_vec,
      attention_mask.astype(jnp.float32).reshape(B, 1, S),
      masked_labels.astype(jnp.int32).reshape(B, S, 1),
      *resident, wdec_p, bdec_p)

    # final reduce / divide outside the kernel (keeps the batch grid axis "parallel")
    loss = jnp.sum(parts[:, 0, 0]) / jnp.sum(parts[:, 0, 1])
    return loss, logits_p[:, :, :V]


# --------------------------- pure-JAX reference -----------------------------

def _ref_forward(weights, x, mask, labels, *, num_heads):
    (wq, bq, wk, bk, wv, bv, wo, bo, ln1g, ln1b, w1, b1, w2, b2,
     ln2g, ln2b, wd, bd, lnmg, lnmb, wdec, bdec) = weights
    B, S, D = x.shape
    H = num_heads
    Dh = D // H
    V = wdec.shape[-1]

    def ln(z, g, b):
        mu = jnp.mean(z, -1, keepdims=True)
        var = jnp.mean((z - mu) ** 2, -1, keepdims=True)
        return (z - mu) * jax.lax.rsqrt(var + 1e-5) * g + b

    q = (x @ wq + bq[0]).reshape(B, S, H, Dh).transpose(0, 2, 1, 3)
    k = (x @ wk + bk[0]).reshape(B, S, H, Dh).transpose(0, 2, 1, 3)
    v = (x @ wv + bv[0]).reshape(B, S, H, Dh).transpose(0, 2, 1, 3)
    scores = jnp.einsum('bhsd,bhtd->bhst', q, k) / math.sqrt(Dh)
    scores = scores + ((1.0 - mask) * -10000.0)[:, None, None, :]
    p = jax.nn.softmax(scores, -1)
    ctx = jnp.einsum('bhst,bhtd->bhsd', p, v).transpose(0, 2, 1, 3).reshape(B, S, D)
    attn = ctx @ wo + bo[0]
    h1 = ln(x + attn, ln1g[0], ln1b[0])
    ff = _gelu(h1 @ w1 + b1[0]) @ w2 + b2[0]
    h2 = ln(h1 + ff, ln2g[0], ln2b[0])
    t = ln(_gelu(h2 @ wd + bd[0]), lnmg[0], lnmb[0])
    logits = t @ wdec + bdec[0]
    logp = jax.nn.log_softmax(logits, -1)
    fl = labels.reshape(-1)
    flp = logp.reshape(-1, V)
    valid = fl != -1
    safe = jnp.where(valid, fl, 0)
    nll = -jnp.take_along_axis(flp, safe[:, None], axis=1)[:, 0]
    loss = jnp.sum(jnp.where(valid, nll, 0.0)) / jnp.sum(valid)
    return loss, logits


# --------------------------------- main -------------------------------------

if __name__ == "__main__":
    # parameter = {'embed_dim': 32, 'vocab_size': 64}; heads/ff chosen for the synthetic encoder
    B, S, D, V, H, F = 2, 8, 32, 64, 4, 64

    key = jax.random.PRNGKey(0)
    ks = jax.random.split(key, 16)

    def nrm(k, shape):
        return (0.02 * jax.random.normal(k, shape, jnp.float32))

    weights = [
        nrm(ks[0], (D, D)), jnp.zeros((1, D), jnp.float32),      # wq, bq
        nrm(ks[1], (D, D)), jnp.zeros((1, D), jnp.float32),      # wk, bk
        nrm(ks[2], (D, D)), jnp.zeros((1, D), jnp.float32),      # wv, bv
        nrm(ks[3], (D, D)), jnp.zeros((1, D), jnp.float32),      # wo, bo
        jnp.ones((1, D), jnp.float32), jnp.zeros((1, D), jnp.float32),   # ln1
        nrm(ks[4], (D, F)), jnp.zeros((1, F), jnp.float32),      # ffn w1, b1
        nrm(ks[5], (F, D)), jnp.zeros((1, D), jnp.float32),      # ffn w2, b2
        jnp.ones((1, D), jnp.float32), jnp.zeros((1, D), jnp.float32),   # ln2
        nrm(ks[6], (D, D)), jnp.zeros((1, D), jnp.float32),      # mlm dense
        jnp.ones((1, D), jnp.float32), jnp.zeros((1, D), jnp.float32),   # mlm LayerNorm
        nrm(ks[7], (D, V)), jnp.zeros((1, V), jnp.float32),      # decoder
    ]

    input_vec = jax.random.normal(ks[8], (B, S, D), jnp.float32)
    attention_mask = jnp.ones((B, S), jnp.float32).at[1, S - 1].set(0.0)
    masked_labels = jax.random.randint(ks[9], (B, S), 0, V, jnp.int32)
    masked_labels = masked_labels.at[0, 0].set(-1).at[1, 3].set(-1)      # ignore_index = -1

    loss, scores = bert_for_masked_lm(weights, input_vec, attention_mask, masked_labels,
                                      num_heads=H)
    jax.block_until_ready((loss, scores))

    ref_loss, ref_scores = _ref_forward(weights, input_vec, attention_mask, masked_labels,
                                        num_heads=H)
    assert jnp.max(jnp.abs(scores - ref_scores)) < 1e-2, "logits mismatch vs reference"
    assert jnp.abs(loss - ref_loss) < 1e-2, "loss mismatch vs reference"
    assert jnp.isfinite(loss)

    print("KERNEL_OK")
</pallas_src>

<mosaic_0001>
module attributes {stable_mosaic.version = 11 : i64} {
  func.func @kernel(%arg0: i32, %arg1: i32, %arg2: memref<1x8x32xf32, #tpu.memory_space<vmem>>, %arg3: memref<1x1x8xf32, #tpu.memory_space<vmem>>, %arg4: memref<1x8x1xi32, #tpu.memory_space<vmem>>, %arg5: memref<32x96xbf16, #tpu.memory_space<vmem>>, %arg6: memref<1x96xf32, #tpu.memory_space<vmem>>, %arg7: memref<32x32xbf16, #tpu.memory_space<vmem>>, %arg8: memref<1x32xf32, #tpu.memory_space<vmem>>, %arg9: memref<1x32xf32, #tpu.memory_space<vmem>>, %arg10: memref<1x32xf32, #tpu.memory_space<vmem>>, %arg11: memref<32x64xbf16, #tpu.memory_space<vmem>>, %arg12: memref<1x64xf32, #tpu.memory_space<vmem>>, %arg13: memref<64x32xbf16, #tpu.memory_space<vmem>>, %arg14: memref<1x32xf32, #tpu.memory_space<vmem>>, %arg15: memref<1x32xf32, #tpu.memory_space<vmem>>, %arg16: memref<1x32xf32, #tpu.memory_space<vmem>>, %arg17: memref<32x32xbf16, #tpu.memory_space<vmem>>, %arg18: memref<1x32xf32, #tpu.memory_space<vmem>>, %arg19: memref<1x32xf32, #tpu.memory_space<vmem>>, %arg20: memref<1x32xf32, #tpu.memory_space<vmem>>, %arg21: memref<32x128xbf16, #tpu.memory_space<vmem>>, %arg22: memref<1x128xf32, #tpu.memory_space<vmem>>, %arg23: memref<1x8x128xf32, #tpu.memory_space<vmem>>, %arg24: memref<1x8x128xf32, #tpu.memory_space<vmem>>, %arg25: memref<8x32xbf16, #tpu.memory_space<vmem>>, %arg26: memref<8x1xf32, #tpu.memory_space<vmem>>, %arg27: memref<8x1xf32, #tpu.memory_space<vmem>>, %arg28: memref<8x1xf32, #tpu.memory_space<vmem>>) attributes {dimension_semantics = [#tpu.dimension_semantics<parallel>, #tpu.dimension_semantics<arbitrary>], iteration_bounds = array<i64: 2, 1>, scalar_prefetch = 0 : i64, scratch_operands = 4 : i64, tpu.core_type = #tpu.core_type<tc>, window_params = [{transform_indices = @transform_0, window_bounds = array<i64: 1, 8, 32>}, {transform_indices = @transform_1, window_bounds = array<i64: 1, 1, 8>}, {transform_indices = @transform_2, window_bounds = array<i64: 1, 8, 1>}, {pipeline_mode = #tpu.pipeline_mode<synchronous>, transform_indices = @transform_3, window_bounds = array<i64: 32, 96>}, {pipeline_mode = #tpu.pipeline_mode<synchronous>, transform_indices = @transform_4, window_bounds = array<i64: 1, 96>}, {pipeline_mode = #tpu.pipeline_mode<synchronous>, transform_indices = @transform_5, window_bounds = array<i64: 32, 32>}, {pipeline_mode = #tpu.pipeline_mode<synchronous>, transform_indices = @transform_6, window_bounds = array<i64: 1, 32>}, {pipeline_mode = #tpu.pipeline_mode<synchronous>, transform_indices = @transform_7, window_bounds = array<i64: 1, 32>}, {pipeline_mode = #tpu.pipeline_mode<synchronous>, transform_indices = @transform_8, window_bounds = array<i64: 1, 32>}, {pipeline_mode = #tpu.pipeline_mode<synchronous>, transform_indices = @transform_9, window_bounds = array<i64: 32, 64>}, {pipeline_mode = #tpu.pipeline_mode<synchronous>, transform_indices = @transform_10, window_bounds = array<i64: 1, 64>}, {pipeline_mode = #tpu.pipeline_mode<synchronous>, transform_indices = @transform_11, window_bounds = array<i64: 64, 32>}, {pipeline_mode = #tpu.pipeline_mode<synchronous>, transform_indices = @transform_12, window_bounds = array<i64: 1, 32>}, {pipeline_mode = #tpu.pipeline_mode<synchronous>, transform_indices = @transform_13, window_bounds = array<i64: 1, 32>}, {pipeline_mode = #tpu.pipeline_mode<synchronous>, transform_indices = @transform_14, window_bounds = array<i64: 1, 32>}, {pipeline_mode = #tpu.pipeline_mode<synchronous>, transform_indices = @transform_15, window_bounds = array<i64: 32, 32>}, {pipeline_mode = #tpu.pipeline_mode<synchronous>, transform_indices = @transform_16, window_bounds = array<i64: 1, 32>}, {pipeline_mode = #tpu.pipeline_mode<synchronous>, transform_indices = @transform_17, window_bounds = array<i64: 1, 32>}, {pipeline_mode = #tpu.pipeline_mode<synchronous>, transform_indices = @transform_18, window_bounds = array<i64: 1, 32>}, {transform_indices = @transform_19, window_bounds = array<i64: 32, 128>}, {transform_indices = @transform_20, window_bounds = array<i64: 1, 128>}, {transform_indices = @transform_21, window_bounds = array<i64: 1, 8, 128>}, {transform_indices = @transform_22, window_bounds = array<i64: 1, 8, 128>}]} {
    %c0 = arith.constant 0 : index
    %c0_0 = arith.constant 0 : index
    %c0_1 = arith.constant 0 : index
    %0 = vector.load %arg4[%c0, %c0_0, %c0_1] : memref<1x8x1xi32, #tpu.memory_space<vmem>>, vector<1x8x1xi32>
    %1 = vector.shape_cast %0 : vector<1x8x1xi32> to vector<8x1xi32>
    %c0_i32 = arith.constant 0 : i32
    %2 = arith.cmpi eq, %arg1, %c0_i32 : i32
    %3 = arith.extui %2 : i1 to i32
    %c0_i32_2 = arith.constant 0 : i32
    %4 = arith.cmpi ne, %3, %c0_i32_2 : i32
    scf.if %4 {
      %c0_30 = arith.constant 0 : index
      %c0_31 = arith.constant 0 : index
      %c0_32 = arith.constant 0 : index
      %47 = vector.load %arg2[%c0_30, %c0_31, %c0_32] : memref<1x8x32xf32, #tpu.memory_space<vmem>>, vector<1x8x32xf32>
      %48 = vector.shape_cast %47 : vector<1x8x32xf32> to vector<8x32xf32>
      %49 = arith.truncf %48 : vector<8x32xf32> to vector<8x32xbf16>
      %c0_33 = arith.constant 0 : index
      %c0_34 = arith.constant 0 : index
      %50 = vector.load %arg5[%c0_33, %c0_34] : memref<32x96xbf16, #tpu.memory_space<vmem>>, vector<32x96xbf16>
      %cst_35 = arith.constant dense<0.000000e+00> : vector<8x96xf32>
      %51 = tpu.matmul %49, %50, %cst_35 {dimension_numbers = #tpu.dot_dimension_numbers<[1], [0], [0], [1], [0, 0, 1, 1], [], []>} : vector<8x32xbf16>, vector<32x96xbf16>, vector<8x96xf32> -> vector<8x96xf32>
      %c0_36 = arith.constant 0 : index
      %c0_37 = arith.constant 0 : index
      %52 = vector.load %arg6[%c0_36, %c0_37] : memref<1x96xf32, #tpu.memory_space<vmem>>, vector<1x96xf32>
      %53 = vector.broadcast %52 : vector<1x96xf32> to vector<8x96xf32>
      %54 = arith.addf %51, %53 : vector<8x96xf32>
      %55 = arith.truncf %54 : vector<8x96xf32> to vector<8x96xbf16>
      %56 = vector.extract_strided_slice %55 {offsets = [0, 0], sizes = [8, 32], strides = [1, 1]} : vector<8x96xbf16> to vector<8x32xbf16>
      %57 = vector.shape_cast %56 : vector<8x32xbf16> to vector<8x4x8xbf16>
      %58 = tpu.transpose %57, [1, 0, 2] : vector<8x4x8xbf16> -> vector<4x8x8xbf16>
      %59 = vector.extract_strided_slice %55 {offsets = [0, 32], sizes = [8, 32], strides = [1, 1]} : vector<8x96xbf16> to vector<8x32xbf16>
      %60 = vector.shape_cast %59 : vector<8x32xbf16> to vector<8x4x8xbf16>
      %61 = tpu.transpose %60, [1, 0, 2] : vector<8x4x8xbf16> -> vector<4x8x8xbf16>
      %62 = vector.extract_strided_slice %55 {offsets = [0, 64], sizes = [8, 32], strides = [1, 1]} : vector<8x96xbf16> to vector<8x32xbf16>
      %63 = vector.shape_cast %62 : vector<8x32xbf16> to vector<8x4x8xbf16>
      %64 = tpu.transpose %63, [1, 0, 2] : vector<8x4x8xbf16> -> vector<4x8x8xbf16>
      "tpu.trace_start"() <{level = 10 : i32, message = "hqd,hkd->hqk"}> : () -> ()
      %cst_38 = arith.constant dense<0.000000e+00> : vector<4x8x8xf32>
      %65 = tpu.matmul %58, %61, %cst_38 {dimension_numbers = #tpu.dot_dimension_numbers<[2], [2], [1], [1], [0, 0, 0, 1, 1, 1], [0], [0]>} : vector<4x8x8xbf16>, vector<4x8x8xbf16>, vector<4x8x8xf32> -> vector<4x8x8xf32>
      "tpu.trace_stop"() : () -> ()
      %c0_39 = arith.constant 0 : index
      %c0_40 = arith.constant 0 : index
      %c0_41 = arith.constant 0 : index
      %66 = vector.load %arg3[%c0_39, %c0_40, %c0_41] : memref<1x1x8xf32, #tpu.memory_space<vmem>>, vector<1x1x8xf32>
      %67 = vector.shape_cast %66 : vector<1x1x8xf32> to vector<1x8xf32>
      %cst_42 = arith.constant 1.000000e+00 : f32
      %68 = vector.broadcast %cst_42 : f32 to vector<1x8xf32>
      %69 = arith.subf %68, %67 : vector<1x8xf32>
      %cst_43 = arith.constant -1.000000e+04 : f32
      %70 = vector.broadcast %cst_43 : f32 to vector<1x8xf32>
      %71 = arith.mulf %69, %70 : vector<1x8xf32>
      %cst_44 = arith.constant 0.353553385 : f32
      %72 = vector.broadcast %cst_44 : f32 to vector<4x8x8xf32>
      %73 = arith.mulf %65, %72 : vector<4x8x8xf32>
      %74 = vector.shape_cast %71 : vector<1x8xf32> to vector<1x1x8xf32>
      %75 = vector.broadcast %74 : vector<1x1x8xf32> to vector<4x8x8xf32>
      %76 = arith.addf %73, %75 : vector<4x8x8xf32>
      %cst_45 = arith.constant dense<0xFF800000> : vector<4x8xf32>
      %77 = vector.multi_reduction <maximumf>, %76, %cst_45 [2] : vector<4x8x8xf32> to vector<4x8xf32>
      %78 = vector.shape_cast %77 : vector<4x8xf32> to vector<4x8x1xf32>
      %79 = vector.broadcast %78 : vector<4x8x1xf32> to vector<4x8x8xf32>
      %80 = arith.subf %76, %79 : vector<4x8x8xf32>
      %81 = math.exp %80 : vector<4x8x8xf32>
      %cst_46 = arith.constant dense<0.000000e+00> : vector<4x8xf32>
      %82 = vector.multi_reduction <add>, %81, %cst_46 [2] : vector<4x8x8xf32> to vector<4x8xf32>
      %83 = vector.shape_cast %82 : vector<4x8xf32> to vector<4x8x1xf32>
      %84 = tpu.reciprocal %83 {approx = true} : vector<4x8x1xf32> -> vector<4x8x1xf32>
      %85 = vector.broadcast %84 : vector<4x8x1xf32> to vector<4x8x8xf32>
      %86 = arith.mulf %81, %85 : vector<4x8x8xf32>
      %87 = arith.truncf %86 : vector<4x8x8xf32> to vector<4x8x8xbf16>
      "tpu.trace_start"() <{level = 10 : i32, message = "hqk,hkd->hqd"}> : () -> ()
      %cst_47 = arith.constant dense<0.000000e+00> : vector<4x8x8xf32>
      %88 = tpu.matmul %87, %64, %cst_47 {dimension_numbers = #tpu.dot_dimension_numbers<[2], [1], [1], [2], [0, 0, 0, 1, 1, 2], [0], [0]>} : vector<4x8x8xbf16>, vector<4x8x8xbf16>, vector<4x8x8xf32> -> vector<4x8x8xf32>
      "tpu.trace_stop"() : () -> ()
      %89 = tpu.transpose %88, [1, 0, 2] : vector<4x8x8xf32> -> vector<8x4x8xf32>
      %90 = vector.shape_cast %89 : vector<8x4x8xf32> to vector<8x32xf32>
      %91 = arith.truncf %90 : vector<8x32xf32> to vector<8x32xbf16>
      %c0_48 = arith.constant 0 : index
      %c0_49 = arith.constant 0 : index
      %92 = vector.load %arg7[%c0_48, %c0_49] : memref<32x32xbf16, #tpu.memory_space<vmem>>, vector<32x32xbf16>
      %cst_50 = arith.constant dense<0.000000e+00> : vector<8x32xf32>
      %93 = tpu.matmul %91, %92, %cst_50 {dimension_numbers = #tpu.dot_dimension_numbers<[1], [0], [0], [1], [0, 0, 1, 1], [], []>} : vector<8x32xbf16>, vector<32x32xbf16>, vector<8x32xf32> -> vector<8x32xf32>
      %c0_51 = arith.constant 0 : index
      %c0_52 = arith.constant 0 : index
      %94 = vector.load %arg8[%c0_51, %c0_52] : memref<1x32xf32, #tpu.memory_space<vmem>>, vector<1x32xf32>
      %95 = vector.broadcast %94 : vector<1x32xf32> to vector<8x32xf32>
      %96 = arith.addf %93, %95 : vector<8x32xf32>
      %97 = arith.addf %48, %96 : vector<8x32xf32>
      %c0_53 = arith.constant 0 : index
      %c0_54 = arith.constant 0 : index
      %98 = vector.load %arg9[%c0_53, %c0_54] : memref<1x32xf32, #tpu.memory_space<vmem>>, vector<1x32xf32>
      %c0_55 = arith.constant 0 : index
      %c0_56 = arith.constant 0 : index
      %99 = vector.load %arg10[%c0_55, %c0_56] : memref<1x32xf32, #tpu.memory_space<vmem>>, vector<1x32xf32>
      %cst_57 = arith.constant dense<0.000000e+00> : vector<8xf32>
      %100 = vector.multi_reduction <add>, %97, %cst_57 [1] : vector<8x32xf32> to vector<8xf32>
      %101 = vector.shape_cast %100 : vector<8xf32> to vector<8x1xf32>
      %cst_58 = arith.constant 3.200000e+01 : f32
      %102 = vector.broadcast %cst_58 : f32 to vector<8x1xf32>
      %103 = arith.divf %101, %102 : vector<8x1xf32>
      %104 = vector.broadcast %103 : vector<8x1xf32> to vector<8x32xf32>
      %105 = arith.subf %97, %104 : vector<8x32xf32>
      %106 = arith.mulf %105, %105 : vector<8x32xf32>
      %cst_59 = arith.constant dense<0.000000e+00> : vector<8xf32>
      %107 = vector.multi_reduction <add>, %106, %cst_59 [1] : vector<8x32xf32> to vector<8xf32>
      %108 = vector.shape_cast %107 : vector<8xf32> to vector<8x1xf32>
      %cst_60 = arith.constant 3.200000e+01 : f32
      %109 = vector.broadcast %cst_60 : f32 to vector<8x1xf32>
      %110 = arith.divf %108, %109 : vector<8x1xf32>
      %111 = vector.broadcast %103 : vector<8x1xf32> to vector<8x32xf32>
      %112 = arith.subf %97, %111 : vector<8x32xf32>
      %cst_61 = arith.constant 9.99999974E-6 : f32
      %113 = vector.broadcast %cst_61 : f32 to vector<8x1xf32>
      %114 = arith.addf %110, %113 : vector<8x1xf32>
      %115 = math.rsqrt %114 : vector<8x1xf32>
      %116 = vector.broadcast %115 : vector<8x1xf32> to vector<8x32xf32>
      %117 = arith.mulf %112, %116 : vector<8x32xf32>
      %118 = vector.broadcast %98 : vector<1x32xf32> to vector<8x32xf32>
      %119 = arith.mulf %117, %118 : vector<8x32xf32>
      %120 = vector.broadcast %99 : vector<1x32xf32> to vector<8x32xf32>
      %121 = arith.addf %119, %120 : vector<8x32xf32>
      %122 = arith.truncf %121 : vector<8x32xf32> to vector<8x32xbf16>
      %c0_62 = arith.constant 0 : index
      %c0_63 = arith.constant 0 : index
      %123 = vector.load %arg11[%c0_62, %c0_63] : memref<32x64xbf16, #tpu.memory_space<vmem>>, vector<32x64xbf16>
      %cst_64 = arith.constant dense<0.000000e+00> : vector<8x64xf32>
      %124 = tpu.matmul %122, %123, %cst_64 {dimension_numbers = #tpu.dot_dimension_numbers<[1], [0], [0], [1], [0, 0, 1, 1], [], []>} : vector<8x32xbf16>, vector<32x64xbf16>, vector<8x64xf32> -> vector<8x64xf32>
      %c0_65 = arith.constant 0 : index
      %c0_66 = arith.constant 0 : index
      %125 = vector.load %arg12[%c0_65, %c0_66] : memref<1x64xf32, #tpu.memory_space<vmem>>, vector<1x64xf32>
      %126 = vector.broadcast %125 : vector<1x64xf32> to vector<8x64xf32>
      %127 = arith.addf %124, %126 : vector<8x64xf32>
      %cst_67 = arith.constant 5.000000e-01 : f32
      %128 = vector.broadcast %cst_67 : f32 to vector<8x64xf32>
      %129 = arith.mulf %128, %127 : vector<8x64xf32>
      %cst_68 = arith.constant 4.471500e-02 : f32
      %130 = vector.broadcast %cst_68 : f32 to vector<8x64xf32>
      %131 = arith.mulf %130, %127 : vector<8x64xf32>
      %132 = arith.mulf %131, %127 : vector<8x64xf32>
      %133 = arith.mulf %132, %127 : vector<8x64xf32>
      %134 = arith.addf %127, %133 : vector<8x64xf32>
      %cst_69 = arith.constant 0.797884583 : f32
      %135 = vector.broadcast %cst_69 : f32 to vector<8x64xf32>
      %136 = arith.mulf %135, %134 : vector<8x64xf32>
      %137 = math.tanh %136 : vector<8x64xf32>
      %cst_70 = arith.constant 1.000000e+00 : f32
      %138 = vector.broadcast %cst_70 : f32 to vector<8x64xf32>
      %139 = arith.addf %138, %137 : vector<8x64xf32>
      %140 = arith.mulf %129, %139 : vector<8x64xf32>
      %141 = arith.truncf %140 : vector<8x64xf32> to vector<8x64xbf16>
      %c0_71 = arith.constant 0 : index
      %c0_72 = arith.constant 0 : index
      %142 = vector.load %arg13[%c0_71, %c0_72] : memref<64x32xbf16, #tpu.memory_space<vmem>>, vector<64x32xbf16>
      %cst_73 = arith.constant dense<0.000000e+00> : vector<8x32xf32>
      %143 = tpu.matmul %141, %142, %cst_73 {dimension_numbers = #tpu.dot_dimension_numbers<[1], [0], [0], [1], [0, 0, 1, 1], [], []>} : vector<8x64xbf16>, vector<64x32xbf16>, vector<8x32xf32> -> vector<8x32xf32>
      %c0_74 = arith.constant 0 : index
      %c0_75 = arith.constant 0 : index
      %144 = vector.load %arg14[%c0_74, %c0_75] : memref<1x32xf32, #tpu.memory_space<vmem>>, vector<1x32xf32>
      %145 = vector.broadcast %144 : vector<1x32xf32> to vector<8x32xf32>
      %146 = arith.addf %143, %145 : vector<8x32xf32>
      %147 = arith.addf %121, %146 : vector<8x32xf32>
      %c0_76 = arith.constant 0 : index
      %c0_77 = arith.constant 0 : index
      %148 = vector.load %arg15[%c0_76, %c0_77] : memref<1x32xf32, #tpu.memory_space<vmem>>, vector<1x32xf32>
      %c0_78 = arith.constant 0 : index
      %c0_79 = arith.constant 0 : index
      %149 = vector.load %arg16[%c0_78, %c0_79] : memref<1x32xf32, #tpu.memory_space<vmem>>, vector<1x32xf32>
      %cst_80 = arith.constant dense<0.000000e+00> : vector<8xf32>
      %150 = vector.multi_reduction <add>, %147, %cst_80 [1] : vector<8x32xf32> to vector<8xf32>
      %151 = vector.shape_cast %150 : vector<8xf32> to vector<8x1xf32>
      %cst_81 = arith.constant 3.200000e+01 : f32
      %152 = vector.broadcast %cst_81 : f32 to vector<8x1xf32>
      %153 = arith.divf %151, %152 : vector<8x1xf32>
      %154 = vector.broadcast %153 : vector<8x1xf32> to vector<8x32xf32>
      %155 = arith.subf %147, %154 : vector<8x32xf32>
      %156 = arith.mulf %155, %155 : vector<8x32xf32>
      %cst_82 = arith.constant dense<0.000000e+00> : vector<8xf32>
      %157 = vector.multi_reduction <add>, %156, %cst_82 [1] : vector<8x32xf32> to vector<8xf32>
      %158 = vector.shape_cast %157 : vector<8xf32> to vector<8x1xf32>
      %cst_83 = arith.constant 3.200000e+01 : f32
      %159 = vector.broadcast %cst_83 : f32 to vector<8x1xf32>
      %160 = arith.divf %158, %159 : vector<8x1xf32>
      %161 = vector.broadcast %153 : vector<8x1xf32> to vector<8x32xf32>
      %162 = arith.subf %147, %161 : vector<8x32xf32>
      %cst_84 = arith.constant 9.99999974E-6 : f32
      %163 = vector.broadcast %cst_84 : f32 to vector<8x1xf32>
      %164 = arith.addf %160, %163 : vector<8x1xf32>
      %165 = math.rsqrt %164 : vector<8x1xf32>
      %166 = vector.broadcast %165 : vector<8x1xf32> to vector<8x32xf32>
      %167 = arith.mulf %162, %166 : vector<8x32xf32>
      %168 = vector.broadcast %148 : vector<1x32xf32> to vector<8x32xf32>
      %169 = arith.mulf %167, %168 : vector<8x32xf32>
      %170 = vector.broadcast %149 : vector<1x32xf32> to vector<8x32xf32>
      %171 = arith.addf %169, %170 : vector<8x32xf32>
      %172 = arith.truncf %171 : vector<8x32xf32> to vector<8x32xbf16>
      %c0_85 = arith.constant 0 : index
      %c0_86 = arith.constant 0 : index
      %173 = vector.load %arg17[%c0_85, %c0_86] : memref<32x32xbf16, #tpu.memory_space<vmem>>, vector<32x32xbf16>
      %cst_87 = arith.constant dense<0.000000e+00> : vector<8x32xf32>
      %174 = tpu.matmul %172, %173, %cst_87 {dimension_numbers = #tpu.dot_dimension_numbers<[1], [0], [0], [1], [0, 0, 1, 1], [], []>} : vector<8x32xbf16>, vector<32x32xbf16>, vector<8x32xf32> -> vector<8x32xf32>
      %c0_88 = arith.constant 0 : index
      %c0_89 = arith.constant 0 : index
      %175 = vector.load %arg18[%c0_88, %c0_89] : memref<1x32xf32, #tpu.memory_space<vmem>>, vector<1x32xf32>
      %176 = vector.broadcast %175 : vector<1x32xf32> to vector<8x32xf32>
      %177 = arith.addf %174, %176 : vector<8x32xf32>
      %cst_90 = arith.constant 5.000000e-01 : f32
      %178 = vector.broadcast %cst_90 : f32 to vector<8x32xf32>
      %179 = arith.mulf %178, %177 : vector<8x32xf32>
      %cst_91 = arith.constant 4.471500e-02 : f32
      %180 = vector.broadcast %cst_91 : f32 to vector<8x32xf32>
      %181 = arith.mulf %180, %177 : vector<8x32xf32>
      %182 = arith.mulf %181, %177 : vector<8x32xf32>
      %183 = arith.mulf %182, %177 : vector<8x32xf32>
      %184 = arith.addf %177, %183 : vector<8x32xf32>
      %cst_92 = arith.constant 0.797884583 : f32
      %185 = vector.broadcast %cst_92 : f32 to vector<8x32xf32>
      %186 = arith.mulf %185, %184 : vector<8x32xf32>
      %187 = math.tanh %186 : vector<8x32xf32>
      %cst_93 = arith.constant 1.000000e+00 : f32
      %188 = vector.broadcast %cst_93 : f32 to vector<8x32xf32>
      %189 = arith.addf %188, %187 : vector<8x32xf32>
      %190 = arith.mulf %179, %189 : vector<8x32xf32>
      %c0_94 = arith.constant 0 : index
      %c0_95 = arith.constant 0 : index
      %191 = vector.load %arg19[%c0_94, %c0_95] : memref<1x32xf32, #tpu.memory_space<vmem>>, vector<1x32xf32>
      %c0_96 = arith.constant 0 : index
      %c0_97 = arith.constant 0 : index
      %192 = vector.load %arg20[%c0_96, %c0_97] : memref<1x32xf32, #tpu.memory_space<vmem>>, vector<1x32xf32>
      %cst_98 = arith.constant dense<0.000000e+00> : vector<8xf32>
      %193 = vector.multi_reduction <add>, %190, %cst_98 [1] : vector<8x32xf32> to vector<8xf32>
      %194 = vector.shape_cast %193 : vector<8xf32> to vector<8x1xf32>
      %cst_99 = arith.constant 3.200000e+01 : f32
      %195 = vector.broadcast %cst_99 : f32 to vector<8x1xf32>
      %196 = arith.divf %194, %195 : vector<8x1xf32>
      %197 = vector.broadcast %196 : vector<8x1xf32> to vector<8x32xf32>
      %198 = arith.subf %190, %197 : vector<8x32xf32>
      %199 = arith.mulf %198, %198 : vector<8x32xf32>
      %cst_100 = arith.constant dense<0.000000e+00> : vector<8xf32>
      %200 = vector.multi_reduction <add>, %199, %cst_100 [1] : vector<8x32xf32> to vector<8xf32>
      %201 = vector.shape_cast %200 : vector<8xf32> to vector<8x1xf32>
      %cst_101 = arith.constant 3.200000e+01 : f32
      %202 = vector.broadcast %cst_101 : f32 to vector<8x1xf32>
      %203 = arith.divf %201, %202 : vector<8x1xf32>
      %204 = vector.broadcast %196 : vector<8x1xf32> to vector<8x32xf32>
      %205 = arith.subf %190, %204 : vector<8x32xf32>
      %cst_102 = arith.constant 9.99999974E-6 : f32
      %206 = vector.broadcast %cst_102 : f32 to vector<8x1xf32>
      %207 = arith.addf %203, %206 : vector<8x1xf32>
      %208 = math.rsqrt %207 : vector<8x1xf32>
      %209 = vector.broadcast %208 : vector<8x1xf32> to vector<8x32xf32>
      %210 = arith.mulf %205, %209 : vector<8x32xf32>
      %211 = vector.broadcast %191 : vector<1x32xf32> to vector<8x32xf32>
      %212 = arith.mulf %210, %211 : vector<8x32xf32>
      %213 = vector.broadcast %192 : vector<1x32xf32> to vector<8x32xf32>
      %214 = arith.addf %212, %213 : vector<8x32xf32>
      %215 = arith.truncf %214 : vector<8x32xf32> to vector<8x32xbf16>
      %c0_103 = arith.constant 0 : index
      %c0_104 = arith.constant 0 : index
      %216 = vector.load %arg25[%c0_103, %c0_104] : memref<8x32xbf16, #tpu.memory_space<vmem>>, vector<8x32xbf16>
      tpu.vector_store %arg25[%c0_103, %c0_104], %215 {strides = array<i32>} : memref<8x32xbf16, #tpu.memory_space<vmem>>, vector<8x32xbf16>,
      %cst_105 = arith.constant -1.000000e+30 : f32
      %217 = vector.broadcast %cst_105 : f32 to vector<8x1xf32>
      %c0_106 = arith.constant 0 : index
      %c0_107 = arith.constant 0 : index
      %218 = vector.load %arg26[%c0_106, %c0_107] : memref<8x1xf32, #tpu.memory_space<vmem>>, vector<8x1xf32>
      tpu.vector_store %arg26[%c0_106, %c0_107], %217 {strides = array<i32>} : memref<8x1xf32, #tpu.memory_space<vmem>>, vector<8x1xf32>,
      %cst_108 = arith.constant 0.000000e+00 : f32
      %219 = vector.broadcast %cst_108 : f32 to vector<8x1xf32>
      %c0_109 = arith.constant 0 : index
      %c0_110 = arith.constant 0 : index
      %220 = vector.load %arg27[%c0_109, %c0_110] : memref<8x1xf32, #tpu.memory_space<vmem>>, vector<8x1xf32>
      tpu.vector_store %arg27[%c0_109, %c0_110], %219 {strides = array<i32>} : memref<8x1xf32, #tpu.memory_space<vmem>>, vector<8x1xf32>,
      %cst_111 = arith.constant 0.000000e+00 : f32
      %221 = vector.broadcast %cst_111 : f32 to vector<8x1xf32>
      %c0_112 = arith.constant 0 : index
      %c0_113 = arith.constant 0 : index
      %222 = vector.load %arg28[%c0_112, %c0_113] : memref<8x1xf32, #tpu.memory_space<vmem>>, vector<8x1xf32>
      tpu.vector_store %arg28[%c0_112, %c0_113], %221 {strides = array<i32>} : memref<8x1xf32, #tpu.memory_space<vmem>>, vector<8x1xf32>,
    } else {
    }
    %c0_3 = arith.constant 0 : index
    %c0_4 = arith.constant 0 : index
    %5 = vector.load %arg25[%c0_3, %c0_4] : memref<8x32xbf16, #tpu.memory_space<vmem>>, vector<8x32xbf16>
    %c0_5 = arith.constant 0 : index
    %c0_6 = arith.constant 0 : index
    %6 = vector.load %arg21[%c0_5, %c0_6] : memref<32x128xbf16, #tpu.memory_space<vmem>>, vector<32x128xbf16>
    %cst = arith.constant dense<0.000000e+00> : vector<8x128xf32>
    %7 = tpu.matmul %5, %6, %cst {dimension_numbers = #tpu.dot_dimension_numbers<[1], [0], [0], [1], [0, 0, 1, 1], [], []>} : vector<8x32xbf16>, vector<32x128xbf16>, vector<8x128xf32> -> vector<8x128xf32>
    %c0_7 = arith.constant 0 : index
    %c0_8 = arith.constant 0 : index
    %8 = vector.load %arg22[%c0_7, %c0_8] : memref<1x128xf32, #tpu.memory_space<vmem>>, vector<1x128xf32>
    %9 = vector.broadcast %8 : vector<1x128xf32> to vector<8x128xf32>
    %10 = arith.addf %7, %9 : vector<8x128xf32>
    %c0_9 = arith.constant 0 : index
    %c0_10 = arith.constant 0 : index
    %c0_11 = arith.constant 0 : index
    %11 = vector.load %arg23[%c0_9, %c0_10, %c0_11] : memref<1x8x128xf32, #tpu.memory_space<vmem>>, vector<1x8x128xf32>
    %12 = vector.shape_cast %11 : vector<1x8x128xf32> to vector<8x128xf32>
    %13 = vector.shape_cast %10 : vector<8x128xf32> to vector<1x8x128xf32>
    tpu.vector_store %arg23[%c0_9, %c0_10, %c0_11], %13 {strides = array<i32>} : memref<1x8x128xf32, #tpu.memory_space<vmem>>, vector<1x8x128xf32>,
    %c0_12 = arith.constant 0 : index
    %c0_13 = arith.constant 0 : index
    %14 = vector.load %arg26[%c0_12, %c0_13] : memref<8x1xf32, #tpu.memory_space<vmem>>, vector<8x1xf32>
    %cst_14 = arith.constant dense<0xFF800000> : vector<8xf32>
    %15 = vector.multi_reduction <maximumf>, %10, %cst_14 [1] : vector<8x128xf32> to vector<8xf32>
    %16 = vector.shape_cast %15 : vector<8xf32> to vector<8x1xf32>
    %17 = arith.maximumf %14, %16 : vector<8x1xf32>
    %c0_15 = arith.constant 0 : index
    %c0_16 = arith.constant 0 : index
    %18 = vector.load %arg27[%c0_15, %c0_16] : memref<8x1xf32, #tpu.memory_space<vmem>>, vector<8x1xf32>
    %19 = arith.subf %14, %17 : vector<8x1xf32>
    %20 = math.exp %19 : vector<8x1xf32>
    %21 = arith.mulf %18, %20 : vector<8x1xf32>
    %22 = vector.broadcast %17 : vector<8x1xf32> to vector<8x128xf32>
    %23 = arith.subf %10, %22 : vector<8x128xf32>
    %24 = math.exp %23 : vector<8x128xf32>
    %cst_17 = arith.constant dense<0.000000e+00> : vector<8xf32>
    %25 = vector.multi_reduction <add>, %24, %cst_17 [1] : vector<8x128xf32> to vector<8xf32>
    %26 = vector.shape_cast %25 : vector<8xf32> to vector<8x1xf32>
    %27 = arith.addf %21, %26 : vector<8x1xf32>
    %c0_18 = arith.constant 0 : index
    %c0_19 = arith.constant 0 : index
    %28 = vector.load %arg27[%c0_18, %c0_19] : memref<8x1xf32, #tpu.memory_space<vmem>>, vector<8x1xf32>
    tpu.vector_store %arg27[%c0_18, %c0_19], %27 {strides = array<i32>} : memref<8x1xf32, #tpu.memory_space<vmem>>, vector<8x1xf32>,
    %c0_20 = arith.constant 0 : index
    %c0_21 = arith.constant 0 : index
    %29 = vector.load %arg26[%c0_20, %c0_21] : memref<8x1xf32, #tpu.memory_space<vmem>>, vector<8x1xf32>
    tpu.vector_store %arg26[%c0_20, %c0_21], %17 {strides = array<i32>} : memref<8x1xf32, #tpu.memory_space<vmem>>, vector<8x1xf32>,
    %30 = tpu.iota {dimensions = array<i32: 1>} : vector<1x128xi32>
    %c128_i32 = arith.constant 128 : i32
    %31 = arith.muli %arg1, %c128_i32 : i32
    %32 = vector.broadcast %31 : i32 to vector<1x128xi32>
    %33 = arith.addi %30, %32 : vector<1x128xi32>
    %c0_22 = arith.constant 0 : index
    %c0_23 = arith.constant 0 : index
    %34 = vector.load %arg28[%c0_22, %c0_23] : memref<8x1xf32, #tpu.memory_space<vmem>>, vector<8x1xf32>
    %35 = vector.broadcast %33 : vector<1x128xi32> to vector<8x128xi32>
    %36 = vector.broadcast %1 : vector<8x1xi32> to vector<8x128xi32>
    %37 = arith.cmpi eq, %35, %36 : vector<8x128xi32>
    %cst_24 = arith.constant 0.000000e+00 : f32
    %38 = vector.broadcast %cst_24 : f32 to vector<8x128xf32>
    %39 = arith.select %37, %10, %38 : vector<8x128xi1>, vector<8x128xf32>
    %cst_25 = arith.constant dense<0.000000e+00> : vector<8xf32>
    %40 = vector.multi_reduction <add>, %39, %cst_25 [1] : vector<8x128xf32> to vector<8xf32>
    %41 = vector.shape_cast %40 : vector<8xf32> to vector<8x1xf32>
    %42 = arith.addf %34, %41 : vector<8x1xf32>
    %c0_26 = arith.constant 0 : index
    %c0_27 = arith.constant 0 : index
    %43 = vector.load %arg28[%c0_26, %c0_27] : memref<8x1xf32, #tpu.memory_space<vmem>>, vector<8x1xf32>
    tpu.vector_store %arg28[%c0_26, %c0_27], %42 {strides = array<i32>} : memref<8x1xf32, #tpu.memory_space<vmem>>, vector<8x1xf32>,
    %c0_i32_28 = arith.constant 0 : i32
    %44 = arith.cmpi eq, %arg1, %c0_i32_28 : i32
    %45 = arith.extui %44 : i1 to i32
    %c0_i32_29 = arith.constant 0 : i32
    %46 = arith.cmpi ne, %45, %c0_i32_29 : i32
    scf.if %46 {
      %c0_30 = arith.constant 0 : index
      %c0_31 = arith.constant 0 : index
      %47 = vector.load %arg26[%c0_30, %c0_31] : memref<8x1xf32, #tpu.memory_space<vmem>>, vector<8x1xf32>
      %c0_32 = arith.constant 0 : index
      %c0_33 = arith.constant 0 : index
      %48 = vector.load %arg27[%c0_32, %c0_33] : memref<8x1xf32, #tpu.memory_space<vmem>>, vector<8x1xf32>
      %49 = math.log %48 : vector<8x1xf32>
      %50 = arith.addf %47, %49 : vector<8x1xf32>
      %c-1_i32 = arith.constant -1 : i32
      %51 = vector.broadcast %c-1_i32 : i32 to vector<8x1xi32>
      %52 = arith.cmpi ne, %1, %51 : vector<8x1xi32>
      %53 = arith.extui %52 : vector<8x1xi1> to vector<8x1xi32>
      %54 = arith.sitofp %53 : vector<8x1xi32> to vector<8x1xf32>
      %c0_34 = arith.constant 0 : index
      %c0_35 = arith.constant 0 : index
      %55 = vector.load %arg28[%c0_34, %c0_35] : memref<8x1xf32, #tpu.memory_space<vmem>>, vector<8x1xf32>
      %56 = arith.subf %50, %55 : vector<8x1xf32>
      %57 = arith.mulf %56, %54 : vector<8x1xf32>
      %58 = vector.shape_cast %57 : vector<8x1xf32> to vector<1x8x1xf32>
      %cst_36 = arith.constant dense<0.000000e+00> : vector<1xf32>
      %59 = vector.multi_reduction <add>, %58, %cst_36 [1, 2] : vector<1x8x1xf32> to vector<1xf32>
      %60 = vector.shape_cast %59 : vector<1xf32> to vector<1x1x1xf32>
      %61 = vector.extract %60[0, 0, 0] : f32 from vector<1x1x1xf32>
      %62 = vector.shape_cast %54 : vector<8x1xf32> to vector<1x8x1xf32>
      %cst_37 = arith.constant dense<0.000000e+00> : vector<1xf32>
      %63 = vector.multi_reduction <add>, %62, %cst_37 [1, 2] : vector<1x8x1xf32> to vector<1xf32>
      %64 = vector.shape_cast %63 : vector<1xf32> to vector<1x1x1xf32>
      %65 = vector.extract %64[0, 0, 0] : f32 from vector<1x1x1xf32>
      %66 = tpu.iota {dimensions = array<i32: 1>} : vector<8x128xi32>
      %c0_i32_38 = arith.constant 0 : i32
      %67 = vector.broadcast %c0_i32_38 : i32 to vector<8x128xi32>
      %68 = arith.cmpi eq, %66, %67 : vector<8x128xi32>
      %cst_39 = arith.constant 0.000000e+00 : f32
      %69 = vector.broadcast %61 : f32 to vector<8x128xf32>
      %70 = vector.broadcast %cst_39 : f32 to vector<8x128xf32>
      %71 = arith.select %68, %69, %70 : vector<8x128xi1>, vector<8x128xf32>
      %c1_i32 = arith.constant 1 : i32
      %72 = vector.broadcast %c1_i32 : i32 to vector<8x128xi32>
      %73 = arith.cmpi eq, %66, %72 : vector<8x128xi32>
      %cst_40 = arith.constant 0.000000e+00 : f32
      %74 = vector.broadcast %65 : f32 to vector<8x128xf32>
      %75 = vector.broadcast %cst_40 : f32 to vector<8x128xf32>
      %76 = arith.select %73, %74, %75 : vector<8x128xi1>, vector<8x128xf32>
      %77 = arith.addf %71, %76 : vector<8x128xf32>
      %c0_41 = arith.constant 0 : index
      %c0_42 = arith.constant 0 : index
      %c0_43 = arith.constant 0 : index
      %78 = vector.load %arg24[%c0_41, %c0_42, %c0_43] : memref<1x8x128xf32, #tpu.memory_space<vmem>>, vector<1x8x128xf32>
      %79 = vector.shape_cast %78 : vector<1x8x128xf32> to vector<8x128xf32>
      %80 = vector.shape_cast %77 : vector<8x128xf32> to vector<1x8x128xf32>
      tpu.vector_store %arg24[%c0_41, %c0_42, %c0_43], %80 {strides = array<i32>} : memref<1x8x128xf32, #tpu.memory_space<vmem>>, vector<1x8x128xf32>,
    } else {
    }
    return
  }
  func.func @transform_0(%arg0: i32, %arg1: i32) -> (i32, i32, i32) {
    %c0_i32 = arith.constant 0 : i32
    %c0_i32_0 = arith.constant 0 : i32
    %c0_i32_1 = arith.constant 0 : i32
    return %arg0, %c0_i32, %c0_i32_0 : i32, i32, i32
  }
  func.func @transform_1(%arg0: i32, %arg1: i32) -> (i32, i32, i32) {
    %c0_i32 = arith.constant 0 : i32
    %c0_i32_0 = arith.constant 0 : i32
    %c0_i32_1 = arith.constant 0 : i32
    return %arg0, %c0_i32, %c0_i32_0 : i32, i32, i32
  }
  func.func @transform_2(%arg0: i32, %arg1: i32) -> (i32, i32, i32) {
    %c0_i32 = arith.constant 0 : i32
    %c0_i32_0 = arith.constant 0 : i32
    %c0_i32_1 = arith.constant 0 : i32
    return %arg0, %c0_i32, %c0_i32_0 : i32, i32, i32
  }
  func.func @transform_3(%arg0: i32, %arg1: i32) -> (i32, i32) {
    %c0_i32 = arith.constant 0 : i32
    %c0_i32_0 = arith.constant 0 : i32
    %c0_i32_1 = arith.constant 0 : i32
    return %c0_i32, %c0_i32_0 : i32, i32
  }
  func.func @transform_4(%arg0: i32, %arg1: i32) -> (i32, i32) {
    %c0_i32 = arith.constant 0 : i32
    %c0_i32_0 = arith.constant 0 : i32
    %c0_i32_1 = arith.constant 0 : i32
    return %c0_i32, %c0_i32_0 : i32, i32
  }
  func.func @transform_5(%arg0: i32, %arg1: i32) -> (i32, i32) {
    %c0_i32 = arith.constant 0 : i32
    %c0_i32_0 = arith.constant 0 : i32
    %c0_i32_1 = arith.constant 0 : i32
    return %c0_i32, %c0_i32_0 : i32, i32
  }
  func.func @transform_6(%arg0: i32, %arg1: i32) -> (i32, i32) {
    %c0_i32 = arith.constant 0 : i32
    %c0_i32_0 = arith.constant 0 : i32
    %c0_i32_1 = arith.constant 0 : i32
    return %c0_i32, %c0_i32_0 : i32, i32
  }
  func.func @transform_7(%arg0: i32, %arg1: i32) -> (i32, i32) {
    %c0_i32 = arith.constant 0 : i32
    %c0_i32_0 = arith.constant 0 : i32
    %c0_i32_1 = arith.constant 0 : i32
    return %c0_i32, %c0_i32_0 : i32, i32
  }
  func.func @transform_8(%arg0: i32, %arg1: i32) -> (i32, i32) {
    %c0_i32 = arith.constant 0 : i32
    %c0_i32_0 = arith.constant 0 : i32
    %c0_i32_1 = arith.constant 0 : i32
    return %c0_i32, %c0_i32_0 : i32, i32
  }
  func.func @transform_9(%arg0: i32, %arg1: i32) -> (i32, i32) {
    %c0_i32 = arith.constant 0 : i32
    %c0_i32_0 = arith.constant 0 : i32
    %c0_i32_1 = arith.constant 0 : i32
    return %c0_i32, %c0_i32_0 : i32, i32
  }
  func.func @transform_10(%arg0: i32, %arg1: i32) -> (i32, i32) {
    %c0_i32 = arith.constant 0 : i32
    %c0_i32_0 = arith.constant 0 : i32
    %c0_i32_1 = arith.constant 0 : i32
    return %c0_i32, %c0_i32_0 : i32, i32
  }
  func.func @transform_11(%arg0: i32, %arg1: i32) -> (i32, i32) {
    %c0_i32 = arith.constant 0 : i32
    %c0_i32_0 = arith.constant 0 : i32
    %c0_i32_1 = arith.constant 0 : i32
    return %c0_i32, %c0_i32_0 : i32, i32
  }
  func.func @transform_12(%arg0: i32, %arg1: i32) -> (i32, i32) {
    %c0_i32 = arith.constant 0 : i32
    %c0_i32_0 = arith.constant 0 : i32
    %c0_i32_1 = arith.constant 0 : i32
    return %c0_i32, %c0_i32_0 : i32, i32
  }
  func.func @transform_13(%arg0: i32, %arg1: i32) -> (i32, i32) {
    %c0_i32 = arith.constant 0 : i32
    %c0_i32_0 = arith.constant 0 : i32
    %c0_i32_1 = arith.constant 0 : i32
    return %c0_i32, %c0_i32_0 : i32, i32
  }
  func.func @transform_14(%arg0: i32, %arg1: i32) -> (i32, i32) {
    %c0_i32 = arith.constant 0 : i32
    %c0_i32_0 = arith.constant 0 : i32
    %c0_i32_1 = arith.constant 0 : i32
    return %c0_i32, %c0_i32_0 : i32, i32
  }
  func.func @transform_15(%arg0: i32, %arg1: i32) -> (i32, i32) {
    %c0_i32 = arith.constant 0 : i32
    %c0_i32_0 = arith.constant 0 : i32
    %c0_i32_1 = arith.constant 0 : i32
    return %c0_i32, %c0_i32_0 : i32, i32
  }
  func.func @transform_16(%arg0: i32, %arg1: i32) -> (i32, i32) {
    %c0_i32 = arith.constant 0 : i32
    %c0_i32_0 = arith.constant 0 : i32
    %c0_i32_1 = arith.constant 0 : i32
    return %c0_i32, %c0_i32_0 : i32, i32
  }
  func.func @transform_17(%arg0: i32, %arg1: i32) -> (i32, i32) {
    %c0_i32 = arith.constant 0 : i32
    %c0_i32_0 = arith.constant 0 : i32
    %c0_i32_1 = arith.constant 0 : i32
    return %c0_i32, %c0_i32_0 : i32, i32
  }
  func.func @transform_18(%arg0: i32, %arg1: i32) -> (i32, i32) {
    %c0_i32 = arith.constant 0 : i32
    %c0_i32_0 = arith.constant 0 : i32
    %c0_i32_1 = arith.constant 0 : i32
    return %c0_i32, %c0_i32_0 : i32, i32
  }
  func.func @transform_19(%arg0: i32, %arg1: i32) -> (i32, i32) {
    %c0_i32 = arith.constant 0 : i32
    %c0_i32_0 = arith.constant 0 : i32
    return %c0_i32, %arg1 : i32, i32
  }
  func.func @transform_20(%arg0: i32, %arg1: i32) -> (i32, i32) {
    %c0_i32 = arith.constant 0 : i32
    %c0_i32_0 = arith.constant 0 : i32
    return %c0_i32, %arg1 : i32, i32
  }
  func.func @transform_21(%arg0: i32, %arg1: i32) -> (i32, i32, i32) {
    %c0_i32 = arith.constant 0 : i32
    %c0_i32_0 = arith.constant 0 : i32
    return %arg0, %c0_i32, %arg1 : i32, i32, i32
  }
  func.func @transform_22(%arg0: i32, %arg1: i32) -> (i32, i32, i32) {
    %c0_i32 = arith.constant 0 : i32
    %c0_i32_0 = arith.constant 0 : i32
    %c0_i32_1 = arith.constant 0 : i32
    return %arg0, %c0_i32, %c0_i32_0 : i32, i32, i32
  }
}

</mosaic_0001>

<llo_original>
// kernel: tpu_custom_call.1
$region0: #{tpu_custom_call.1}
  #allocation0 [shape = 'u32[]', space=smem, size = 0x4, offset = 0x4, fixed_abs, tag = 'smem constant byte address 0x4 - core index']
  #allocation1 [shape = 'u32[144,128]{1,0:T(1,128)}', space=vmem, size = 0x12000, scoped, tag = 'internal scratch']
  #allocation2 [shape = 'bf16[8,32]{1,0:T(8,128)(2,1)}', space=vmem, size = 0x800, scoped, tag = 'scratch operand']
  #allocation3 [shape = 'f32[8,1]{1,0:T(8,128)}', space=vmem, size = 0x1000, scoped, tag = 'scratch operand']
  #allocation4 [shape = 'f32[8,1]{1,0:T(8,128)}', space=vmem, size = 0x1000, scoped, tag = 'scratch operand']
  #allocation5 [shape = 'f32[8,1]{1,0:T(8,128)}', space=vmem, size = 0x1000, scoped, tag = 'scratch operand']
  %s0 = inlined_call_operand.vmem [shape: f32[2,8,32], index: 0, kind: input, shape index: {}]
  %s1 = inlined_call_operand.hbm [shape: f32[2,1,8], index: 1, kind: input, shape index: {}]
  %s2 = inlined_call_operand.vmem [shape: s32[2,8,1], index: 2, kind: input, shape index: {}]
  %s3 = inlined_call_operand.vmem [shape: bf16[32,96], index: 3, kind: input, shape index: {}]
  %s4 = inlined_call_operand.hbm [shape: f32[1,96], index: 4, kind: input, shape index: {}]
  %s5 = inlined_call_operand.vmem [shape: bf16[32,32], index: 5, kind: input, shape index: {}]
  %s6 = inlined_call_operand.hbm [shape: f32[1,32], index: 6, kind: input, shape index: {}]
  %s7 = inlined_call_operand.hbm [shape: f32[1,32], index: 7, kind: input, shape index: {}]
  %s8 = inlined_call_operand.hbm [shape: f32[1,32], index: 8, kind: input, shape index: {}]
  %s9 = inlined_call_operand.vmem [shape: bf16[32,64], index: 9, kind: input, shape index: {}]
  %s10 = inlined_call_operand.vmem [shape: f32[1,64], index: 10, kind: input, shape index: {}]
  %s11 = inlined_call_operand.vmem [shape: bf16[64,32], index: 11, kind: input, shape index: {}]
  %s12 = inlined_call_operand.vmem [shape: f32[1,32], index: 12, kind: input, shape index: {}]
  %s13 = inlined_call_operand.vmem [shape: f32[1,32], index: 13, kind: input, shape index: {}]
  %s14 = inlined_call_operand.vmem [shape: f32[1,32], index: 14, kind: input, shape index: {}]
  %s15 = inlined_call_operand.vmem [shape: bf16[32,32], index: 15, kind: input, shape index: {}]
  %s16 = inlined_call_operand.vmem [shape: f32[1,32], index: 16, kind: input, shape index: {}]
  %s17 = inlined_call_operand.vmem [shape: f32[1,32], index: 17, kind: input, shape index: {}]
  %s18 = inlined_call_operand.vmem [shape: f32[1,32], index: 18, kind: input, shape index: {}]
  %s19 = inlined_call_operand.vmem [shape: bf16[32,128], index: 19, kind: input, shape index: {}]
  %s20 = inlined_call_operand.vmem [shape: f32[1,128], index: 20, kind: input, shape index: {}]
  %s21 = inlined_call_operand.hbm [shape: f32[2,8,128], index: 21, kind: output, shape index: {0}]
  %s22 = inlined_call_operand.hbm [shape: f32[2,8,128], index: 22, kind: output, shape index: {1}]
  %23 = xla_tuple %s21, %s22
  %s24 = sld [smem:[#allocation0]]
  $region153: #{tpu_custom_call.1} parent=0
    _
  %s26 = ssub.s32 1, %s24
  %s27 = scalar_select 0, %s26, %s24
  $region1: #{tpu_custom_call.1} parent=0
    #allocation6 [shape = 'u8[1024]{0}', space=vmem, size = 0x400, scoped, tag = 'input window, operand 1']
    #allocation7 [shape = 's32[2]{0}', space=sflag, size = 0x8, scoped, tag = 'scoped memory for tpu_custom_call.1']
    #allocation8 [shape = 's32[2]{0}', space=sflag, size = 0x8, scoped, tag = 'scoped memory for tpu_custom_call.1']
    #allocation9 [shape = 'u8[512]{0}', space=vmem, size = 0x400, scoped, tag = 'input window, operand 4, single buffered']
    #allocation10 [shape = 's32[1]{0}', space=sflag, size = 0x4, scoped, tag = 'scoped memory for tpu_custom_call.1']
    #allocation11 [shape = 'u8[512]{0}', space=vmem, size = 0x400, scoped, tag = 'input window, operand 6, single buffered']
    #allocation12 [shape = 'u8[512]{0}', space=vmem, size = 0x400, scoped, tag = 'input window, operand 7, single buffered']
    #allocation13 [shape = 's32[1]{0}', space=sflag, size = 0x4, scoped, tag = 'scoped memory for tpu_custom_call.1']
    #allocation14 [shape = 'u8[512]{0}', space=vmem, size = 0x400, scoped, tag = 'input window, operand 8, single buffered']
    #allocation15 [shape = 'u8[8192]{0}', space=vmem, size = 0x2000, scoped, tag = 'output window, operand 0']
    #allocation16 [shape = 'u8[8192]{0}', space=vmem, size = 0x2000, scoped, tag = 'output window, operand 1']
    #allocation17 [shape = 's32[2]{0}', space=sflag, size = 0x8, scoped, tag = 'scoped memory for tpu_custom_call.1']
    %28 = vsyncpa [#allocation7], 0
    %s29 = scalar_lea.sflag [#allocation7], 1
    %30 = vsyncpa %s29, 0
    %31 = vsyncpa [#allocation10], 0
    %32 = vsyncpa [#allocation13], 0
    %33 = vsyncpa [#allocation8], 0
    %s34 = scalar_lea.sflag [#allocation8], 1
    %35 = vsyncpa %s34, 0
    %36 = vsyncpa [#allocation17], 0
    %s37 = scalar_lea.sflag [#allocation17], 1
    %38 = vsyncpa %s37, 0
    loop: start=0, step=1, limit=4
    $region2: #{tpu_custom_call.1} parent=1 // loop_pre_header
      _
    $region3: #{tpu_custom_call.1} parent=1 // loop_header
      %s40 = sphi 0, %s44
      %p41 = scmp.ge.s32.totalorder %s40, 4
      %s47 = sphi 0, %s59
      %s48 = sphi 0, %s55
      %s49 = sphi 0, %s47
      %s50 = sphi 0, %s48
      %s51 = sphi 0, %s49
      %s52 = sphi 0, %s50
      %s62 = sphi 0, %s64
      %s65 = sphi 0, %s62
      %s66 = sphi 0, %s65
      %s82 = sphi 0, %s66
      %s88 = sphi 0, %s90
      %s91 = sphi 0, %s88
      %s92 = sphi 0, %s91
      %s108 = sphi 0, %s92
      %s114 = sphi 0, %s116
      %s117 = sphi 0, %s114
      %s118 = sphi 0, %s117
      %s134 = sphi 0, %s118
      %s138 = sphi 0, %s138
      %s140 = sphi 0, %s138
      %s141 = sphi 0, %s140
      %s155 = sphi 0, %s141
      %s159 = sphi 0, %s159
      %s161 = sphi 0, %s159
      %s162 = sphi 0, %s161
      %s176 = sphi 0, %s162
      %s180 = sphi 0, %s180
      %s182 = sphi 0, %s180
      %s183 = sphi 0, %s182
      %s197 = sphi 0, %s183
      %s201 = sphi 0, %s201
      %s203 = sphi 0, %s201
      %s204 = sphi 0, %s203
      %s218 = sphi 0, %s204
      %s222 = sphi 0, %s222
      %s224 = sphi 0, %s222
      %s225 = sphi 0, %s224
      %s239 = sphi 0, %s225
      %s243 = sphi 0, %s243
      %s245 = sphi 0, %s243
      %s246 = sphi 0, %s245
      %s260 = sphi 0, %s246
      %s264 = sphi 0, %s264
      %s266 = sphi 0, %s264
      %s267 = sphi 0, %s266
      %s281 = sphi 0, %s267
      %s285 = sphi 0, %s285
      %s287 = sphi 0, %s285
      %s288 = sphi 0, %s287
      %s302 = sphi 0, %s288
      %s306 = sphi 0, %s306
      %s308 = sphi 0, %s306
      %s309 = sphi 0, %s308
      %s323 = sphi 0, %s309
      %s327 = sphi 0, %s327
      %s329 = sphi 0, %s327
      %s330 = sphi 0, %s329
      %s344 = sphi 0, %s330
      %s348 = sphi 0, %s348
      %s350 = sphi 0, %s348
      %s351 = sphi 0, %s350
      %s365 = sphi 0, %s351
      %s369 = sphi 0, %s369
      %s371 = sphi 0, %s369
      %s372 = sphi 0, %s371
      %s386 = sphi 0, %s372
      %s390 = sphi 0, %s390
      %s392 = sphi 0, %s390
      %s393 = sphi 0, %s392
      %s407 = sphi 0, %s393
      %s411 = sphi 0, %s411
      %s413 = sphi 0, %s411
      %s414 = sphi 0, %s413
      %s428 = sphi 0, %s414
      %s432 = sphi 0, %s432
      %s434 = sphi 0, %s432
      %s435 = sphi 0, %s434
      %s449 = sphi 0, %s435
      %s453 = sphi 0, %s453
      %s455 = sphi 0, %s453
      %s456 = sphi 0, %s455
      %s470 = sphi 0, %s456
      %s476 = sphi 0, %s478
      %s479 = sphi 0, %s476
      %s480 = sphi 0, %s479
      %s496 = sphi 0, %s480
      %s502 = sphi 0, %s504
      %s505 = sphi 0, %s502
      %s506 = sphi 0, %s505
      %s522 = sphi 0, %s506
      %s530 = sphi 0, %s532
      %s533 = sphi 0, %s530
      %s534 = sphi 0, %s533
      %s550 = sphi 0, %s534
      %s556 = sphi 0, %s558
      %s559 = sphi 0, %s556
      %s560 = sphi 0, %s559
      %s576 = sphi 0, %s560
    $region4: #{tpu_custom_call.1} parent=1 // loop_header_branch
      %43 = sbr.rel (%p41) target = $region8
    $region5: #{tpu_custom_call.1} parent=1 // loop_body
      %s45 = ssub.s32 %s40, 1
      %s46 = ssub.s32 %s40, 2
      %s53 = sadd.s32 1, %s48
      %p54 = scmp.ge.s32.totalorder %s53, 1
      %s55 = scalar_select %p54, 0, %s53
      %s56 = sadd.s32 1, %s47
      %s57 = scalar_select %p54, %s56, %s47
      %p58 = scmp.ge.s32.totalorder %s57, 2
      %s59 = scalar_select %p58, 0, %s57
      %s60 = ssub.s32 %s47, %s59
      %p61 = scmp.eq.s32.totalorder %s60, 0
      %s63 = sadd.s32 %s62, 1
      %s64 = scalar_select %p61, %s62, %s63
      %p67 = pneg %p61
      %p68 = scmp.eq.s32.totalorder %s40, 1
      %p69 = por %p67, %p68
      %p70 = scmp.ne.s32.totalorder %s62, %s65
      %p71 = scmp.eq.s32.totalorder %s40, 0
      %p72 = por %p70, %p71
      %p73 = scmp.ne.s32.totalorder %s62, %s65
      %p74 = scmp.eq.s32.totalorder %s45, 1
      %p75 = por %p73, %p74
      %p76 = scmp.ne.s32.totalorder %s65, %s66
      %p77 = scmp.eq.s32.totalorder %s45, 0
      %p78 = por %p76, %p77
      %p79 = scmp.ne.s32.totalorder %s65, %s66
      %p80 = scmp.eq.s32.totalorder %s46, 1
      %p81 = por %p79, %p80
      %p83 = scmp.ne.s32.totalorder %s66, %s82
      %p84 = scmp.eq.s32.totalorder %s46, 0
      %p85 = por %p83, %p84
      %s86 = ssub.s32 %s47, %s59
      %p87 = scmp.eq.s32.totalorder %s86, 0
      %s89 = sadd.s32 %s88, 1
      %s90 = scalar_select %p87, %s88, %s89
      %p93 = pneg %p87
      %p94 = scmp.eq.s32.totalorder %s40, 1
      %p95 = por %p93, %p94
      %p96 = scmp.ne.s32.totalorder %s88, %s91
      %p97 = scmp.eq.s32.totalorder %s40, 0
      %p98 = por %p96, %p97
      %p99 = scmp.ne.s32.totalorder %s88, %s91
      %p100 = scmp.eq.s32.totalorder %s45, 1
      %p101 = por %p99, %p100
      %p102 = scmp.ne.s32.totalorder %s91, %s92
      %p103 = scmp.eq.s32.totalorder %s45, 0
      %p104 = por %p102, %p103
      %p105 = scmp.ne.s32.totalorder %s91, %s92
      %p106 = scmp.eq.s32.totalorder %s46, 1
      %p107 = por %p105, %p106
      %p109 = scmp.ne.s32.totalorder %s92, %s108
      %p110 = scmp.eq.s32.totalorder %s46, 0
      %p111 = por %p109, %p110
      %s112 = ssub.s32 %s47, %s59
      %p113 = scmp.eq.s32.totalorder %s112, 0
      %s115 = sadd.s32 %s114, 1
      %s116 = scalar_select %p113, %s114, %s115
      %p119 = pneg %p113
      %p120 = scmp.eq.s32.totalorder %s40, 1
      %p121 = por %p119, %p120
      %p122 = scmp.ne.s32.totalorder %s114, %s117
      %p123 = scmp.eq.s32.totalorder %s40, 0
      %p124 = por %p122, %p123
      %p125 = scmp.ne.s32.totalorder %s114, %s117
      %p126 = scmp.eq.s32.totalorder %s45, 1
      %p127 = por %p125, %p126
      %p128 = scmp.ne.s32.totalorder %s117, %s118
      %p129 = scmp.eq.s32.totalorder %s45, 0
      %p130 = por %p128, %p129
      %p131 = scmp.ne.s32.totalorder %s117, %s118
      %p132 = scmp.eq.s32.totalorder %s46, 1
      %p133 = por %p131, %p132
      %p135 = scmp.ne.s32.totalorder %s118, %s134
      %p136 = scmp.eq.s32.totalorder %s46, 0
      %p137 = por %p135, %p136
      %s139 = sadd.s32 %s138, 1
      %p142 = scmp.eq.s32.totalorder %s40, 1
      %p143 = scmp.ne.s32.totalorder %s138, %s140
      %p144 = scmp.eq.s32.totalorder %s40, 0
      %p145 = por %p143, %p144
      %p146 = scmp.ne.s32.totalorder %s138, %s140
      %p147 = scmp.eq.s32.totalorder %s45, 1
      %p148 = por %p146, %p147
      %p149 = scmp.ne.s32.totalorder %s140, %s141
      %p150 = scmp.eq.s32.totalorder %s45, 0
      %p151 = por %p149, %p150
      %p152 = scmp.ne.s32.totalorder %s140, %s141
      %p153 = scmp.eq.s32.totalorder %s46, 1
      %p154 = por %p152, %p153
      %p156 = scmp.ne.s32.totalorder %s141, %s155
      %p157 = scmp.eq.s32.totalorder %s46, 0
      %p158 = por %p156, %p157
      %s160 = sadd.s32 %s159, 1
      %p163 = scmp.eq.s32.totalorder %s40, 1
      %p164 = scmp.ne.s32.totalorder %s159, %s161
      %p165 = scmp.eq.s32.totalorder %s40, 0
      %p166 = por %p164, %p165
      %p167 = scmp.ne.s32.totalorder %s159, %s161
      %p168 = scmp.eq.s32.totalorder %s45, 1
      %p169 = por %p167, %p168
      %p170 = scmp.ne.s32.totalorder %s161, %s162
      %p171 = scmp.eq.s32.totalorder %s45, 0
      %p172 = por %p170, %p171
      %p173 = scmp.ne.s32.totalorder %s161, %s162
      %p174 = scmp.eq.s32.totalorder %s46, 1
      %p175 = por %p173, %p174
      %p177 = scmp.ne.s32.totalorder %s162, %s176
      %p178 = scmp.eq.s32.totalorder %s46, 0
      %p179 = por %p177, %p178
      %s181 = sadd.s32 %s180, 1
      %p184 = scmp.eq.s32.totalorder %s40, 1
      %p185 = scmp.ne.s32.totalorder %s180, %s182
      %p186 = scmp.eq.s32.totalorder %s40, 0
      %p187 = por %p185, %p186
      %p188 = scmp.ne.s32.totalorder %s180, %s182
      %p189 = scmp.eq.s32.totalorder %s45, 1
      %p190 = por %p188, %p189
      %p191 = scmp.ne.s32.totalorder %s182, %s183
      %p192 = scmp.eq.s32.totalorder %s45, 0
      %p193 = por %p191, %p192
      %p194 = scmp.ne.s32.totalorder %s182, %s183
      %p195 = scmp.eq.s32.totalorder %s46, 1
      %p196 = por %p194, %p195
      %p198 = scmp.ne.s32.totalorder %s183, %s197
      %p199 = scmp.eq.s32.totalorder %s46, 0
      %p200 = por %p198, %p199
      %s202 = sadd.s32 %s201, 1
      %p205 = scmp.eq.s32.totalorder %s40, 1
      %p206 = scmp.ne.s32.totalorder %s201, %s203
      %p207 = scmp.eq.s32.totalorder %s40, 0
      %p208 = por %p206, %p207
      %p209 = scmp.ne.s32.totalorder %s201, %s203
      %p210 = scmp.eq.s32.totalorder %s45, 1
      %p211 = por %p209, %p210
      %p212 = scmp.ne.s32.totalorder %s203, %s204
      %p213 = scmp.eq.s32.totalorder %s45, 0
      %p214 = por %p212, %p213
      %p215 = scmp.ne.s32.totalorder %s203, %s204
      %p216 = scmp.eq.s32.totalorder %s46, 1
      %p217 = por %p215, %p216
      %p219 = scmp.ne.s32.totalorder %s204, %s218
      %p220 = scmp.eq.s32.totalorder %s46, 0
      %p221 = por %p219, %p220
      %s223 = sadd.s32 %s222, 1
      %p226 = scmp.eq.s32.totalorder %s40, 1
      %p227 = scmp.ne.s32.totalorder %s222, %s224
      %p228 = scmp.eq.s32.totalorder %s40, 0
      %p229 = por %p227, %p228
      %p230 = scmp.ne.s32.totalorder %s222, %s224
      %p231 = scmp.eq.s32.totalorder %s45, 1
      %p232 = por %p230, %p231
      %p233 = scmp.ne.s32.totalorder %s224, %s225
      %p234 = scmp.eq.s32.totalorder %s45, 0
      %p235 = por %p233, %p234
      %p236 = scmp.ne.s32.totalorder %s224, %s225
      %p237 = scmp.eq.s32.totalorder %s46, 1
      %p238 = por %p236, %p237
      %p240 = scmp.ne.s32.totalorder %s225, %s239
      %p241 = scmp.eq.s32.totalorder %s46, 0
      %p242 = por %p240, %p241
      %s244 = sadd.s32 %s243, 1
      %p247 = scmp.eq.s32.totalorder %s40, 1
      %p248 = scmp.ne.s32.totalorder %s243, %s245
      %p249 = scmp.eq.s32.totalorder %s40, 0
      %p250 = por %p248, %p249
      %p251 = scmp.ne.s32.totalorder %s243, %s245
      %p252 = scmp.eq.s32.totalorder %s45, 1
      %p253 = por %p251, %p252
      %p254 = scmp.ne.s32.totalorder %s245, %s246
      %p255 = scmp.eq.s32.totalorder %s45, 0
      %p256 = por %p254, %p255
      %p257 = scmp.ne.s32.totalorder %s245, %s246
      %p258 = scmp.eq.s32.totalorder %s46, 1
      %p259 = por %p257, %p258
      %p261 = scmp.ne.s32.totalorder %s246, %s260
      %p262 = scmp.eq.s32.totalorder %s46, 0
      %p263 = por %p261, %p262
      %s265 = sadd.s32 %s264, 1
      %p268 = scmp.eq.s32.totalorder %s40, 1
      %p269 = scmp.ne.s32.totalorder %s264, %s266
      %p270 = scmp.eq.s32.totalorder %s40, 0
      %p271 = por %p269, %p270
      %p272 = scmp.ne.s32.totalorder %s264, %s266
      %p273 = scmp.eq.s32.totalorder %s45, 1
      %p274 = por %p272, %p273
      %p275 = scmp.ne.s32.totalorder %s266, %s267
      %p276 = scmp.eq.s32.totalorder %s45, 0
      %p277 = por %p275, %p276
      %p278 = scmp.ne.s32.totalorder %s266, %s267
      %p279 = scmp.eq.s32.totalorder %s46, 1
      %p280 = por %p278, %p279
      %p282 = scmp.ne.s32.totalorder %s267, %s281
      %p283 = scmp.eq.s32.totalorder %s46, 0
      %p284 = por %p282, %p283
      %s286 = sadd.s32 %s285, 1
      %p289 = scmp.eq.s32.totalorder %s40, 1
      %p290 = scmp.ne.s32.totalorder %s285, %s287
      %p291 = scmp.eq.s32.totalorder %s40, 0
      %p292 = por %p290, %p291
      %p293 = scmp.ne.s32.totalorder %s285, %s287
      %p294 = scmp.eq.s32.totalorder %s45, 1
      %p295 = por %p293, %p294
      %p296 = scmp.ne.s32.totalorder %s287, %s288
      %p297 = scmp.eq.s32.totalorder %s45, 0
      %p298 = por %p296, %p297
      %p299 = scmp.ne.s32.totalorder %s287, %s288
      %p300 = scmp.eq.s32.totalorder %s46, 1
      %p301 = por %p299, %p300
      %p303 = scmp.ne.s32.totalorder %s288, %s302
      %p304 = scmp.eq.s32.totalorder %s46, 0
      %p305 = por %p303, %p304
      %s307 = sadd.s32 %s306, 1
      %p310 = scmp.eq.s32.totalorder %s40, 1
      %p311 = scmp.ne.s32.totalorder %s306, %s308
      %p312 = scmp.eq.s32.totalorder %s40, 0
      %p313 = por %p311, %p312
      %p314 = scmp.ne.s32.totalorder %s306, %s308
      %p315 = scmp.eq.s32.totalorder %s45, 1
      %p316 = por %p314, %p315
      %p317 = scmp.ne.s32.totalorder %s308, %s309
      %p318 = scmp.eq.s32.totalorder %s45, 0
      %p319 = por %p317, %p318
      %p320 = scmp.ne.s32.totalorder %s308, %s309
      %p321 = scmp.eq.s32.totalorder %s46, 1
      %p322 = por %p320, %p321
      %p324 = scmp.ne.s32.totalorder %s309, %s323
      %p325 = scmp.eq.s32.totalorder %s46, 0
      %p326 = por %p324, %p325
      %s328 = sadd.s32 %s327, 1
      %p331 = scmp.eq.s32.totalorder %s40, 1
      %p332 = scmp.ne.s32.totalorder %s327, %s329
      %p333 = scmp.eq.s32.totalorder %s40, 0
      %p334 = por %p332, %p333
      %p335 = scmp.ne.s32.totalorder %s327, %s329
      %p336 = scmp.eq.s32.totalorder %s45, 1
      %p337 = por %p335, %p336
      %p338 = scmp.ne.s32.totalorder %s329, %s330
      %p339 = scmp.eq.s32.totalorder %s45, 0
      %p340 = por %p338, %p339
      %p341 = scmp.ne.s32.totalorder %s329, %s330
      %p342 = scmp.eq.s32.totalorder %s46, 1
      %p343 = por %p341, %p342
      %p345 = scmp.ne.s32.totalorder %s330, %s344
      %p346 = scmp.eq.s32.totalorder %s46, 0
      %p347 = por %p345, %p346
      %s349 = sadd.s32 %s348, 1
      %p352 = scmp.eq.s32.totalorder %s40, 1
      %p353 = scmp.ne.s32.totalorder %s348, %s350
      %p354 = scmp.eq.s32.totalorder %s40, 0
      %p355 = por %p353, %p354
      %p356 = scmp.ne.s32.totalorder %s348, %s350
      %p357 = scmp.eq.s32.totalorder %s45, 1
      %p358 = por %p356, %p357
      %p359 = scmp.ne.s32.totalorder %s350, %s351
      %p360 = scmp.eq.s32.totalorder %s45, 0
      %p361 = por %p359, %p360
      %p362 = scmp.ne.s32.totalorder %s350, %s351
      %p363 = scmp.eq.s32.totalorder %s46, 1
      %p364 = por %p362, %p363
      %p366 = scmp.ne.s32.totalorder %s351, %s365
      %p367 = scmp.eq.s32.totalorder %s46, 0
      %p368 = por %p366, %p367
      %s370 = sadd.s32 %s369, 1
      %p373 = scmp.eq.s32.totalorder %s40, 1
      %p374 = scmp.ne.s32.totalorder %s369, %s371
      %p375 = scmp.eq.s32.totalorder %s40, 0
      %p376 = por %p374, %p375
      %p377 = scmp.ne.s32.totalorder %s369, %s371
      %p378 = scmp.eq.s32.totalorder %s45, 1
      %p379 = por %p377, %p378
      %p380 = scmp.ne.s32.totalorder %s371, %s372
      %p381 = scmp.eq.s32.totalorder %s45, 0
      %p382 = por %p380, %p381
      %p383 = scmp.ne.s32.totalorder %s371, %s372
      %p384 = scmp.eq.s32.totalorder %s46, 1
      %p385 = por %p383, %p384
      %p387 = scmp.ne.s32.totalorder %s372, %s386
      %p388 = scmp.eq.s32.totalorder %s46, 0
      %p389 = por %p387, %p388
      %s391 = sadd.s32 %s390, 1
      %p394 = scmp.eq.s32.totalorder %s40, 1
      %p395 = scmp.ne.s32.totalorder %s390, %s392
      %p396 = scmp.eq.s32.totalorder %s40, 0
      %p397 = por %p395, %p396
      %p398 = scmp.ne.s32.totalorder %s390, %s392
      %p399 = scmp.eq.s32.totalorder %s45, 1
      %p400 = por %p398, %p399
      %p401 = scmp.ne.s32.totalorder %s392, %s393
      %p402 = scmp.eq.s32.totalorder %s45, 0
      %p403 = por %p401, %p402
      %p404 = scmp.ne.s32.totalorder %s392, %s393
      %p405 = scmp.eq.s32.totalorder %s46, 1
      %p406 = por %p404, %p405
      %p408 = scmp.ne.s32.totalorder %s393, %s407
      %p409 = scmp.eq.s32.totalorder %s46, 0
      %p410 = por %p408, %p409
      %s412 = sadd.s32 %s411, 1
      %p415 = scmp.eq.s32.totalorder %s40, 1
      %p416 = scmp.ne.s32.totalorder %s411, %s413
      %p417 = scmp.eq.s32.totalorder %s40, 0
      %p418 = por %p416, %p417
      %p419 = scmp.ne.s32.totalorder %s411, %s413
      %p420 = scmp.eq.s32.totalorder %s45, 1
      %p421 = por %p419, %p420
      %p422 = scmp.ne.s32.totalorder %s413, %s414
      %p423 = scmp.eq.s32.totalorder %s45, 0
      %p424 = por %p422, %p423
      %p425 = scmp.ne.s32.totalorder %s413, %s414
      %p426 = scmp.eq.s32.totalorder %s46, 1
      %p427 = por %p425, %p426
      %p429 = scmp.ne.s32.totalorder %s414, %s428
      %p430 = scmp.eq.s32.totalorder %s46, 0
      %p431 = por %p429, %p430
      %s433 = sadd.s32 %s432, 1
      %p436 = scmp.eq.s32.totalorder %s40, 1
      %p437 = scmp.ne.s32.totalorder %s432, %s434
      %p438 = scmp.eq.s32.totalorder %s40, 0
      %p439 = por %p437, %p438
      %p440 = scmp.ne.s32.totalorder %s432, %s434
      %p441 = scmp.eq.s32.totalorder %s45, 1
      %p442 = por %p440, %p441
      %p443 = scmp.ne.s32.totalorder %s434, %s435
      %p444 = scmp.eq.s32.totalorder %s45, 0
      %p445 = por %p443, %p444
      %p446 = scmp.ne.s32.totalorder %s434, %s435
      %p447 = scmp.eq.s32.totalorder %s46, 1
      %p448 = por %p446, %p447
      %p450 = scmp.ne.s32.totalorder %s435, %s449
      %p451 = scmp.eq.s32.totalorder %s46, 0
      %p452 = por %p450, %p451
      %s454 = sadd.s32 %s453, 1
      %p457 = scmp.eq.s32.totalorder %s40, 1
      %p458 = scmp.ne.s32.totalorder %s453, %s455
      %p459 = scmp.eq.s32.totalorder %s40, 0
      %p460 = por %p458, %p459
      %p461 = scmp.ne.s32.totalorder %s453, %s455
      %p462 = scmp.eq.s32.totalorder %s45, 1
      %p463 = por %p461, %p462
      %p464 = scmp.ne.s32.totalorder %s455, %s456
      %p465 = scmp.eq.s32.totalorder %s45, 0
      %p466 = por %p464, %p465
      %p467 = scmp.ne.s32.totalorder %s455, %s456
      %p468 = scmp.eq.s32.totalorder %s46, 1
      %p469 = por %p467, %p468
      %p471 = scmp.ne.s32.totalorder %s456, %s470
      %p472 = scmp.eq.s32.totalorder %s46, 0
      %p473 = por %p471, %p472
      %s474 = ssub.s32 %s48, %s55
      %p475 = scmp.eq.s32.totalorder %s474, 0
      %s477 = sadd.s32 %s476, 1
      %s478 = scalar_select %p475, %s476, %s477
      %p481 = pneg %p475
      %p482 = scmp.eq.s32.totalorder %s40, 1
      %p483 = por %p481, %p482
      %p484 = scmp.ne.s32.totalorder %s476, %s479
      %p485 = scmp.eq.s32.totalorder %s40, 0
      %p486 = por %p484, %p485
      %p487 = scmp.ne.s32.totalorder %s476, %s479
      %p488 = scmp.eq.s32.totalorder %s45, 1
      %p489 = por %p487, %p488
      %p490 = scmp.ne.s32.totalorder %s479, %s480
      %p491 = scmp.eq.s32.totalorder %s45, 0
      %p492 = por %p490, %p491
      %p493 = scmp.ne.s32.totalorder %s479, %s480
      %p494 = scmp.eq.s32.totalorder %s46, 1
      %p495 = por %p493, %p494
      %p497 = scmp.ne.s32.totalorder %s480, %s496
      %p498 = scmp.eq.s32.totalorder %s46, 0
      %p499 = por %p497, %p498
      %s500 = ssub.s32 %s48, %s55
      %p501 = scmp.eq.s32.totalorder %s500, 0
      %s503 = sadd.s32 %s502, 1
      %s504 = scalar_select %p501, %s502, %s503
      %p507 = pneg %p501
      %p508 = scmp.eq.s32.totalorder %s40, 1
      %p509 = por %p507, %p508
      %p510 = scmp.ne.s32.totalorder %s502, %s505
      %p511 = scmp.eq.s32.totalorder %s40, 0
      %p512 = por %p510, %p511
      %p513 = scmp.ne.s32.totalorder %s502, %s505
      %p514 = scmp.eq.s32.totalorder %s45, 1
      %p515 = por %p513, %p514
      %p516 = scmp.ne.s32.totalorder %s505, %s506
      %p517 = scmp.eq.s32.totalorder %s45, 0
      %p518 = por %p516, %p517
      %p519 = scmp.ne.s32.totalorder %s505, %s506
      %p520 = scmp.eq.s32.totalorder %s46, 1
      %p521 = por %p519, %p520
      %p523 = scmp.ne.s32.totalorder %s506, %s522
      %p524 = scmp.eq.s32.totalorder %s46, 0
      %p525 = por %p523, %p524
      %s526 = ssub.s32 %s47, %s59
      %s527 = ssub.s32 %s48, %s55
      %s528 = sor.u32 %s526, %s527
      %p529 = scmp.eq.s32.totalorder %s528, 0
      %s531 = sadd.s32 %s530, 1
      %s532 = scalar_select %p529, %s530, %s531
      %p535 = pneg %p529
      %p536 = scmp.eq.s32.totalorder %s40, 1
      %p537 = por %p535, %p536
      %p538 = scmp.ne.s32.totalorder %s530, %s533
      %p539 = scmp.eq.s32.totalorder %s40, 0
      %p540 = por %p538, %p539
      %p541 = scmp.ne.s32.totalorder %s530, %s533
      %p542 = scmp.eq.s32.totalorder %s45, 1
      %p543 = por %p541, %p542
      %p544 = scmp.ne.s32.totalorder %s533, %s534
      %p545 = scmp.eq.s32.totalorder %s45, 0
      %p546 = por %p544, %p545
      %p547 = scmp.ne.s32.totalorder %s533, %s534
      %p548 = scmp.eq.s32.totalorder %s46, 1
      %p549 = por %p547, %p548
      %p551 = scmp.ne.s32.totalorder %s534, %s550
      %p552 = scmp.eq.s32.totalorder %s46, 0
      %p553 = por %p551, %p552
      %s554 = ssub.s32 %s47, %s59
      %p555 = scmp.eq.s32.totalorder %s554, 0
      %s557 = sadd.s32 %s556, 1
      %s558 = scalar_select %p555, %s556, %s557
      %p561 = pneg %p555
      %p562 = scmp.eq.s32.totalorder %s40, 1
      %p563 = por %p561, %p562
      %p564 = scmp.ne.s32.totalorder %s556, %s559
      %p565 = scmp.eq.s32.totalorder %s40, 0
      %p566 = por %p564, %p565
      %p567 = scmp.ne.s32.totalorder %s556, %s559
      %p568 = scmp.eq.s32.totalorder %s45, 1
      %p569 = por %p567, %p568
      %p570 = scmp.ne.s32.totalorder %s559, %s560
      %p571 = scmp.eq.s32.totalorder %s45, 0
      %p572 = por %p570, %p571
      %p573 = scmp.ne.s32.totalorder %s559, %s560
      %p574 = scmp.eq.s32.totalorder %s46, 1
      %p575 = por %p573, %p574
      %p577 = scmp.ne.s32.totalorder %s560, %s576
      %p578 = scmp.eq.s32.totalorder %s46, 0
      %p579 = por %p577, %p578
      %p580 = scmp.le.s32.totalorder 1, %s40
      %p581 = scmp.lt.s32.totalorder %s40, 3
      %p582 = pnand %p580, %p581
      %p583 = pneg %p582
      // Predicated region
      $region9: #{tpu_custom_call.1} parent=5 // pred_check
        _
      $region10: #{tpu_custom_call.1} parent=5 // pred_check_branch
        %585 = sbr.rel (%p582) target = $region12
      $region11: #{tpu_custom_call.1} parent=5 // pred_region
        %s586 = ssub.s32 %s40, 1
        // Predicated region
        $region13: #{tpu_custom_call.1} parent=11 // pred_check
          %p587 = pneg %p151
        $region14: #{tpu_custom_call.1} parent=11 // pred_check_branch
          %589 = sbr.rel (%p587) target = $region16
        $region15: #{tpu_custom_call.1} parent=11 // pred_region
          _
        $region16: #{tpu_custom_call.1} parent=11 // pred_fallthru
          _
        // Predicated region
        $region17: #{tpu_custom_call.1} parent=11 // pred_check
          %p590 = pneg %p172
        $region18: #{tpu_custom_call.1} parent=11 // pred_check_branch
          %592 = sbr.rel (%p590) target = $region20
        $region19: #{tpu_custom_call.1} parent=11 // pred_region
          %s594 = ssub.s32 16, 16
          %595 = vsyncadd [#allocation10], %s594
          %s597 = sshll.u32 [#allocation9], 4
          %s598 = int_to_ptr.vmem [resolvable:$true] %s597
          %600 = dma.hbm_to_vmem [thread:$0]  %s4, 16, %s598, [#allocation10]
        $region20: #{tpu_custom_call.1} parent=11 // pred_fallthru
          _
        // Predicated region
        $region21: #{tpu_custom_call.1} parent=11 // pred_check
          %p601 = pneg %p193
        $region22: #{tpu_custom_call.1} parent=11 // pred_check_branch
          %603 = sbr.rel (%p601) target = $region24
        $region23: #{tpu_custom_call.1} parent=11 // pred_region
          _
        $region24: #{tpu_custom_call.1} parent=11 // pred_fallthru
          _
        // Predicated region
        $region25: #{tpu_custom_call.1} parent=11 // pred_check
          %p604 = pneg %p214
        $region26: #{tpu_custom_call.1} parent=11 // pred_check_branch
          %606 = sbr.rel (%p604) target = $region28
        $region27: #{tpu_custom_call.1} parent=11 // pred_region
          %s608 = ssub.s32 16, 16
          %609 = vsyncadd [#allocation10], %s608
          %s611 = sshll.u32 [#allocation11], 4
          %s612 = int_to_ptr.vmem [resolvable:$true] %s611
          %614 = dma.hbm_to_vmem [thread:$0]  %s6, 16, %s612, [#allocation10]
        $region28: #{tpu_custom_call.1} parent=11 // pred_fallthru
          _
        // Predicated region
        $region29: #{tpu_custom_call.1} parent=11 // pred_check
          %p615 = pneg %p235
        $region30: #{tpu_custom_call.1} parent=11 // pred_check_branch
          %617 = sbr.rel (%p615) target = $region32
        $region31: #{tpu_custom_call.1} parent=11 // pred_region
          %s619 = ssub.s32 16, 16
          %620 = vsyncadd [#allocation13], %s619
          %s622 = sshll.u32 [#allocation12], 4
          %s623 = int_to_ptr.vmem [resolvable:$true] %s622
          %625 = dma.hbm_to_vmem [thread:$0]  %s7, 16, %s623, [#allocation13]
        $region32: #{tpu_custom_call.1} parent=11 // pred_fallthru
          _
        // Predicated region
        $region33: #{tpu_custom_call.1} parent=11 // pred_check
          %p626 = pneg %p256
        $region34: #{tpu_custom_call.1} parent=11 // pred_check_branch
          %628 = sbr.rel (%p626) target = $region36
        $region35: #{tpu_custom_call.1} parent=11 // pred_region
          %s630 = ssub.s32 16, 16
          %631 = vsyncadd [#allocation13], %s630
          %s633 = sshll.u32 [#allocation14], 4
          %s634 = int_to_ptr.vmem [resolvable:$true] %s633
          %636 = dma.hbm_to_vmem [thread:$0]  %s8, 16, %s634, [#allocation13]
        $region36: #{tpu_custom_call.1} parent=11 // pred_fallthru
          _
        // Predicated region
        $region37: #{tpu_custom_call.1} parent=11 // pred_check
          %p637 = pneg %p277
        $region38: #{tpu_custom_call.1} parent=11 // pred_check_branch
          %639 = sbr.rel (%p637) target = $region40
        $region39: #{tpu_custom_call.1} parent=11 // pred_region
          _
        $region40: #{tpu_custom_call.1} parent=11 // pred_fallthru
          _
        // Predicated region
        $region41: #{tpu_custom_call.1} parent=11 // pred_check
          %p640 = pneg %p298
        $region42: #{tpu_custom_call.1} parent=11 // pred_check_branch
          %642 = sbr.rel (%p640) target = $region44
        $region43: #{tpu_custom_call.1} parent=11 // pred_region
          _
        $region44: #{tpu_custom_call.1} parent=11 // pred_fallthru
          _
        // Predicated region
        $region45: #{tpu_custom_call.1} parent=11 // pred_check
          %p643 = pneg %p319
        $region46: #{tpu_custom_call.1} parent=11 // pred_check_branch
          %645 = sbr.rel (%p643) target = $region48
        $region47: #{tpu_custom_call.1} parent=11 // pred_region
          _
        $region48: #{tpu_custom_call.1} parent=11 // pred_fallthru
          _
        // Predicated region
        $region49: #{tpu_custom_call.1} parent=11 // pred_check
          %p646 = pneg %p340
        $region50: #{tpu_custom_call.1} parent=11 // pred_check_branch
          %648 = sbr.rel (%p646) target = $region52
        $region51: #{tpu_custom_call.1} parent=11 // pred_region
          _
        $region52: #{tpu_custom_call.1} parent=11 // pred_fallthru
          _
        // Predicated region
        $region53: #{tpu_custom_call.1} parent=11 // pred_check
          %p649 = pneg %p361
        $region54: #{tpu_custom_call.1} parent=11 // pred_check_branch
          %651 = sbr.rel (%p649) target = $region56
        $region55: #{tpu_custom_call.1} parent=11 // pred_region
          _
        $region56: #{tpu_custom_call.1} parent=11 // pred_fallthru
          _
        // Predicated region
        $region57: #{tpu_custom_call.1} parent=11 // pred_check
          %p652 = pneg %p382
        $region58: #{tpu_custom_call.1} parent=11 // pred_check_branch
          %654 = sbr.rel (%p652) target = $region60
        $region59: #{tpu_custom_call.1} parent=11 // pred_region
          _
        $region60: #{tpu_custom_call.1} parent=11 // pred_fallthru
          _
        // Predicated region
        $region61: #{tpu_custom_call.1} parent=11 // pred_check
          %p655 = pneg %p403
        $region62: #{tpu_custom_call.1} parent=11 // pred_check_branch
          %657 = sbr.rel (%p655) target = $region64
        $region63: #{tpu_custom_call.1} parent=11 // pred_region
          _
        $region64: #{tpu_custom_call.1} parent=11 // pred_fallthru
          _
        // Predicated region
        $region65: #{tpu_custom_call.1} parent=11 // pred_check
          %p658 = pneg %p424
        $region66: #{tpu_custom_call.1} parent=11 // pred_check_branch
          %660 = sbr.rel (%p658) target = $region68
        $region67: #{tpu_custom_call.1} parent=11 // pred_region
          _
        $region68: #{tpu_custom_call.1} parent=11 // pred_fallthru
          _
        // Predicated region
        $region69: #{tpu_custom_call.1} parent=11 // pred_check
          %p661 = pneg %p445
        $region70: #{tpu_custom_call.1} parent=11 // pred_check_branch
          %663 = sbr.rel (%p661) target = $region72
        $region71: #{tpu_custom_call.1} parent=11 // pred_region
          _
        $region72: #{tpu_custom_call.1} parent=11 // pred_fallthru
          _
        // Predicated region
        $region73: #{tpu_custom_call.1} parent=11 // pred_check
          %p664 = pneg %p466
        $region74: #{tpu_custom_call.1} parent=11 // pred_check_branch
          %666 = sbr.rel (%p664) target = $region76
        $region75: #{tpu_custom_call.1} parent=11 // pred_region
          _
        $region76: #{tpu_custom_call.1} parent=11 // pred_fallthru
          _
        // Predicated region
        $region77: #{tpu_custom_call.1} parent=11 // pred_check
          %p667 = pneg %p492
        $region78: #{tpu_custom_call.1} parent=11 // pred_check_branch
          %669 = sbr.rel (%p667) target = $region80
        $region79: #{tpu_custom_call.1} parent=11 // pred_region
          %p670 = scmp.lt.s32.totalorder %s50, 0
          %s671 = scalar_select %p670, %s50, 0
          %s672 = smul.addr %s671, 4
          %s673 = scalar_lea.vmem %s19, %s672
        $region80: #{tpu_custom_call.1} parent=11 // pred_fallthru
          _
        // Predicated region
        $region81: #{tpu_custom_call.1} parent=11 // pred_check
          %p674 = pneg %p518
        $region82: #{tpu_custom_call.1} parent=11 // pred_check_branch
          %676 = sbr.rel (%p674) target = $region84
        $region83: #{tpu_custom_call.1} parent=11 // pred_region
          %p677 = scmp.lt.s32.totalorder %s50, 0
          %s678 = scalar_select %p677, %s50, 0
          %s679 = scalar_lea.vmem %s20, %s678
        $region84: #{tpu_custom_call.1} parent=11 // pred_fallthru
          _
      $region12: #{tpu_custom_call.1} parent=5 // pred_fallthru
        _
      %p680 = scmp.lt.s32.totalorder %s40, 2
      // Predicated region
      $region85: #{tpu_custom_call.1} parent=5 // pred_check
        %p681 = pneg %p680
      $region86: #{tpu_custom_call.1} parent=5 // pred_check_branch
        %683 = sbr.rel (%p681) target = $region88
      $region87: #{tpu_custom_call.1} parent=5 // pred_region
        // Predicated region
        $region89: #{tpu_custom_call.1} parent=87 // pred_check
          %p684 = pneg %p72
        $region90: #{tpu_custom_call.1} parent=87 // pred_check_branch
          %686 = sbr.rel (%p684) target = $region92
        $region91: #{tpu_custom_call.1} parent=87 // pred_region
          %p687 = scmp.lt.s32.totalorder %s47, 1
          %s688 = scalar_select %p687, %s47, 1
          %s689 = smul.addr %s688, 8
          %s690 = scalar_lea.vmem %s0, %s689
        $region92: #{tpu_custom_call.1} parent=87 // pred_fallthru
          _
        // Predicated region
        $region93: #{tpu_custom_call.1} parent=87 // pred_check
          %p691 = pneg %p98
        $region94: #{tpu_custom_call.1} parent=87 // pred_check_branch
          %693 = sbr.rel (%p691) target = $region96
        $region95: #{tpu_custom_call.1} parent=87 // pred_region
          %s694 = sand.u32 %s88, 1
          %s695 = scalar_lea.sflag [#allocation7], %s694
          %s696 = sand.u32 %s88, 1
          %s697 = scalar_lea.vmem [#allocation6], %s696
          %s699 = ssub.s32 16, 16
          %700 = vsyncadd %s695, %s699
          %s701 = smul.addr %s47, 16
          %s702 = scalar_lea.hbm %s1, %s701
          %s704 = sshll.u32 %s697, 4
          %s705 = int_to_ptr.vmem [resolvable:$true] %s704
          %707 = dma.hbm_to_vmem [thread:$0]  %s702, 16, %s705, %s695
        $region96: #{tpu_custom_call.1} parent=87 // pred_fallthru
          _
        // Predicated region
        $region97: #{tpu_custom_call.1} parent=87 // pred_check
          %p708 = pneg %p124
        $region98: #{tpu_custom_call.1} parent=87 // pred_check_branch
          %710 = sbr.rel (%p708) target = $region100
        $region99: #{tpu_custom_call.1} parent=87 // pred_region
          %p711 = scmp.lt.s32.totalorder %s47, 1
          %s712 = scalar_select %p711, %s47, 1
          %s713 = smul.addr %s712, 8
          %s714 = scalar_lea.vmem %s2, %s713
        $region100: #{tpu_custom_call.1} parent=87 // pred_fallthru
          _
      $region88: #{tpu_custom_call.1} parent=5 // pred_fallthru
        _
      %p715 = scmp.le.s32.totalorder 1, %s40
      %p716 = scmp.lt.s32.totalorder %s40, 3
      %p717 = pnand %p715, %p716
      %p718 = pneg %p717
      // Predicated region
      $region101: #{tpu_custom_call.1} parent=5 // pred_check
        _
      $region102: #{tpu_custom_call.1} parent=5 // pred_check_branch
        %720 = sbr.rel (%p717) target = $region104
      $region103: #{tpu_custom_call.1} parent=5 // pred_region
        %s721 = ssub.s32 %s40, 1
        %s722 = sand.u32 %s91, 1
        %s723 = scalar_lea.sflag [#allocation7], %s722
        %s724 = sand.u32 %s91, 1
        %s725 = scalar_lea.vmem [#allocation6], %s724
        // Predicated region
        $region105: #{tpu_custom_call.1} parent=103 // pred_check
          %p726 = pneg %p104
        $region106: #{tpu_custom_call.1} parent=103 // pred_check_branch
          %728 = sbr.rel (%p726) target = $region108
        $region107: #{tpu_custom_call.1} parent=103 // pred_region
          %729 = dma.done %s723, 16
        $region108: #{tpu_custom_call.1} parent=103 // pred_fallthru
          _
        // Predicated region
        $region109: #{tpu_custom_call.1} parent=103 // pred_check
          %p730 = pneg %p172
        $region110: #{tpu_custom_call.1} parent=103 // pred_check_branch
          %732 = sbr.rel (%p730) target = $region112
        $region111: #{tpu_custom_call.1} parent=103 // pred_region
          %733 = dma.done [#allocation10], 16
        $region112: #{tpu_custom_call.1} parent=103 // pred_fallthru
          _
        // Predicated region
        $region113: #{tpu_custom_call.1} parent=103 // pred_check
          %p734 = pneg %p214
        $region114: #{tpu_custom_call.1} parent=103 // pred_check_branch
          %736 = sbr.rel (%p734) target = $region116
        $region115: #{tpu_custom_call.1} parent=103 // pred_region
          %737 = dma.done [#allocation10], 16
        $region116: #{tpu_custom_call.1} parent=103 // pred_fallthru
          _
        // Predicated region
        $region117: #{tpu_custom_call.1} parent=103 // pred_check
          %p738 = pneg %p235
        $region118: #{tpu_custom_call.1} parent=103 // pred_check_branch
          %740 = sbr.rel (%p738) target = $region120
        $region119: #{tpu_custom_call.1} parent=103 // pred_region
          %741 = dma.done [#allocation13], 16
        $region120: #{tpu_custom_call.1} parent=103 // pred_fallthru
          _
        // Predicated region
        $region121: #{tpu_custom_call.1} parent=103 // pred_check
          %p742 = pneg %p256
        $region122: #{tpu_custom_call.1} parent=103 // pred_check_branch
          %744 = sbr.rel (%p742) target = $region124
        $region123: #{tpu_custom_call.1} parent=103 // pred_region
          %745 = dma.done [#allocation13], 16
        $region124: #{tpu_custom_call.1} parent=103 // pred_fallthru
          _
        %p746 = scmp.lt.s32.totalorder %s49, 1
        %s747 = scalar_select %p746, %s49, 1
        %s748 = smul.addr %s747, 8
        %s749 = scalar_lea.vmem %s0, %s748
        %p750 = pneg %p78
        %p751 = pneg %p75
        %s752 = sand.u32 %s91, 1
        %s753 = scalar_lea.sflag [#allocation7], %s752
        %s754 = sand.u32 %s91, 1
        %s755 = scalar_lea.vmem [#allocation6], %s754
        %p756 = pneg %p104
        %p757 = pneg %p101
        %p758 = scmp.lt.s32.totalorder %s49, 1
        %s759 = scalar_select %p758, %s49, 1
        %s760 = smul.addr %s759, 8
        %s761 = scalar_lea.vmem %s2, %s760
        %p762 = pneg %p130
        %p763 = pneg %p127
        %p764 = pneg %p151
        %p765 = pneg %p148
        %p766 = pneg %p172
        %p767 = pneg %p169
        %p768 = pneg %p193
        %p769 = pneg %p190
        %p770 = pneg %p214
        %p771 = pneg %p211
        %p772 = pneg %p235
        %p773 = pneg %p232
        %p774 = pneg %p256
        %p775 = pneg %p253
        %p776 = pneg %p277
        %p777 = pneg %p274
        %p778 = pneg %p298
        %p779 = pneg %p295
        %p780 = pneg %p319
        %p781 = pneg %p316
        %p782 = pneg %p340
        %p783 = pneg %p337
        %p784 = pneg %p361
        %p785 = pneg %p358
        %p786 = pneg %p382
        %p787 = pneg %p379
        %p788 = pneg %p403
        %p789 = pneg %p400
        %p790 = pneg %p424
        %p791 = pneg %p421
        %p792 = pneg %p445
        %p793 = pneg %p442
        %p794 = pneg %p466
        %p795 = pneg %p463
        %p796 = scmp.lt.s32.totalorder %s50, 0
        %s797 = scalar_select %p796, %s50, 0
        %s798 = smul.addr %s797, 4
        %s799 = scalar_lea.vmem %s19, %s798
        %p800 = pneg %p492
        %p801 = pneg %p489
        %p802 = scmp.lt.s32.totalorder %s50, 0
        %s803 = scalar_select %p802, %s50, 0
        %s804 = scalar_lea.vmem %s20, %s803
        %p805 = pneg %p518
        %p806 = pneg %p515
        %p807 = pneg %p546
        %p808 = pneg %p543
        %s809 = sand.u32 %s533, 1
        %s810 = scalar_lea.sflag [#allocation8], %s809
        %s811 = sand.u32 %s533, 1
        %s812 = smul.addr %s811, 8
        %s813 = scalar_lea.vmem [#allocation15], %s812
        %p814 = pneg %p572
        %p815 = pneg %p569
        %s816 = sand.u32 %s559, 1
        %s817 = scalar_lea.sflag [#allocation17], %s816
        %s818 = sand.u32 %s559, 1
        %s819 = smul.addr %s818, 8
        %s820 = scalar_lea.vmem [#allocation16], %s819
        %p821 = scmp.lt.s32.totalorder %s49, 1
        %s822 = scalar_select %p821, %s49, 1
        %s823 = smul.addr %s822, 8
        %s824 = scalar_lea.vmem %s0, %s823
        %p825 = scmp.lt.s32.totalorder %s49, 1
        %s826 = scalar_select %p825, %s49, 1
        %s827 = smul.addr %s826, 8
        %s828 = scalar_lea.vmem %s2, %s827
        %p829 = scmp.lt.s32.totalorder %s50, 0
        %s830 = scalar_select %p829, %s50, 0
        %s831 = smul.addr %s830, 4
        %s832 = scalar_lea.vmem %s19, %s831
        %p833 = scmp.lt.s32.totalorder %s50, 0
        %s834 = scalar_select %p833, %s50, 0
        %s835 = scalar_lea.vmem %s20, %s834
        %v837 = vld [vmem:[%s828] sm:$0xff]
        %p838 = scmp.eq.s32.totalorder %s50, 0
        // Predicated region
        $region125: #{tpu_custom_call.1} parent=103 // pred_check
          %p839 = pneg %p838
        $region126: #{tpu_custom_call.1} parent=103 // pred_check_branch
          %841 = sbr.rel (%p839) target = $region128
        $region127: #{tpu_custom_call.1} parent=103 // pred_region
          %v842 = vld [vmem:[%s824] sm:$0xff]
          %v843 = vpack.c.bf16 %v842, %v842
          %v844 = vld [vmem:[%s3] sm:$0xf]
          %v845 = vld [vmem:[%s3 + $0x4] sm:$0xf]
          %v846 = vld [vmem:[%s3 + $0x8] sm:$0xf]
          %v847 = vld [vmem:[%s3 + $0xc] sm:$0xf]
          %v848 = vld [vmem:[#allocation9] sm:$0x1]
          %v850 = vlaneseq
          %v851 = vshrl.u32 %v850, 7
          %v852 = vsub.s32 0, %v851
          %v853 = vrot.slane %v848, %v852
          %v859 = vunpack.c.l.b16 %v844
          %v860 = vunpack.c.l.b16 %v845
          %v861 = vunpack.c.l.b16 %v846
          %v862 = vunpack.c.l.b16 %v847
          %v863 = vpack.c.b16 %v860, %v859
          %v864 = vpack.c.b16 %v862, %v861
          %vm867 = vcmask 261120
          %v869 = vsel %vm867, %v843, 0
          %871 = vmatprep.subr.bf16.mxu0 0
          %872 = vmatpush1.bf16.msra.mxu0 %v863
          %873 = vmatprep.subr.bf16.mxu0 0
          %874 = vmatpush1.bf16.msra.mxu0 %v864
          %875 = vmatprep.subr.bf16.mxu0 0
          %876 = vmatpush1.bf16.msra.mxu0 0
          %877 = vmatprep.subr.bf16.mxu0 0
          %878 = vmatpush1.bf16.msra.mxu0 0
          %879 = vmatprep.subr.bf16.mxu0 0
          %880 = vmatpush1.bf16.msra.mxu0 0
          %881 = vmatprep.subr.bf16.mxu0 0
          %882 = vmatpush1.bf16.msra.mxu0 0
          %883 = vmatprep.subr.bf16.mxu0 0
          %884 = vmatpush1.bf16.msra.mxu0 0
          %885 = vmatprep.subr.bf16.mxu0 0
          %886 = vmatpush1.bf16.msra.mxu0 0
          %887 = vmatprep.subr.bf16.mxu0 0
          %888 = vmatpush1.bf16.msra.mxu0 0
          %889 = vmatprep.subr.bf16.mxu0 0
          %890 = vmatpush1.bf16.msra.mxu0 0
          %891 = vmatprep.subr.bf16.mxu0 0
          %892 = vmatpush1.bf16.msra.mxu0 0
          %893 = vmatprep.subr.bf16.mxu0 0
          %894 = vmatpush1.bf16.msra.mxu0 0
          %895 = vmatprep.subr.bf16.mxu0 0
          %896 = vmatpush1.bf16.msra.mxu0 0
          %897 = vmatprep.subr.bf16.mxu0 0
          %898 = vmatpush1.bf16.msra.mxu0 0
          %899 = vmatprep.subr.bf16.mxu0 0
          %900 = vmatpush1.bf16.msra.mxu0 0
          %901 = vmatprep.subr.bf16.mxu0 0
          %902 = vmatpush1.bf16.msra.mxu0 0
          %903 = vmatprep.mubr.bf16.mxu0 0
          %904 = vmatmul.mubr.bf16.gmra.mrb[0].mxu0 %v869
          %v905 = vpop.f32.mrb[0].mxu0
          %v906 = vadd.f32 %v853, %v905
          %v907 = vpop.f32.mrb[0].mxu0
          %v908 = vpop.f32.mrb[0].mxu0
          %v909 = vpop.f32.mrb[0].mxu0
          %910 = vdwg.mxu0
          %v911 = vpack.c.bf16 %v906, %v906
          %913 = vrot.lane.b32.xlu0 %v911, 120
          %v914 = vpop.permute.xlu0 %913
          %915 = vrot.lane.b32.xlu0 %v911, 112
          %v916 = vpop.permute.xlu0 %915
          %917 = vrot.lane.b32.xlu0 %v911, 104
          %v918 = vpop.permute.xlu0 %917
          %v920 = vunpack.c.l.s4 1983009808
          %v921 = vunpack.c.0.s8 %v920
          %v922 = vlaneseq
          %v923 = vshrl.u32 %v922, 7
          %v924 = vsub.s32 %v921, %v923
          %v925 = vrot.slane %v911, %v924
          %v928 = vunpack.c.l.s4 1983009808
          %v929 = vunpack.c.0.s8 %v928
          %v930 = vlaneseq
          %v931 = vshrl.u32 %v930, 7
          %v932 = vsub.s32 %v929, %v931
          %v933 = vrot.slane %v916, %v932
          %v934 = vcombine.low %v925, %v933
          %v935 = vcombine.high %v925, %v933
          %v937 = vunpack.c.l.s4 1934713408
          %v938 = vunpack.c.0.s8 %v937
          %v939 = vlaneseq
          %v940 = vshrl.u32 %v939, 7
          %v941 = vsub.s32 %v938, %v940
          %v942 = vrot.slane %v934, %v941
          %v944 = vunpack.c.l.s4 1934713408
          %v945 = vunpack.c.0.s8 %v944
          %v946 = vlaneseq
          %v947 = vshrl.u32 %v946, 7
          %v948 = vsub.s32 %v945, %v947
          %v949 = vrot.slane %v935, %v948
          %v950 = vcombine.high %v942, 0
          %v951 = vcombine.high %v949, 0
          %v954 = vunpack.c.l.s4 1983009808
          %v955 = vunpack.c.0.s8 %v954
          %v956 = vlaneseq
          %v957 = vshrl.u32 %v956, 7
          %v958 = vsub.s32 %v955, %v957
          %v959 = vrot.slane %v914, %v958
          %v962 = vunpack.c.l.s4 1983009808
          %v963 = vunpack.c.0.s8 %v962
          %v964 = vlaneseq
          %v965 = vshrl.u32 %v964, 7
          %v966 = vsub.s32 %v963, %v965
          %v967 = vrot.slane %v918, %v966
          %v968 = vcombine.low %v959, %v967
          %v969 = vcombine.high %v959, %v967
          %v971 = vunpack.c.l.s4 1934713408
          %v972 = vunpack.c.0.s8 %v971
          %v973 = vlaneseq
          %v974 = vshrl.u32 %v973, 7
          %v975 = vsub.s32 %v972, %v974
          %v976 = vrot.slane %v968, %v975
          %v978 = vunpack.c.l.s4 1934713408
          %v979 = vunpack.c.0.s8 %v978
          %v980 = vlaneseq
          %v981 = vshrl.u32 %v980, 7
          %v982 = vsub.s32 %v979, %v981
          %v983 = vrot.slane %v969, %v982
          %v984 = vcombine.high %v976, 0
          %v985 = vcombine.high %v983, 0
          %v988 = vpack.i.b16 %v976, %v942
          %v990 = vshrl.u32 %v942, 16
          %v991 = vshrl.u32 %v976, 16
          %v992 = vpack.i.b16 %v991, %v990
          %v996 = vpack.i.b16 %v984, %v950
          %v998 = vshrl.u32 %v950, 16
          %v999 = vshrl.u32 %v984, 16
          %v1000 = vpack.i.b16 %v999, %v998
          %v1004 = vpack.i.b16 %v983, %v949
          %v1006 = vshrl.u32 %v949, 16
          %v1007 = vshrl.u32 %v983, 16
          %v1008 = vpack.i.b16 %v1007, %v1006
          %v1012 = vpack.i.b16 %v985, %v951
          %v1014 = vshrl.u32 %v951, 16
          %v1015 = vshrl.u32 %v985, 16
          %v1016 = vpack.i.b16 %v1015, %v1014
          %v1018 = vcombine.low %v988, %v1004
          %v1020 = vunpack.c.l.s4 1983009808
          %v1021 = vunpack.c.0.s8 %v1020
          %v1022 = vlaneseq
          %v1023 = vshrl.u32 %v1022, 7
          %v1024 = vsub.s32 %v1021, %v1023
          %v1025 = vrot.slane %v1018, %v1024
          %v1026 = vcombine.low %v996, %v1012
          %v1028 = vunpack.c.l.s4 1983009808
          %v1029 = vunpack.c.0.s8 %v1028
          %v1030 = vlaneseq
          %v1031 = vshrl.u32 %v1030, 7
          %v1032 = vsub.s32 %v1029, %v1031
          %v1033 = vrot.slane %v1026, %v1032
          %v1034 = vcombine.low %v1025, %v1033
          %v1036 = vunpack.c.l.s4 1934713408
          %v1037 = vunpack.c.0.s8 %v1036
          %v1038 = vlaneseq
          %v1039 = vshrl.u32 %v1038, 7
          %v1040 = vsub.s32 %v1037, %v1039
          %v1041 = vrot.slane %v1034, %v1040
          %v1042 = vcombine.high %v1041, 0
          %v1043 = vcombine.low %v992, %v1008
          %v1045 = vunpack.c.l.s4 1983009808
          %v1046 = vunpack.c.0.s8 %v1045
          %v1047 = vlaneseq
          %v1048 = vshrl.u32 %v1047, 7
          %v1049 = vsub.s32 %v1046, %v1048
          %v1050 = vrot.slane %v1043, %v1049
          %v1051 = vcombine.low %v1000, %v1016
          %v1053 = vunpack.c.l.s4 1983009808
          %v1054 = vunpack.c.0.s8 %v1053
          %v1055 = vlaneseq
          %v1056 = vshrl.u32 %v1055, 7
          %v1057 = vsub.s32 %v1054, %v1056
          %v1058 = vrot.slane %v1051, %v1057
          %v1059 = vcombine.low %v1050, %v1058
          %v1061 = vunpack.c.l.s4 1934713408
          %v1062 = vunpack.c.0.s8 %v1061
          %v1063 = vlaneseq
          %v1064 = vshrl.u32 %v1063, 7
          %v1065 = vsub.s32 %v1062, %v1064
          %v1066 = vrot.slane %v1059, %v1065
          %v1067 = vcombine.high %v1066, 0
          %v1070 = vpack.i.b16 %v1066, %v1041
          %v1071 = vshrl.u32 %v1041, 16
          %v1072 = vshrl.u32 %v1066, 16
          %v1073 = vpack.i.b16 %v1072, %v1071
          %v1076 = vpack.i.b16 %v1067, %v1042
          %v1077 = vshrl.u32 %v1042, 16
          %v1078 = vshrl.u32 %v1067, 16
          %v1079 = vpack.i.b16 %v1078, %v1077
          %1080 = vrot.lane.b32.xlu0 %v911, 96
          %v1081 = vpop.permute.xlu0 %1080
          %1082 = vrot.lane.b32.xlu0 %v914, 96
          %v1083 = vpop.permute.xlu0 %1082
          %1084 = vrot.lane.b32.xlu0 %v916, 96
          %v1085 = vpop.permute.xlu0 %1084
          %1086 = vrot.lane.b32.xlu0 %v918, 96
          %v1087 = vpop.permute.xlu0 %1086
          %v1090 = vunpack.c.l.s4 1983009808
          %v1091 = vunpack.c.0.s8 %v1090
          %v1092 = vlaneseq
          %v1093 = vshrl.u32 %v1092, 7
          %v1094 = vsub.s32 %v1091, %v1093
          %v1095 = vrot.slane %v1081, %v1094
          %v1098 = vunpack.c.l.s4 1983009808
          %v1099 = vunpack.c.0.s8 %v1098
          %v1100 = vlaneseq
          %v1101 = vshrl.u32 %v1100, 7
          %v1102 = vsub.s32 %v1099, %v1101
          %v1103 = vrot.slane %v1085, %v1102
          %v1104 = vcombine.low %v1095, %v1103
          %v1105 = vcombine.high %v1095, %v1103
          %v1107 = vunpack.c.l.s4 1934713408
          %v1108 = vunpack.c.0.s8 %v1107
          %v1109 = vlaneseq
          %v1110 = vshrl.u32 %v1109, 7
          %v1111 = vsub.s32 %v1108, %v1110
          %v1112 = vrot.slane %v1104, %v1111
          %v1114 = vunpack.c.l.s4 1934713408
          %v1115 = vunpack.c.0.s8 %v1114
          %v1116 = vlaneseq
          %v1117 = vshrl.u32 %v1116, 7
          %v1118 = vsub.s32 %v1115, %v1117
          %v1119 = vrot.slane %v1105, %v1118
          %v1120 = vcombine.high %v1112, 0
          %v1121 = vcombine.high %v1119, 0
          %v1124 = vunpack.c.l.s4 1983009808
          %v1125 = vunpack.c.0.s8 %v1124
          %v1126 = vlaneseq
          %v1127 = vshrl.u32 %v1126, 7
          %v1128 = vsub.s32 %v1125, %v1127
          %v1129 = vrot.slane %v1083, %v1128
          %v1132 = vunpack.c.l.s4 1983009808
          %v1133 = vunpack.c.0.s8 %v1132
          %v1134 = vlaneseq
          %v1135 = vshrl.u32 %v1134, 7
          %v1136 = vsub.s32 %v1133, %v1135
          %v1137 = vrot.slane %v1087, %v1136
          %v1138 = vcombine.low %v1129, %v1137
          %v1139 = vcombine.high %v1129, %v1137
          %v1141 = vunpack.c.l.s4 1934713408
          %v1142 = vunpack.c.0.s8 %v1141
          %v1143 = vlaneseq
          %v1144 = vshrl.u32 %v1143, 7
          %v1145 = vsub.s32 %v1142, %v1144
          %v1146 = vrot.slane %v1138, %v1145
          %v1148 = vunpack.c.l.s4 1934713408
          %v1149 = vunpack.c.0.s8 %v1148
          %v1150 = vlaneseq
          %v1151 = vshrl.u32 %v1150, 7
          %v1152 = vsub.s32 %v1149, %v1151
          %v1153 = vrot.slane %v1139, %v1152
          %v1154 = vcombine.high %v1146, 0
          %v1155 = vcombine.high %v1153, 0
          %v1158 = vpack.i.b16 %v1146, %v1112
          %v1160 = vshrl.u32 %v1112, 16
          %v1161 = vshrl.u32 %v1146, 16
          %v1162 = vpack.i.b16 %v1161, %v1160
          %v1166 = vpack.i.b16 %v1154, %v1120
          %v1168 = vshrl.u32 %v1120, 16
          %v1169 = vshrl.u32 %v1154, 16
          %v1170 = vpack.i.b16 %v1169, %v1168
          %v1174 = vpack.i.b16 %v1153, %v1119
          %v1176 = vshrl.u32 %v1119, 16
          %v1177 = vshrl.u32 %v1153, 16
          %v1178 = vpack.i.b16 %v1177, %v1176
          %v1182 = vpack.i.b16 %v1155, %v1121
          %v1184 = vshrl.u32 %v1121, 16
          %v1185 = vshrl.u32 %v1155, 16
          %v1186 = vpack.i.b16 %v1185, %v1184
          %v1188 = vcombine.low %v1158, %v1174
          %v1190 = vunpack.c.l.s4 1983009808
          %v1191 = vunpack.c.0.s8 %v1190
          %v1192 = vlaneseq
          %v1193 = vshrl.u32 %v1192, 7
          %v1194 = vsub.s32 %v1191, %v1193
          %v1195 = vrot.slane %v1188, %v1194
          %v1196 = vcombine.low %v1166, %v1182
          %v1198 = vunpack.c.l.s4 1983009808
          %v1199 = vunpack.c.0.s8 %v1198
          %v1200 = vlaneseq
          %v1201 = vshrl.u32 %v1200, 7
          %v1202 = vsub.s32 %v1199, %v1201
          %v1203 = vrot.slane %v1196, %v1202
          %v1204 = vcombine.low %v1195, %v1203
          %v1206 = vunpack.c.l.s4 1934713408
          %v1207 = vunpack.c.0.s8 %v1206
          %v1208 = vlaneseq
          %v1209 = vshrl.u32 %v1208, 7
          %v1210 = vsub.s32 %v1207, %v1209
          %v1211 = vrot.slane %v1204, %v1210
          %v1212 = vcombine.high %v1211, 0
          %v1213 = vcombine.low %v1162, %v1178
          %v1215 = vunpack.c.l.s4 1983009808
          %v1216 = vunpack.c.0.s8 %v1215
          %v1217 = vlaneseq
          %v1218 = vshrl.u32 %v1217, 7
          %v1219 = vsub.s32 %v1216, %v1218
          %v1220 = vrot.slane %v1213, %v1219
          %v1221 = vcombine.low %v1170, %v1186
          %v1223 = vunpack.c.l.s4 1983009808
          %v1224 = vunpack.c.0.s8 %v1223
          %v1225 = vlaneseq
          %v1226 = vshrl.u32 %v1225, 7
          %v1227 = vsub.s32 %v1224, %v1226
          %v1228 = vrot.slane %v1221, %v1227
          %v1229 = vcombine.low %v1220, %v1228
          %v1231 = vunpack.c.l.s4 1934713408
          %v1232 = vunpack.c.0.s8 %v1231
          %v1233 = vlaneseq
          %v1234 = vshrl.u32 %v1233, 7
          %v1235 = vsub.s32 %v1232, %v1234
          %v1236 = vrot.slane %v1229, %v1235
          %v1237 = vcombine.high %v1236, 0
          %v1240 = vpack.i.b16 %v1236, %v1211
          %v1241 = vshrl.u32 %v1211, 16
          %v1242 = vshrl.u32 %v1236, 16
          %v1243 = vpack.i.b16 %v1242, %v1241
          %v1246 = vpack.i.b16 %v1237, %v1212
          %v1247 = vshrl.u32 %v1212, 16
          %v1248 = vshrl.u32 %v1237, 16
          %v1249 = vpack.i.b16 %v1248, %v1247
          %1250 = vrot.lane.b32.xlu0 %v911, 64
          %v1251 = vpop.permute.xlu0 %1250
          %1252 = vrot.lane.b32.xlu0 %v914, 64
          %v1253 = vpop.permute.xlu0 %1252
          %1254 = vrot.lane.b32.xlu0 %v916, 64
          %v1255 = vpop.permute.xlu0 %1254
          %1256 = vrot.lane.b32.xlu0 %v918, 64
          %v1257 = vpop.permute.xlu0 %1256
          %v1260 = vunpack.c.l.s4 1983009808
          %v1261 = vunpack.c.0.s8 %v1260
          %v1262 = vlaneseq
          %v1263 = vshrl.u32 %v1262, 7
          %v1264 = vsub.s32 %v1261, %v1263
          %v1265 = vrot.slane %v1251, %v1264
          %v1268 = vunpack.c.l.s4 1983009808
          %v1269 = vunpack.c.0.s8 %v1268
          %v1270 = vlaneseq
          %v1271 = vshrl.u32 %v1270, 7
          %v1272 = vsub.s32 %v1269, %v1271
          %v1273 = vrot.slane %v1255, %v1272
          %v1274 = vcombine.low %v1265, %v1273
          %v1275 = vcombine.high %v1265, %v1273
          %v1277 = vunpack.c.l.s4 1934713408
          %v1278 = vunpack.c.0.s8 %v1277
          %v1279 = vlaneseq
          %v1280 = vshrl.u32 %v1279, 7
          %v1281 = vsub.s32 %v1278, %v1280
          %v1282 = vrot.slane %v1274, %v1281
          %v1284 = vunpack.c.l.s4 1934713408
          %v1285 = vunpack.c.0.s8 %v1284
          %v1286 = vlaneseq
          %v1287 = vshrl.u32 %v1286, 7
          %v1288 = vsub.s32 %v1285, %v1287
          %v1289 = vrot.slane %v1275, %v1288
          %v1290 = vcombine.high %v1282, 0
          %v1291 = vcombine.high %v1289, 0
          %v1294 = vunpack.c.l.s4 1983009808
          %v1295 = vunpack.c.0.s8 %v1294
          %v1296 = vlaneseq
          %v1297 = vshrl.u32 %v1296, 7
          %v1298 = vsub.s32 %v1295, %v1297
          %v1299 = vrot.slane %v1253, %v1298
          %v1302 = vunpack.c.l.s4 1983009808
          %v1303 = vunpack.c.0.s8 %v1302
          %v1304 = vlaneseq
          %v1305 = vshrl.u32 %v1304, 7
          %v1306 = vsub.s32 %v1303, %v1305
          %v1307 = vrot.slane %v1257, %v1306
          %v1308 = vcombine.low %v1299, %v1307
          %v1309 = vcombine.high %v1299, %v1307
          %v1311 = vunpack.c.l.s4 1934713408
          %v1312 = vunpack.c.0.s8 %v1311
          %v1313 = vlaneseq
          %v1314 = vshrl.u32 %v1313, 7
          %v1315 = vsub.s32 %v1312, %v1314
          %v1316 = vrot.slane %v1308, %v1315
          %v1318 = vunpack.c.l.s4 1934713408
          %v1319 = vunpack.c.0.s8 %v1318
          %v1320 = vlaneseq
          %v1321 = vshrl.u32 %v1320, 7
          %v1322 = vsub.s32 %v1319, %v1321
          %v1323 = vrot.slane %v1309, %v1322
          %v1324 = vcombine.high %v1316, 0
          %v1325 = vcombine.high %v1323, 0
          %v1328 = vpack.i.b16 %v1316, %v1282
          %v1330 = vshrl.u32 %v1282, 16
          %v1331 = vshrl.u32 %v1316, 16
          %v1332 = vpack.i.b16 %v1331, %v1330
          %v1336 = vpack.i.b16 %v1324, %v1290
          %v1338 = vshrl.u32 %v1290, 16
          %v1339 = vshrl.u32 %v1324, 16
          %v1340 = vpack.i.b16 %v1339, %v1338
          %v1344 = vpack.i.b16 %v1323, %v1289
          %v1346 = vshrl.u32 %v1289, 16
          %v1347 = vshrl.u32 %v1323, 16
          %v1348 = vpack.i.b16 %v1347, %v1346
          %v1352 = vpack.i.b16 %v1325, %v1291
          %v1354 = vshrl.u32 %v1291, 16
          %v1355 = vshrl.u32 %v1325, 16
          %v1356 = vpack.i.b16 %v1355, %v1354
          %v1358 = vcombine.low %v1328, %v1344
          %v1360 = vunpack.c.l.s4 1983009808
          %v1361 = vunpack.c.0.s8 %v1360
          %v1362 = vlaneseq
          %v1363 = vshrl.u32 %v1362, 7
          %v1364 = vsub.s32 %v1361, %v1363
          %v1365 = vrot.slane %v1358, %v1364
          %v1366 = vcombine.low %v1336, %v1352
          %v1368 = vunpack.c.l.s4 1983009808
          %v1369 = vunpack.c.0.s8 %v1368
          %v1370 = vlaneseq
          %v1371 = vshrl.u32 %v1370, 7
          %v1372 = vsub.s32 %v1369, %v1371
          %v1373 = vrot.slane %v1366, %v1372
          %v1374 = vcombine.low %v1365, %v1373
          %v1376 = vunpack.c.l.s4 1934713408
          %v1377 = vunpack.c.0.s8 %v1376
          %v1378 = vlaneseq
          %v1379 = vshrl.u32 %v1378, 7
          %v1380 = vsub.s32 %v1377, %v1379
          %v1381 = vrot.slane %v1374, %v1380
          %v1382 = vcombine.high %v1381, 0
          %v1383 = vcombine.low %v1332, %v1348
          %v1385 = vunpack.c.l.s4 1983009808
          %v1386 = vunpack.c.0.s8 %v1385
          %v1387 = vlaneseq
          %v1388 = vshrl.u32 %v1387, 7
          %v1389 = vsub.s32 %v1386, %v1388
          %v1390 = vrot.slane %v1383, %v1389
          %v1391 = vcombine.low %v1340, %v1356
          %v1393 = vunpack.c.l.s4 1983009808
          %v1394 = vunpack.c.0.s8 %v1393
          %v1395 = vlaneseq
          %v1396 = vshrl.u32 %v1395, 7
          %v1397 = vsub.s32 %v1394, %v1396
          %v1398 = vrot.slane %v1391, %v1397
          %v1399 = vcombine.low %v1390, %v1398
          %v1401 = vunpack.c.l.s4 1934713408
          %v1402 = vunpack.c.0.s8 %v1401
          %v1403 = vlaneseq
          %v1404 = vshrl.u32 %v1403, 7
          %v1405 = vsub.s32 %v1402, %v1404
          %v1406 = vrot.slane %v1399, %v1405
          %v1407 = vcombine.high %v1406, 0
          %v1410 = vpack.i.b16 %v1406, %v1381
          %v1411 = vshrl.u32 %v1381, 16
          %v1412 = vshrl.u32 %v1406, 16
          %v1413 = vpack.i.b16 %v1412, %v1411
          %v1416 = vpack.i.b16 %v1407, %v1382
          %v1417 = vshrl.u32 %v1382, 16
          %v1418 = vshrl.u32 %v1407, 16
          %v1419 = vpack.i.b16 %v1418, %v1417
          %vm1420 = vcmask 64512
          %v1422 = vsel %vm1420, %v1070, 0
          %v1425 = vsel %vm1420, %v1240, 0
          %1427 = vmatprep.subr.bf16.mxu0 0
          %1428 = vmatpush1.bf16.xpose.msra.mxu0 %v1425
          %1429 = vmatprep.subr.bf16.mxu0 0
          %1430 = vmatpush1.bf16.xpose.msra.mxu0 0
          %1431 = vmatprep.subr.bf16.mxu0 0
          %1432 = vmatpush1.bf16.xpose.msra.mxu0 0
          %1433 = vmatprep.subr.bf16.mxu0 0
          %1434 = vmatpush1.bf16.xpose.msra.mxu0 0
          %1435 = vmatprep.subr.bf16.mxu0 0
          %1436 = vmatpush1.bf16.xpose.msra.mxu0 0
          %1437 = vmatprep.subr.bf16.mxu0 0
          %1438 = vmatpush1.bf16.xpose.msra.mxu0 0
          %1439 = vmatprep.subr.bf16.mxu0 0
          %1440 = vmatpush1.bf16.xpose.msra.mxu0 0
          %1441 = vmatprep.subr.bf16.mxu0 0
          %1442 = vmatpush1.bf16.xpose.msra.mxu0 0
          %1443 = vmatprep.subr.bf16.mxu0 0
          %1444 = vmatpush1.bf16.xpose.msra.mxu0 0
          %1445 = vmatprep.subr.bf16.mxu0 0
          %1446 = vmatpush1.bf16.xpose.msra.mxu0 0
          %1447 = vmatprep.subr.bf16.mxu0 0
          %1448 = vmatpush1.bf16.xpose.msra.mxu0 0
          %1449 = vmatprep.subr.bf16.mxu0 0
          %1450 = vmatpush1.bf16.xpose.msra.mxu0 0
          %1451 = vmatprep.subr.bf16.mxu0 0
          %1452 = vmatpush1.bf16.xpose.msra.mxu0 0
          %1453 = vmatprep.subr.bf16.mxu0 0
          %1454 = vmatpush1.bf16.xpose.msra.mxu0 0
          %1455 = vmatprep.subr.bf16.mxu0 0
          %1456 = vmatpush1.bf16.xpose.msra.mxu0 0
          %1457 = vmatprep.subr.bf16.mxu0 0
          %1458 = vmatpush1.bf16.xpose.msra.mxu0 0
          %1459 = vmatprep.mubr.bf16.mxu0 0
          %1460 = vmatmul.mubr.bf16.gmra.mrb[0].mxu0 %v1422
          %v1461 = vpop.f32.mrb[0].mxu0
          %v1462 = vadd.f32 0.0, %v1461
          %v1463 = vpop.f32.mrb[0].mxu0
          %v1464 = vpop.f32.mrb[0].mxu0
          %v1465 = vpop.f32.mrb[0].mxu0
          %1466 = vdwg.mxu0
          %v1468 = vsel %vm1420, %v1073, 0
          %v1471 = vsel %vm1420, %v1243, 0
          %1473 = vmatprep.subr.bf16.mxu0 0
          %1474 = vmatpush1.bf16.xpose.msra.mxu0 %v1471
          %1475 = vmatprep.subr.bf16.mxu0 0
          %1476 = vmatpush1.bf16.xpose.msra.mxu0 0
          %1477 = vmatprep.subr.bf16.mxu0 0
          %1478 = vmatpush1.bf16.xpose.msra.mxu0 0
          %1479 = vmatprep.subr.bf16.mxu0 0
          %1480 = vmatpush1.bf16.xpose.msra.mxu0 0
          %1481 = vmatprep.subr.bf16.mxu0 0
          %1482 = vmatpush1.bf16.xpose.msra.mxu0 0
          %1483 = vmatprep.subr.bf16.mxu0 0
          %1484 = vmatpush1.bf16.xpose.msra.mxu0 0
          %1485 = vmatprep.subr.bf16.mxu0 0
          %1486 = vmatpush1.bf16.xpose.msra.mxu0 0
          %1487 = vmatprep.subr.bf16.mxu0 0
          %1488 = vmatpush1.bf16.xpose.msra.mxu0 0
          %1489 = vmatprep.subr.bf16.mxu0 0
          %1490 = vmatpush1.bf16.xpose.msra.mxu0 0
          %1491 = vmatprep.subr.bf16.mxu0 0
          %1492 = vmatpush1.bf16.xpose.msra.mxu0 0
          %1493 = vmatprep.subr.bf16.mxu0 0
          %1494 = vmatpush1.bf16.xpose.msra.mxu0 0
          %1495 = vmatprep.subr.bf16.mxu0 0
          %1496 = vmatpush1.bf16.xpose.msra.mxu0 0
          %1497 = vmatprep.subr.bf16.mxu0 0
          %1498 = vmatpush1.bf16.xpose.msra.mxu0 0
          %1499 = vmatprep.subr.bf16.mxu0 0
          %1500 = vmatpush1.bf16.xpose.msra.mxu0 0
          %1501 = vmatprep.subr.bf16.mxu0 0
          %1502 = vmatpush1.bf16.xpose.msra.mxu0 0
          %1503 = vmatprep.subr.bf16.mxu0 0
          %1504 = vmatpush1.bf16.xpose.msra.mxu0 0
          %1505 = vmatprep.mubr.bf16.mxu0 0
          %1506 = vmatmul.mubr.bf16.gmra.mrb[0].mxu0 %v1468
          %v1507 = vpop.f32.mrb[0].mxu0
          %v1508 = vadd.f32 0.0, %v1507
          %v1509 = vpop.f32.mrb[0].mxu0
          %v1510 = vpop.f32.mrb[0].mxu0
          %v1511 = vpop.f32.mrb[0].mxu0
          %1512 = vdwg.mxu0
          %v1514 = vsel %vm1420, %v1076, 0
          %v1517 = vsel %vm1420, %v1246, 0
          %1519 = vmatprep.subr.bf16.mxu0 0
          %1520 = vmatpush1.bf16.xpose.msra.mxu0 %v1517
          %1521 = vmatprep.subr.bf16.mxu0 0
          %1522 = vmatpush1.bf16.xpose.msra.mxu0 0
          %1523 = vmatprep.subr.bf16.mxu0 0
          %1524 = vmatpush1.bf16.xpose.msra.mxu0 0
          %1525 = vmatprep.subr.bf16.mxu0 0
          %1526 = vmatpush1.bf16.xpose.msra.mxu0 0
          %1527 = vmatprep.subr.bf16.mxu0 0
          %1528 = vmatpush1.bf16.xpose.msra.mxu0 0
          %1529 = vmatprep.subr.bf16.mxu0 0
          %1530 = vmatpush1.bf16.xpose.msra.mxu0 0
          %1531 = vmatprep.subr.bf16.mxu0 0
          %1532 = vmatpush1.bf16.xpose.msra.mxu0 0
          %1533 = vmatprep.subr.bf16.mxu0 0
          %1534 = vmatpush1.bf16.xpose.msra.mxu0 0
          %1535 = vmatprep.subr.bf16.mxu0 0
          %1536 = vmatpush1.bf16.xpose.msra.mxu0 0
          %1537 = vmatprep.subr.bf16.mxu0 0
          %1538 = vmatpush1.bf16.xpose.msra.mxu0 0
          %1539 = vmatprep.subr.bf16.mxu0 0
          %1540 = vmatpush1.bf16.xpose.msra.mxu0 0
          %1541 = vmatprep.subr.bf16.mxu0 0
          %1542 = vmatpush1.bf16.xpose.msra.mxu0 0
          %1543 = vmatprep.subr.bf16.mxu0 0
          %1544 = vmatpush1.bf16.xpose.msra.mxu0 0
          %1545 = vmatprep.subr.bf16.mxu0 0
          %1546 = vmatpush1.bf16.xpose.msra.mxu0 0
          %1547 = vmatprep.subr.bf16.mxu0 0
          %1548 = vmatpush1.bf16.xpose.msra.mxu0 0
          %1549 = vmatprep.subr.bf16.mxu0 0
          %1550 = vmatpush1.bf16.xpose.msra.mxu0 0
          %1551 = vmatprep.mubr.bf16.mxu0 0
          %1552 = vmatmul.mubr.bf16.gmra.mrb[0].mxu0 %v1514
          %v1553 = vpop.f32.mrb[0].mxu0
          %v1554 = vadd.f32 0.0, %v1553
          %v1555 = vpop.f32.mrb[0].mxu0
          %v1556 = vpop.f32.mrb[0].mxu0
          %v1557 = vpop.f32.mrb[0].mxu0
          %1558 = vdwg.mxu0
          %v1560 = vsel %vm1420, %v1079, 0
          %v1563 = vsel %vm1420, %v1249, 0
          %1565 = vmatprep.subr.bf16.mxu0 0
          %1566 = vmatpush1.bf16.xpose.msra.mxu0 %v1563
          %1567 = vmatprep.subr.bf16.mxu0 0
          %1568 = vmatpush1.bf16.xpose.msra.mxu0 0
          %1569 = vmatprep.subr.bf16.mxu0 0
          %1570 = vmatpush1.bf16.xpose.msra.mxu0 0
          %1571 = vmatprep.subr.bf16.mxu0 0
          %1572 = vmatpush1.bf16.xpose.msra.mxu0 0
          %1573 = vmatprep.subr.bf16.mxu0 0
          %1574 = vmatpush1.bf16.xpose.msra.mxu0 0
          %1575 = vmatprep.subr.bf16.mxu0 0
          %1576 = vmatpush1.bf16.xpose.msra.mxu0 0
          %1577 = vmatprep.subr.bf16.mxu0 0
          %1578 = vmatpush1.bf16.xpose.msra.mxu0 0
          %1579 = vmatprep.subr.bf16.mxu0 0
          %1580 = vmatpush1.bf16.xpose.msra.mxu0 0
          %1581 = vmatprep.subr.bf16.mxu0 0
          %1582 = vmatpush1.bf16.xpose.msra.mxu0 0
          %1583 = vmatprep.subr.bf16.mxu0 0
          %1584 = vmatpush1.bf16.xpose.msra.mxu0 0
          %1585 = vmatprep.subr.bf16.mxu0 0
          %1586 = vmatpush1.bf16.xpose.msra.mxu0 0
          %1587 = vmatprep.subr.bf16.mxu0 0
          %1588 = vmatpush1.bf16.xpose.msra.mxu0 0
          %1589 = vmatprep.subr.bf16.mxu0 0
          %1590 = vmatpush1.bf16.xpose.msra.mxu0 0
          %1591 = vmatprep.subr.bf16.mxu0 0
          %1592 = vmatpush1.bf16.xpose.msra.mxu0 0
          %1593 = vmatprep.subr.bf16.mxu0 0
          %1594 = vmatpush1.bf16.xpose.msra.mxu0 0
          %1595 = vmatprep.subr.bf16.mxu0 0
          %1596 = vmatpush1.bf16.xpose.msra.mxu0 0
          %1597 = vmatprep.mubr.bf16.mxu0 0
          %1598 = vmatmul.mubr.bf16.gmra.mrb[0].mxu0 %v1560
          %v1599 = vpop.f32.mrb[0].mxu0
          %v1600 = vadd.f32 0.0, %v1599
          %v1601 = vpop.f32.mrb[0].mxu0
          %v1602 = vpop.f32.mrb[0].mxu0
          %v1603 = vpop.f32.mrb[0].mxu0
          %1604 = vdwg.mxu0
          %v1605 = vld [vmem:[%s725] sm:$0x1]
          %v1606 = vsub.f32 1.0, %v1605
          %v1607 = vmul.f32 %v1606, -10000.0
          %v1608 = vmul.f32 %v1462, 0.35355338
          %v1609 = vmul.f32 %v1508, 0.35355338
          %v1610 = vmul.f32 %v1554, 0.35355338
          %v1611 = vmul.f32 %v1600, 0.35355338
          %v1613 = vlaneseq
          %v1614 = vshrl.u32 %v1613, 7
          %v1615 = vsub.s32 0, %v1614
          %v1616 = vrot.slane %v1607, %v1615
          %v1618 = vadd.f32 %v1608, %v1616
          %v1619 = vadd.f32 %v1609, %v1616
          %v1620 = vadd.f32 %v1610, %v1616
          %v1621 = vadd.f32 %v1611, %v1616
          %v1622 = vsel %vm1420, %v1618, -inf
          %1623 = vmax.xlane.f32.xlu0 %v1622
          %v1624 = vpop.xlane.xlu0 %1623
          %v1625 = vsel %vm1420, %v1619, -inf
          %1626 = vmax.xlane.f32.xlu0 %v1625
          %v1627 = vpop.xlane.xlu0 %1626
          %v1628 = vsel %vm1420, %v1620, -inf
          %1629 = vmax.xlane.f32.xlu0 %v1628
          %v1630 = vpop.xlane.xlu0 %1629
          %v1631 = vsel %vm1420, %v1621, -inf
          %1632 = vmax.xlane.f32.xlu0 %v1631
          %v1633 = vpop.xlane.xlu0 %1632
          %v1634 = vsub.f32 %v1618, %v1624
          %v1635 = vsub.f32 %v1619, %v1627
          %v1636 = vsub.f32 %v1620, %v1630
          %v1637 = vsub.f32 %v1621, %v1633
          %v1638 = vmul.f32 %v1634, 1.442695
          %v1639 = vpow.pop %v1638
          %v1640 = vmul.f32 %v1635, 1.442695
          %v1641 = vpow.pop %v1640
          %v1642 = vmul.f32 %v1636, 1.442695
          %v1643 = vpow.pop %v1642
          %v1644 = vmul.f32 %v1637, 1.442695
          %v1645 = vpow.pop %v1644
          %v1646 = vsel %vm1420, %v1639, 0.0
          %1647 = vadd.xlane.f32.xlu0 %v1646
          %v1648 = vpop.xlane.xlu0 %1647
          %v1649 = vsel %vm1420, %v1641, 0.0
          %1650 = vadd.xlane.f32.xlu0 %v1649
          %v1651 = vpop.xlane.xlu0 %1650
          %v1652 = vsel %vm1420, %v1643, 0.0
          %1653 = vadd.xlane.f32.xlu0 %v1652
          %v1654 = vpop.xlane.xlu0 %1653
          %v1655 = vsel %vm1420, %v1645, 0.0
          %1656 = vadd.xlane.f32.xlu0 %v1655
          %v1657 = vpop.xlane.xlu0 %1656
          %v1658 = vrcp.pop %v1648
          %v1659 = vrcp.pop %v1651
          %v1660 = vrcp.pop %v1654
          %v1661 = vrcp.pop %v1657
          %v1662 = vmul.f32 %v1639, %v1658
          %v1663 = vmul.f32 %v1641, %v1659
          %v1664 = vmul.f32 %v1643, %v1660
          %v1665 = vmul.f32 %v1645, %v1661
          %v1666 = vpack.c.bf16 %v1662, %v1662
          %v1667 = vpack.c.bf16 %v1663, %v1663
          %v1668 = vpack.c.bf16 %v1664, %v1664
          %v1669 = vpack.c.bf16 %v1665, %v1665
          %v1671 = vsel %vm1420, %v1666, 0
          %vm1673 = vcmask 1043456
          %v1675 = vsel %vm1673, %v1410, 0
          %1677 = vmatprep.subr.bf16.mxu0 0
          %1678 = vmatpush1.bf16.msra.mxu0 %v1675
          %1679 = vmatprep.subr.bf16.mxu0 0
          %1680 = vmatpush1.bf16.msra.mxu0 0
          %1681 = vmatprep.subr.bf16.mxu0 0
          %1682 = vmatpush1.bf16.msra.mxu0 0
          %1683 = vmatprep.subr.bf16.mxu0 0
          %1684 = vmatpush1.bf16.msra.mxu0 0
          %1685 = vmatprep.subr.bf16.mxu0 0
          %1686 = vmatpush1.bf16.msra.mxu0 0
          %1687 = vmatprep.subr.bf16.mxu0 0
          %1688 = vmatpush1.bf16.msra.mxu0 0
          %1689 = vmatprep.subr.bf16.mxu0 0
          %1690 = vmatpush1.bf16.msra.mxu0 0
          %1691 = vmatprep.subr.bf16.mxu0 0
          %1692 = vmatpush1.bf16.msra.mxu0 0
          %1693 = vmatprep.subr.bf16.mxu0 0
          %1694 = vmatpush1.bf16.msra.mxu0 0
          %1695 = vmatprep.subr.bf16.mxu0 0
          %1696 = vmatpush1.bf16.msra.mxu0 0
          %1697 = vmatprep.subr.bf16.mxu0 0
          %1698 = vmatpush1.bf16.msra.mxu0 0
          %1699 = vmatprep.subr.bf16.mxu0 0
          %1700 = vmatpush1.bf16.msra.mxu0 0
          %1701 = vmatprep.subr.bf16.mxu0 0
          %1702 = vmatpush1.bf16.msra.mxu0 0
          %1703 = vmatprep.subr.bf16.mxu0 0
          %1704 = vmatpush1.bf16.msra.mxu0 0
          %1705 = vmatprep.subr.bf16.mxu0 0
          %1706 = vmatpush1.bf16.msra.mxu0 0
          %1707 = vmatprep.subr.bf16.mxu0 0
          %1708 = vmatpush1.bf16.msra.mxu0 0
          %1709 = vmatprep.mubr.bf16.mxu0 0
          %1710 = vmatmul.mubr.bf16.gmra.mrb[0].mxu0 %v1671
          %v1711 = vpop.f32.mrb[0].mxu0
          %v1712 = vadd.f32 0.0, %v1711
          %v1713 = vpop.f32.mrb[0].mxu0
          %v1714 = vpop.f32.mrb[0].mxu0
          %v1715 = vpop.f32.mrb[0].mxu0
          %1716 = vdwg.mxu0
          %v1718 = vsel %vm1420, %v1667, 0
          %v1721 = vsel %vm1673, %v1413, 0
          %1723 = vmatprep.subr.bf16.mxu0 0
          %1724 = vmatpush1.bf16.msra.mxu0 %v1721
          %1725 = vmatprep.subr.bf16.mxu0 0
          %1726 = vmatpush1.bf16.msra.mxu0 0
          %1727 = vmatprep.subr.bf16.mxu0 0
          %1728 = vmatpush1.bf16.msra.mxu0 0
          %1729 = vmatprep.subr.bf16.mxu0 0
          %1730 = vmatpush1.bf16.msra.mxu0 0
          %1731 = vmatprep.subr.bf16.mxu0 0
          %1732 = vmatpush1.bf16.msra.mxu0 0
          %1733 = vmatprep.subr.bf16.mxu0 0
          %1734 = vmatpush1.bf16.msra.mxu0 0
          %1735 = vmatprep.subr.bf16.mxu0 0
          %1736 = vmatpush1.bf16.msra.mxu0 0
          %1737 = vmatprep.subr.bf16.mxu0 0
          %1738 = vmatpush1.bf16.msra.mxu0 0
          %1739 = vmatprep.subr.bf16.mxu0 0
          %1740 = vmatpush1.bf16.msra.mxu0 0
          %1741 = vmatprep.subr.bf16.mxu0 0
          %1742 = vmatpush1.bf16.msra.mxu0 0
          %1743 = vmatprep.subr.bf16.mxu0 0
          %1744 = vmatpush1.bf16.msra.mxu0 0
          %1745 = vmatprep.subr.bf16.mxu0 0
          %1746 = vmatpush1.bf16.msra.mxu0 0
          %1747 = vmatprep.subr.bf16.mxu0 0
          %1748 = vmatpush1.bf16.msra.mxu0 0
          %1749 = vmatprep.subr.bf16.mxu0 0
          %1750 = vmatpush1.bf16.msra.mxu0 0
          %1751 = vmatprep.subr.bf16.mxu0 0
          %1752 = vmatpush1.bf16.msra.mxu0 0
          %1753 = vmatprep.subr.bf16.mxu0 0
          %1754 = vmatpush1.bf16.msra.mxu0 0
          %1755 = vmatprep.mubr.bf16.mxu0 0
          %1756 = vmatmul.mubr.bf16.gmra.mrb[0].mxu0 %v1718
          %v1757 = vpop.f32.mrb[0].mxu0
          %v1758 = vadd.f32 0.0, %v1757
          %v1759 = vpop.f32.mrb[0].mxu0
          %v1760 = vpop.f32.mrb[0].mxu0
          %v1761 = vpop.f32.mrb[0].mxu0
          %1762 = vdwg.mxu0
          %v1764 = vsel %vm1420, %v1668, 0
          %v1767 = vsel %vm1673, %v1416, 0
          %1769 = vmatprep.subr.bf16.mxu0 0
          %1770 = vmatpush1.bf16.msra.mxu0 %v1767
          %1771 = vmatprep.subr.bf16.mxu0 0
          %1772 = vmatpush1.bf16.msra.mxu0 0
          %1773 = vmatprep.subr.bf16.mxu0 0
          %1774 = vmatpush1.bf16.msra.mxu0 0
          %1775 = vmatprep.subr.bf16.mxu0 0
          %1776 = vmatpush1.bf16.msra.mxu0 0
          %1777 = vmatprep.subr.bf16.mxu0 0
          %1778 = vmatpush1.bf16.msra.mxu0 0
          %1779 = vmatprep.subr.bf16.mxu0 0
          %1780 = vmatpush1.bf16.msra.mxu0 0
          %1781 = vmatprep.subr.bf16.mxu0 0
          %1782 = vmatpush1.bf16.msra.mxu0 0
          %1783 = vmatprep.subr.bf16.mxu0 0
          %1784 = vmatpush1.bf16.msra.mxu0 0
          %1785 = vmatprep.subr.bf16.mxu0 0
          %1786 = vmatpush1.bf16.msra.mxu0 0
          %1787 = vmatprep.subr.bf16.mxu0 0
          %1788 = vmatpush1.bf16.msra.mxu0 0
          %1789 = vmatprep.subr.bf16.mxu0 0
          %1790 = vmatpush1.bf16.msra.mxu0 0
          %1791 = vmatprep.subr.bf16.mxu0 0
          %1792 = vmatpush1.bf16.msra.mxu0 0
          %1793 = vmatprep.subr.bf16.mxu0 0
          %1794 = vmatpush1.bf16.msra.mxu0 0
          %1795 = vmatprep.subr.bf16.mxu0 0
          %1796 = vmatpush1.bf16.msra.mxu0 0
          %1797 = vmatprep.subr.bf16.mxu0 0
          %1798 = vmatpush1.bf16.msra.mxu0 0
          %1799 = vmatprep.subr.bf16.mxu0 0
          %1800 = vmatpush1.bf16.msra.mxu0 0
          %1801 = vmatprep.mubr.bf16.mxu0 0
          %1802 = vmatmul.mubr.bf16.gmra.mrb[0].mxu0 %v1764
          %v1803 = vpop.f32.mrb[0].mxu0
          %v1804 = vadd.f32 0.0, %v1803
          %v1805 = vpop.f32.mrb[0].mxu0
          %v1806 = vpop.f32.mrb[0].mxu0
          %v1807 = vpop.f32.mrb[0].mxu0
          %1808 = vdwg.mxu0
          %v1810 = vsel %vm1420, %v1669, 0
          %v1813 = vsel %vm1673, %v1419, 0
          %1815 = vmatprep.subr.bf16.mxu0 0
          %1816 = vmatpush1.bf16.msra.mxu0 %v1813
          %1817 = vmatprep.subr.bf16.mxu0 0
          %1818 = vmatpush1.bf16.msra.mxu0 0
          %1819 = vmatprep.subr.bf16.mxu0 0
          %1820 = vmatpush1.bf16.msra.mxu0 0
          %1821 = vmatprep.subr.bf16.mxu0 0
          %1822 = vmatpush1.bf16.msra.mxu0 0
          %1823 = vmatprep.subr.bf16.mxu0 0
          %1824 = vmatpush1.bf16.msra.mxu0 0
          %1825 = vmatprep.subr.bf16.mxu0 0
          %1826 = vmatpush1.bf16.msra.mxu0 0
          %1827 = vmatprep.subr.bf16.mxu0 0
          %1828 = vmatpush1.bf16.msra.mxu0 0
          %1829 = vmatprep.subr.bf16.mxu0 0
          %1830 = vmatpush1.bf16.msra.mxu0 0
          %1831 = vmatprep.subr.bf16.mxu0 0
          %1832 = vmatpush1.bf16.msra.mxu0 0
          %1833 = vmatprep.subr.bf16.mxu0 0
          %1834 = vmatpush1.bf16.msra.mxu0 0
          %1835 = vmatprep.subr.bf16.mxu0 0
          %1836 = vmatpush1.bf16.msra.mxu0 0
          %1837 = vmatprep.subr.bf16.mxu0 0
          %1838 = vmatpush1.bf16.msra.mxu0 0
          %1839 = vmatprep.subr.bf16.mxu0 0
          %1840 = vmatpush1.bf16.msra.mxu0 0
          %1841 = vmatprep.subr.bf16.mxu0 0
          %1842 = vmatpush1.bf16.msra.mxu0 0
          %1843 = vmatprep.subr.bf16.mxu0 0
          %1844 = vmatpush1.bf16.msra.mxu0 0
          %1845 = vmatprep.subr.bf16.mxu0 0
          %1846 = vmatpush1.bf16.msra.mxu0 0
          %1847 = vmatprep.mubr.bf16.mxu0 0
          %1848 = vmatmul.mubr.bf16.gmra.mrb[0].mxu0 %v1810
          %v1849 = vpop.f32.mrb[0].mxu0
          %v1850 = vadd.f32 0.0, %v1849
          %v1851 = vpop.f32.mrb[0].mxu0
          %v1852 = vpop.f32.mrb[0].mxu0
          %v1853 = vpop.f32.mrb[0].mxu0
          %1854 = vdwg.mxu0
          %v1855 = vcombine.low %v1712, %v1804
          %v1856 = vcombine.high %v1712, %v1804
          %v1858 = vunpack.c.l.s4 1983009808
          %v1859 = vunpack.c.0.s8 %v1858
          %v1860 = vlaneseq
          %v1861 = vshrl.u32 %v1860, 7
          %v1862 = vsub.s32 %v1859, %v1861
          %v1863 = vrot.slane %v1855, %v1862
          %v1865 = vunpack.c.l.s4 1983009808
          %v1866 = vunpack.c.0.s8 %v1865
          %v1867 = vlaneseq
          %v1868 = vshrl.u32 %v1867, 7
          %v1869 = vsub.s32 %v1866, %v1868
          %v1870 = vrot.slane %v1856, %v1869
          %v1871 = vcombine.low %v1758, %v1850
          %v1872 = vcombine.high %v1758, %v1850
          %v1874 = vunpack.c.l.s4 1983009808
          %v1875 = vunpack.c.0.s8 %v1874
          %v1876 = vlaneseq
          %v1877 = vshrl.u32 %v1876, 7
          %v1878 = vsub.s32 %v1875, %v1877
          %v1879 = vrot.slane %v1871, %v1878
          %v1881 = vunpack.c.l.s4 1983009808
          %v1882 = vunpack.c.0.s8 %v1881
          %v1883 = vlaneseq
          %v1884 = vshrl.u32 %v1883, 7
          %v1885 = vsub.s32 %v1882, %v1884
          %v1886 = vrot.slane %v1872, %v1885
          %v1887 = vcombine.low %v1863, %v1879
          %v1888 = vcombine.high %v1863, %v1879
          %v1890 = vunpack.c.l.s4 1934713408
          %v1891 = vunpack.c.0.s8 %v1890
          %v1892 = vlaneseq
          %v1893 = vshrl.u32 %v1892, 7
          %v1894 = vsub.s32 %v1891, %v1893
          %v1895 = vrot.slane %v1887, %v1894
          %v1897 = vunpack.c.l.s4 1934713408
          %v1898 = vunpack.c.0.s8 %v1897
          %v1899 = vlaneseq
          %v1900 = vshrl.u32 %v1899, 7
          %v1901 = vsub.s32 %v1898, %v1900
          %v1902 = vrot.slane %v1888, %v1901
          %v1903 = vcombine.low %v1870, %v1886
          %v1904 = vcombine.high %v1870, %v1886
          %v1906 = vunpack.c.l.s4 1934713408
          %v1907 = vunpack.c.0.s8 %v1906
          %v1908 = vlaneseq
          %v1909 = vshrl.u32 %v1908, 7
          %v1910 = vsub.s32 %v1907, %v1909
          %v1911 = vrot.slane %v1903, %v1910
          %v1913 = vunpack.c.l.s4 1934713408
          %v1914 = vunpack.c.0.s8 %v1913
          %v1915 = vlaneseq
          %v1916 = vshrl.u32 %v1915, 7
          %v1917 = vsub.s32 %v1914, %v1916
          %v1918 = vrot.slane %v1904, %v1917
          %v1919 = vcombine.high %v1895, 0.0
          %v1920 = vcombine.high %v1902, 0.0
          %v1921 = vcombine.high %v1911, 0.0
          %v1922 = vcombine.high %v1918, 0.0
          %v1923 = vcombine.low %v1895, %v1902
          %v1925 = vunpack.c.l.s4 1983009808
          %v1926 = vunpack.c.0.s8 %v1925
          %v1927 = vlaneseq
          %v1928 = vshrl.u32 %v1927, 7
          %v1929 = vsub.s32 %v1926, %v1928
          %v1930 = vrot.slane %v1923, %v1929
          %v1931 = vcombine.low %v1919, %v1920
          %v1933 = vunpack.c.l.s4 1983009808
          %v1934 = vunpack.c.0.s8 %v1933
          %v1935 = vlaneseq
          %v1936 = vshrl.u32 %v1935, 7
          %v1937 = vsub.s32 %v1934, %v1936
          %v1938 = vrot.slane %v1931, %v1937
          %v1939 = vcombine.low %v1911, %v1918
          %v1941 = vunpack.c.l.s4 1983009808
          %v1942 = vunpack.c.0.s8 %v1941
          %v1943 = vlaneseq
          %v1944 = vshrl.u32 %v1943, 7
          %v1945 = vsub.s32 %v1942, %v1944
          %v1946 = vrot.slane %v1939, %v1945
          %v1947 = vcombine.low %v1921, %v1922
          %v1949 = vunpack.c.l.s4 1983009808
          %v1950 = vunpack.c.0.s8 %v1949
          %v1951 = vlaneseq
          %v1952 = vshrl.u32 %v1951, 7
          %v1953 = vsub.s32 %v1950, %v1952
          %v1954 = vrot.slane %v1947, %v1953
          %v1955 = vcombine.low %v1930, %v1938
          %v1956 = vcombine.high %v1930, %v1938
          %v1958 = vunpack.c.l.s4 1934713408
          %v1959 = vunpack.c.0.s8 %v1958
          %v1960 = vlaneseq
          %v1961 = vshrl.u32 %v1960, 7
          %v1962 = vsub.s32 %v1959, %v1961
          %v1963 = vrot.slane %v1955, %v1962
          %v1965 = vunpack.c.l.s4 1934713408
          %v1966 = vunpack.c.0.s8 %v1965
          %v1967 = vlaneseq
          %v1968 = vshrl.u32 %v1967, 7
          %v1969 = vsub.s32 %v1966, %v1968
          %v1970 = vrot.slane %v1956, %v1969
          %v1971 = vcombine.low %v1946, %v1954
          %v1972 = vcombine.high %v1946, %v1954
          %v1974 = vunpack.c.l.s4 1934713408
          %v1975 = vunpack.c.0.s8 %v1974
          %v1976 = vlaneseq
          %v1977 = vshrl.u32 %v1976, 7
          %v1978 = vsub.s32 %v1975, %v1977
          %v1979 = vrot.slane %v1971, %v1978
          %v1981 = vunpack.c.l.s4 1934713408
          %v1982 = vunpack.c.0.s8 %v1981
          %v1983 = vlaneseq
          %v1984 = vshrl.u32 %v1983, 7
          %v1985 = vsub.s32 %v1982, %v1984
          %v1986 = vrot.slane %v1972, %v1985
          %v1987 = vcombine.low %v1963, %v1979
          %v1988 = vcombine.high %v1963, %v1979
          %v1989 = vcombine.low %v1970, %v1986
          %v1990 = vcombine.high %v1970, %v1986
          %1992 = vrot.lane.b32.xlu0 %v1988, 8
          %v1993 = vpop.permute.xlu0 %1992
          %1996 = vrot.lane.b32.xlu0 %v1989, 16
          %v1997 = vpop.permute.xlu0 %1996
          %2000 = vrot.lane.b32.xlu0 %v1990, 24
          %v2001 = vpop.permute.xlu0 %2000
          %v2003 = vsel %vm1420, %v1987, %v1993
          %vm2004 = vcmask 130048
          %v2005 = vsel %vm2004, %v2003, %v1997
          %vm2006 = vcmask 195584
          %v2007 = vsel %vm2006, %v2005, %v2001
          %v2008 = vpack.c.bf16 %v2007, %v2007
          %v2009 = vld [vmem:[%s5] sm:$0xf]
          %v2010 = vld [vmem:[%s5 + $0x4] sm:$0xf]
          %v2011 = vld [vmem:[%s5 + $0x8] sm:$0xf]
          %v2012 = vld [vmem:[%s5 + $0xc] sm:$0xf]
          %v2013 = vld [vmem:[#allocation11] sm:$0x1]
          %v2015 = vlaneseq
          %v2016 = vshrl.u32 %v2015, 7
          %v2017 = vsub.s32 0, %v2016
          %v2018 = vrot.slane %v2013, %v2017
          %v2024 = vunpack.c.l.b16 %v2009
          %v2025 = vunpack.c.l.b16 %v2010
          %v2026 = vunpack.c.l.b16 %v2011
          %v2027 = vunpack.c.l.b16 %v2012
          %v2028 = vpack.c.b16 %v2025, %v2024
          %v2029 = vpack.c.b16 %v2027, %v2026
          %v2033 = vsel %vm867, %v2008, 0
          %2035 = vmatprep.subr.bf16.mxu0 0
          %2036 = vmatpush1.bf16.msra.mxu0 %v2028
          %2037 = vmatprep.subr.bf16.mxu0 0
          %2038 = vmatpush1.bf16.msra.mxu0 %v2029
          %2039 = vmatprep.subr.bf16.mxu0 0
          %2040 = vmatpush1.bf16.msra.mxu0 0
          %2041 = vmatprep.subr.bf16.mxu0 0
          %2042 = vmatpush1.bf16.msra.mxu0 0
          %2043 = vmatprep.subr.bf16.mxu0 0
          %2044 = vmatpush1.bf16.msra.mxu0 0
          %2045 = vmatprep.subr.bf16.mxu0 0
          %2046 = vmatpush1.bf16.msra.mxu0 0
          %2047 = vmatprep.subr.bf16.mxu0 0
          %2048 = vmatpush1.bf16.msra.mxu0 0
          %2049 = vmatprep.subr.bf16.mxu0 0
          %2050 = vmatpush1.bf16.msra.mxu0 0
          %2051 = vmatprep.subr.bf16.mxu0 0
          %2052 = vmatpush1.bf16.msra.mxu0 0
          %2053 = vmatprep.subr.bf16.mxu0 0
          %2054 = vmatpush1.bf16.msra.mxu0 0
          %2055 = vmatprep.subr.bf16.mxu0 0
          %2056 = vmatpush1.bf16.msra.mxu0 0
          %2057 = vmatprep.subr.bf16.mxu0 0
          %2058 = vmatpush1.bf16.msra.mxu0 0
          %2059 = vmatprep.subr.bf16.mxu0 0
          %2060 = vmatpush1.bf16.msra.mxu0 0
          %2061 = vmatprep.subr.bf16.mxu0 0
          %2062 = vmatpush1.bf16.msra.mxu0 0
          %2063 = vmatprep.subr.bf16.mxu0 0
          %2064 = vmatpush1.bf16.msra.mxu0 0
          %2065 = vmatprep.subr.bf16.mxu0 0
          %2066 = vmatpush1.bf16.msra.mxu0 0
          %2067 = vmatprep.mubr.bf16.mxu0 0
          %2068 = vmatmul.mubr.bf16.gmra.mrb[0].mxu0 %v2033
          %v2069 = vpop.f32.mrb[0].mxu0
          %v2070 = vadd.f32 %v2018, %v2069
          %v2071 = vpop.f32.mrb[0].mxu0
          %v2072 = vpop.f32.mrb[0].mxu0
          %v2073 = vpop.f32.mrb[0].mxu0
          %2074 = vdwg.mxu0
          %v2075 = vadd.f32 %v842, %v2070
          %v2076 = vld [vmem:[#allocation12] sm:$0x1]
          %v2077 = vld [vmem:[#allocation14] sm:$0x1]
          %v2078 = vsel %vm867, %v2075, 0.0
          %2079 = vadd.xlane.f32.xlu0 %v2078
          %v2080 = vpop.xlane.xlu0 %2079
          %v2081 = vrcp.pop 32.0
          %v2082 = vmul.f32 %v2080, %v2081
          %v2083 = vsub.f32 %v2075, %v2082
          %v2084 = vmul.f32 %v2083, %v2083
          %v2085 = vsel %vm867, %v2084, 0.0
          %2086 = vadd.xlane.f32.xlu0 %v2085
          %v2087 = vpop.xlane.xlu0 %2086
          %v2088 = vmul.f32 %v2087, %v2081
          %v2089 = vadd.f32 %v2088, 1e-05
          %v2090 = vrsqrt.pop %v2089
          %v2091 = vmul.f32 %v2083, %v2090
          %v2093 = vlaneseq
          %v2094 = vshrl.u32 %v2093, 7
          %v2095 = vsub.s32 0, %v2094
          %v2096 = vrot.slane %v2076, %v2095
          %v2098 = vmul.f32 %v2091, %v2096
          %v2100 = vlaneseq
          %v2101 = vshrl.u32 %v2100, 7
          %v2102 = vsub.s32 0, %v2101
          %v2103 = vrot.slane %v2077, %v2102
          %v2105 = vadd.f32 %v2098, %v2103
          %v2106 = vpack.c.bf16 %v2105, %v2105
          %v2107 = vld [vmem:[%s9] sm:$0xf]
          %v2108 = vld [vmem:[%s9 + $0x4] sm:$0xf]
          %v2109 = vld [vmem:[%s9 + $0x8] sm:$0xf]
          %v2110 = vld [vmem:[%s9 + $0xc] sm:$0xf]
          %v2111 = vld [vmem:[%s10] sm:$0x1]
          %v2113 = vlaneseq
          %v2114 = vshrl.u32 %v2113, 7
          %v2115 = vsub.s32 0, %v2114
          %v2116 = vrot.slane %v2111, %v2115
          %v2122 = vunpack.c.l.b16 %v2107
          %v2123 = vunpack.c.l.b16 %v2108
          %v2124 = vunpack.c.l.b16 %v2109
          %v2125 = vunpack.c.l.b16 %v2110
          %v2126 = vpack.c.b16 %v2123, %v2122
          %v2127 = vpack.c.b16 %v2125, %v2124
          %v2131 = vsel %vm867, %v2106, 0
          %2133 = vmatprep.subr.bf16.mxu0 0
          %2134 = vmatpush1.bf16.msra.mxu0 %v2126
          %2135 = vmatprep.subr.bf16.mxu0 0
          %2136 = vmatpush1.bf16.msra.mxu0 %v2127
          %2137 = vmatprep.subr.bf16.mxu0 0
          %2138 = vmatpush1.bf16.msra.mxu0 0
          %2139 = vmatprep.subr.bf16.mxu0 0
          %2140 = vmatpush1.bf16.msra.mxu0 0
          %2141 = vmatprep.subr.bf16.mxu0 0
          %2142 = vmatpush1.bf16.msra.mxu0 0
          %2143 = vmatprep.subr.bf16.mxu0 0
          %2144 = vmatpush1.bf16.msra.mxu0 0
          %2145 = vmatprep.subr.bf16.mxu0 0
          %2146 = vmatpush1.bf16.msra.mxu0 0
          %2147 = vmatprep.subr.bf16.mxu0 0
          %2148 = vmatpush1.bf16.msra.mxu0 0
          %2149 = vmatprep.subr.bf16.mxu0 0
          %2150 = vmatpush1.bf16.msra.mxu0 0
          %2151 = vmatprep.subr.bf16.mxu0 0
          %2152 = vmatpush1.bf16.msra.mxu0 0
          %2153 = vmatprep.subr.bf16.mxu0 0
          %2154 = vmatpush1.bf16.msra.mxu0 0
          %2155 = vmatprep.subr.bf16.mxu0 0
          %2156 = vmatpush1.bf16.msra.mxu0 0
          %2157 = vmatprep.subr.bf16.mxu0 0
          %2158 = vmatpush1.bf16.msra.mxu0 0
          %2159 = vmatprep.subr.bf16.mxu0 0
          %2160 = vmatpush1.bf16.msra.mxu0 0
          %2161 = vmatprep.subr.bf16.mxu0 0
          %2162 = vmatpush1.bf16.msra.mxu0 0
          %2163 = vmatprep.subr.bf16.mxu0 0
          %2164 = vmatpush1.bf16.msra.mxu0 0
          %2165 = vmatprep.mubr.bf16.mxu0 0
          %2166 = vmatmul.mubr.bf16.gmra.mrb[0].mxu0 %v2131
          %v2167 = vpop.f32.mrb[0].mxu0
          %v2168 = vadd.f32 %v2116, %v2167
          %v2169 = vpop.f32.mrb[0].mxu0
          %v2170 = vpop.f32.mrb[0].mxu0
          %v2171 = vpop.f32.mrb[0].mxu0
          %2172 = vdwg.mxu0
          %v2173 = vmul.f32 %v2168, 0.5
          %v2174 = vmul.f32 %v2168, 0.044715
          %v2175 = vmul.f32 %v2174, %v2168
          %v2176 = vmul.f32 %v2175, %v2168
          %v2177 = vadd.f32 %v2168, %v2176
          %v2178 = vmul.f32 %v2177, 0.7978846
          %v2179 = vtanh.pop %v2178
          %v2180 = vadd.f32 %v2179, 1.0
          %v2181 = vmul.f32 %v2173, %v2180
          %v2182 = vpack.c.bf16 %v2181, %v2181
          %v2183 = vld [vmem:[%s11] sm:$0xf]
          %v2184 = vld [vmem:[%s11 + $0x4] sm:$0xf]
          %v2185 = vld [vmem:[%s11 + $0x8] sm:$0xf]
          %v2186 = vld [vmem:[%s11 + $0xc] sm:$0xf]
          %v2187 = vld [vmem:[%s11 + $0x10] sm:$0xf]
          %v2188 = vld [vmem:[%s11 + $0x14] sm:$0xf]
          %v2189 = vld [vmem:[%s11 + $0x18] sm:$0xf]
          %v2190 = vld [vmem:[%s11 + $0x1c] sm:$0xf]
          %v2191 = vld [vmem:[%s12] sm:$0x1]
          %v2193 = vlaneseq
          %v2194 = vshrl.u32 %v2193, 7
          %v2195 = vsub.s32 0, %v2194
          %v2196 = vrot.slane %v2191, %v2195
          %v2206 = vunpack.c.l.b16 %v2183
          %v2207 = vunpack.c.l.b16 %v2184
          %v2208 = vunpack.c.l.b16 %v2185
          %v2209 = vunpack.c.l.b16 %v2186
          %v2210 = vunpack.c.l.b16 %v2187
          %v2211 = vunpack.c.l.b16 %v2188
          %v2212 = vunpack.c.l.b16 %v2189
          %v2213 = vunpack.c.l.b16 %v2190
          %v2214 = vpack.c.b16 %v2207, %v2206
          %v2215 = vpack.c.b16 %v2209, %v2208
          %v2216 = vpack.c.b16 %v2211, %v2210
          %v2217 = vpack.c.b16 %v2213, %v2212
          %vm2222 = vcmask 523264
          %v2224 = vsel %vm2222, %v2182, 0
          %2226 = vmatprep.subr.bf16.mxu0 0
          %2227 = vmatpush1.bf16.msra.mxu0 %v2214
          %2228 = vmatprep.subr.bf16.mxu0 0
          %2229 = vmatpush1.bf16.msra.mxu0 %v2215
          %2230 = vmatprep.subr.bf16.mxu0 0
          %2231 = vmatpush1.bf16.msra.mxu0 %v2216
          %2232 = vmatprep.subr.bf16.mxu0 0
          %2233 = vmatpush1.bf16.msra.mxu0 %v2217
          %2234 = vmatprep.subr.bf16.mxu0 0
          %2235 = vmatpush1.bf16.msra.mxu0 0
          %2236 = vmatprep.subr.bf16.mxu0 0
          %2237 = vmatpush1.bf16.msra.mxu0 0
          %2238 = vmatprep.subr.bf16.mxu0 0
          %2239 = vmatpush1.bf16.msra.mxu0 0
          %2240 = vmatprep.subr.bf16.mxu0 0
          %2241 = vmatpush1.bf16.msra.mxu0 0
          %2242 = vmatprep.subr.bf16.mxu0 0
          %2243 = vmatpush1.bf16.msra.mxu0 0
          %2244 = vmatprep.subr.bf16.mxu0 0
          %2245 = vmatpush1.bf16.msra.mxu0 0
          %2246 = vmatprep.subr.bf16.mxu0 0
          %2247 = vmatpush1.bf16.msra.mxu0 0
          %2248 = vmatprep.subr.bf16.mxu0 0
          %2249 = vmatpush1.bf16.msra.mxu0 0
          %2250 = vmatprep.subr.bf16.mxu0 0
          %2251 = vmatpush1.bf16.msra.mxu0 0
          %2252 = vmatprep.subr.bf16.mxu0 0
          %2253 = vmatpush1.bf16.msra.mxu0 0
          %2254 = vmatprep.subr.bf16.mxu0 0
          %2255 = vmatpush1.bf16.msra.mxu0 0
          %2256 = vmatprep.subr.bf16.mxu0 0
          %2257 = vmatpush1.bf16.msra.mxu0 0
          %2258 = vmatprep.mubr.bf16.mxu0 0
          %2259 = vmatmul.mubr.bf16.gmra.mrb[0].mxu0 %v2224
          %v2260 = vpop.f32.mrb[0].mxu0
          %v2261 = vadd.f32 %v2196, %v2260
          %v2262 = vpop.f32.mrb[0].mxu0
          %v2263 = vpop.f32.mrb[0].mxu0
          %v2264 = vpop.f32.mrb[0].mxu0
          %2265 = vdwg.mxu0
          %v2266 = vadd.f32 %v2105, %v2261
          %v2267 = vld [vmem:[%s13] sm:$0x1]
          %v2268 = vld [vmem:[%s14] sm:$0x1]
          %v2269 = vsel %vm867, %v2266, 0.0
          %2270 = vadd.xlane.f32.xlu0 %v2269
          %v2271 = vpop.xlane.xlu0 %2270
          %v2272 = vmul.f32 %v2271, %v2081
          %v2273 = vsub.f32 %v2266, %v2272
          %v2274 = vmul.f32 %v2273, %v2273
          %v2275 = vsel %vm867, %v2274, 0.0
          %2276 = vadd.xlane.f32.xlu0 %v2275
          %v2277 = vpop.xlane.xlu0 %2276
          %v2278 = vmul.f32 %v2277, %v2081
          %v2279 = vadd.f32 %v2278, 1e-05
          %v2280 = vrsqrt.pop %v2279
          %v2281 = vmul.f32 %v2273, %v2280
          %v2283 = vlaneseq
          %v2284 = vshrl.u32 %v2283, 7
          %v2285 = vsub.s32 0, %v2284
          %v2286 = vrot.slane %v2267, %v2285
          %v2288 = vmul.f32 %v2281, %v2286
          %v2290 = vlaneseq
          %v2291 = vshrl.u32 %v2290, 7
          %v2292 = vsub.s32 0, %v2291
          %v2293 = vrot.slane %v2268, %v2292
          %v2295 = vadd.f32 %v2288, %v2293
          %v2296 = vpack.c.bf16 %v2295, %v2295
          %v2297 = vld [vmem:[%s15] sm:$0xf]
          %v2298 = vld [vmem:[%s15 + $0x4] sm:$0xf]
          %v2299 = vld [vmem:[%s15 + $0x8] sm:$0xf]
          %v2300 = vld [vmem:[%s15 + $0xc] sm:$0xf]
          %v2301 = vld [vmem:[%s16] sm:$0x1]
          %v2303 = vlaneseq
          %v2304 = vshrl.u32 %v2303, 7
          %v2305 = vsub.s32 0, %v2304
          %v2306 = vrot.slane %v2301, %v2305
          %v2312 = vunpack.c.l.b16 %v2297
          %v2313 = vunpack.c.l.b16 %v2298
          %v2314 = vunpack.c.l.b16 %v2299
          %v2315 = vunpack.c.l.b16 %v2300
          %v2316 = vpack.c.b16 %v2313, %v2312
          %v2317 = vpack.c.b16 %v2315, %v2314
          %v2321 = vsel %vm867, %v2296, 0
          %2323 = vmatprep.subr.bf16.mxu0 0
          %2324 = vmatpush1.bf16.msra.mxu0 %v2316
          %2325 = vmatprep.subr.bf16.mxu0 0
          %2326 = vmatpush1.bf16.msra.mxu0 %v2317
          %2327 = vmatprep.subr.bf16.mxu0 0
          %2328 = vmatpush1.bf16.msra.mxu0 0
          %2329 = vmatprep.subr.bf16.mxu0 0
          %2330 = vmatpush1.bf16.msra.mxu0 0
          %2331 = vmatprep.subr.bf16.mxu0 0
          %2332 = vmatpush1.bf16.msra.mxu0 0
          %2333 = vmatprep.subr.bf16.mxu0 0
          %2334 = vmatpush1.bf16.msra.mxu0 0
          %2335 = vmatprep.subr.bf16.mxu0 0
          %2336 = vmatpush1.bf16.msra.mxu0 0
          %2337 = vmatprep.subr.bf16.mxu0 0
          %2338 = vmatpush1.bf16.msra.mxu0 0
          %2339 = vmatprep.subr.bf16.mxu0 0
          %2340 = vmatpush1.bf16.msra.mxu0 0
          %2341 = vmatprep.subr.bf16.mxu0 0
          %2342 = vmatpush1.bf16.msra.mxu0 0
          %2343 = vmatprep.subr.bf16.mxu0 0
          %2344 = vmatpush1.bf16.msra.mxu0 0
          %2345 = vmatprep.subr.bf16.mxu0 0
          %2346 = vmatpush1.bf16.msra.mxu0 0
          %2347 = vmatprep.subr.bf16.mxu0 0
          %2348 = vmatpush1.bf16.msra.mxu0 0
          %2349 = vmatprep.subr.bf16.mxu0 0
          %2350 = vmatpush1.bf16.msra.mxu0 0
          %2351 = vmatprep.subr.bf16.mxu0 0
          %2352 = vmatpush1.bf16.msra.mxu0 0
          %2353 = vmatprep.subr.bf16.mxu0 0
          %2354 = vmatpush1.bf16.msra.mxu0 0
          %2355 = vmatprep.mubr.bf16.mxu0 0
          %2356 = vmatmul.mubr.bf16.gmra.mrb[0].mxu0 %v2321
          %v2357 = vpop.f32.mrb[0].mxu0
          %v2358 = vadd.f32 %v2306, %v2357
          %v2359 = vpop.f32.mrb[0].mxu0
          %v2360 = vpop.f32.mrb[0].mxu0
          %v2361 = vpop.f32.mrb[0].mxu0
          %2362 = vdwg.mxu0
          %v2363 = vmul.f32 %v2358, 0.5
          %v2364 = vmul.f32 %v2358, 0.044715
          %v2365 = vmul.f32 %v2364, %v2358
          %v2366 = vmul.f32 %v2365, %v2358
          %v2367 = vadd.f32 %v2358, %v2366
          %v2368 = vmul.f32 %v2367, 0.7978846
          %v2369 = vtanh.pop %v2368
          %v2370 = vadd.f32 %v2369, 1.0
          %v2371 = vmul.f32 %v2363, %v2370
          %v2372 = vld [vmem:[%s17] sm:$0x1]
          %v2373 = vld [vmem:[%s18] sm:$0x1]
          %v2374 = vsel %vm867, %v2371, 0.0
          %2375 = vadd.xlane.f32.xlu0 %v2374
          %v2376 = vpop.xlane.xlu0 %2375
          %v2377 = vmul.f32 %v2376, %v2081
          %v2378 = vsub.f32 %v2371, %v2377
          %v2379 = vmul.f32 %v2378, %v2378
          %v2380 = vsel %vm867, %v2379, 0.0
          %2381 = vadd.xlane.f32.xlu0 %v2380
          %v2382 = vpop.xlane.xlu0 %2381
          %v2383 = vmul.f32 %v2382, %v2081
          %v2384 = vadd.f32 %v2383, 1e-05
          %v2385 = vrsqrt.pop %v2384
          %v2386 = vmul.f32 %v2378, %v2385
          %v2388 = vlaneseq
          %v2389 = vshrl.u32 %v2388, 7
          %v2390 = vsub.s32 0, %v2389
          %v2391 = vrot.slane %v2372, %v2390
          %v2393 = vmul.f32 %v2386, %v2391
          %v2395 = vlaneseq
          %v2396 = vshrl.u32 %v2395, 7
          %v2397 = vsub.s32 0, %v2396
          %v2398 = vrot.slane %v2373, %v2397
          %v2400 = vadd.f32 %v2393, %v2398
          %v2401 = vpack.c.bf16 %v2400, %v2400
          %vm2402 = vcmask 257024
          %2403 = vst.msk [vmem:[#allocation2] sm:$0xf] %vm2402, %v2401
          %vm2404 = vcmask 7168
          %2405 = vst.msk [vmem:[#allocation3] sm:$0xff] %vm2404, -1e+30
          %2406 = vst.msk [vmem:[#allocation4] sm:$0xff] %vm2404, 0.0
          %2407 = vst.msk [vmem:[#allocation5] sm:$0xff] %vm2404, 0.0
        $region128: #{tpu_custom_call.1} parent=103 // pred_fallthru
          _
        %v2408 = vld [vmem:[#allocation2] sm:$0xf]
        %v2409 = vld [vmem:[%s832] sm:$0xf]
        %v2410 = vld [vmem:[%s832 + $0x4] sm:$0xf]
        %v2411 = vld [vmem:[%s832 + $0x8] sm:$0xf]
        %v2412 = vld [vmem:[%s832 + $0xc] sm:$0xf]
        %v2413 = vld [vmem:[%s835] sm:$0x1]
        %v2415 = vlaneseq
        %v2416 = vshrl.u32 %v2415, 7
        %v2417 = vsub.s32 0, %v2416
        %v2418 = vrot.slane %v2413, %v2417
        %v2424 = vunpack.c.l.b16 %v2409
        %v2425 = vunpack.c.l.b16 %v2410
        %v2426 = vunpack.c.l.b16 %v2411
        %v2427 = vunpack.c.l.b16 %v2412
        %v2428 = vpack.c.b16 %v2425, %v2424
        %v2429 = vpack.c.b16 %v2427, %v2426
        %vm2432 = vcmask 261120
        %v2434 = vsel %vm2432, %v2408, 0
        %2436 = vmatprep.subr.bf16.mxu0 0
        %2437 = vmatpush1.bf16.msra.mxu0 %v2428
        %2438 = vmatprep.subr.bf16.mxu0 0
        %2439 = vmatpush1.bf16.msra.mxu0 %v2429
        %2440 = vmatprep.subr.bf16.mxu0 0
        %2441 = vmatpush1.bf16.msra.mxu0 0
        %2442 = vmatprep.subr.bf16.mxu0 0
        %2443 = vmatpush1.bf16.msra.mxu0 0
        %2444 = vmatprep.subr.bf16.mxu0 0
        %2445 = vmatpush1.bf16.msra.mxu0 0
        %2446 = vmatprep.subr.bf16.mxu0 0
        %2447 = vmatpush1.bf16.msra.mxu0 0
        %2448 = vmatprep.subr.bf16.mxu0 0
        %2449 = vmatpush1.bf16.msra.mxu0 0
        %2450 = vmatprep.subr.bf16.mxu0 0
        %2451 = vmatpush1.bf16.msra.mxu0 0
        %2452 = vmatprep.subr.bf16.mxu0 0
        %2453 = vmatpush1.bf16.msra.mxu0 0
        %2454 = vmatprep.subr.bf16.mxu0 0
        %2455 = vmatpush1.bf16.msra.mxu0 0
        %2456 = vmatprep.subr.bf16.mxu0 0
        %2457 = vmatpush1.bf16.msra.mxu0 0
        %2458 = vmatprep.subr.bf16.mxu0 0
        %2459 = vmatpush1.bf16.msra.mxu0 0
        %2460 = vmatprep.subr.bf16.mxu0 0
        %2461 = vmatpush1.bf16.msra.mxu0 0
        %2462 = vmatprep.subr.bf16.mxu0 0
        %2463 = vmatpush1.bf16.msra.mxu0 0
        %2464 = vmatprep.subr.bf16.mxu0 0
        %2465 = vmatpush1.bf16.msra.mxu0 0
        %2466 = vmatprep.subr.bf16.mxu0 0
        %2467 = vmatpush1.bf16.msra.mxu0 0
        %2468 = vmatprep.mubr.bf16.mxu0 0
        %2469 = vmatmul.mubr.bf16.gmra.mrb[0].mxu0 %v2434
        %v2470 = vpop.f32.mrb[0].mxu0
        %v2471 = vadd.f32 %v2418, %v2470
        %v2472 = vpop.f32.mrb[0].mxu0
        %v2473 = vpop.f32.mrb[0].mxu0
        %v2474 = vpop.f32.mrb[0].mxu0
        %2475 = vdwg.mxu0
        %2476 = vst [vmem:[%s813] sm:$0xff] %v2471
        %v2477 = vld [vmem:[#allocation3] sm:$0xff]
        %2478 = vmax.xlane.f32.xlu0 %v2471
        %v2479 = vpop.xlane.xlu0 %2478
        %v2480 = vmax.f32 %v2477, %v2479
        %v2481 = vld [vmem:[#allocation4] sm:$0xff]
        %v2482 = vsub.f32 %v2477, %v2480
        %v2483 = vmul.f32 %v2482, 1.442695
        %v2484 = vpow.pop %v2483
        %v2485 = vmul.f32 %v2481, %v2484
        %2487 = vset.pattern.permute.xlu0 0
        %2488 = vperm.xlu0 %2487, %v2480
        %v2489 = vpop.permute.xlu0 %2488
        %v2491 = vsub.f32 %v2471, %v2489
        %v2492 = vmul.f32 %v2491, 1.442695
        %v2493 = vpow.pop %v2492
        %2494 = vadd.xlane.f32.xlu0 %v2493
        %v2495 = vpop.xlane.xlu0 %2494
        %v2496 = vadd.f32 %v2485, %v2495
        %vm2497 = vcmask 7168
        %2498 = vst.msk [vmem:[#allocation4] sm:$0xff] %vm2497, %v2496
        %2499 = vst.msk [vmem:[#allocation3] sm:$0xff] %vm2497, %v2480
        %v2500 = vlaneseq
        %v2501 = vand.u32 %v2500, 127
        %s2502 = smul.u32 %s50, 128
        %v2503 = vstv %s2502
        %v2504 = vadd.s32 %v2501, %v2503
        %v2505 = vld [vmem:[#allocation5] sm:$0xff]
        %2506 = vset.pattern.permute.xlu0 0
        %2507 = vperm.xlu0 %2506, %v837
        %v2508 = vpop.permute.xlu0 %2507
        %vm2509 = vcmp.eq.s32.totalorder %v2504, %v2508
        %v2510 = vsel %vm2509, %v2471, 0.0
        %2511 = vadd.xlane.f32.xlu0 %v2510
        %v2512 = vpop.xlane.xlu0 %2511
        %v2513 = vadd.f32 %v2505, %v2512
        %2514 = vst.msk [vmem:[#allocation5] sm:$0xff] %vm2497, %v2513
        // Predicated region
        $region129: #{tpu_custom_call.1} parent=103 // pred_check
          %p2515 = pneg %p838
        $region130: #{tpu_custom_call.1} parent=103 // pred_check_branch
          %2517 = sbr.rel (%p2515) target = $region132
        $region131: #{tpu_custom_call.1} parent=103 // pred_region
          %v2518 = vld [vmem:[#allocation3] sm:$0xff]
          %v2519 = vld [vmem:[#allocation4] sm:$0xff]
          %v2520 = vlog2.pop %v2519
          %v2521 = vmul.f32 %v2520, 0.6931472
          %v2522 = vadd.f32 %v2518, %v2521
          %vm2523 = vcmp.ne.s32.totalorder %v837, 4294967295
          %v2524 = vsel %vm2523, 1, 0
          %v2525 = vcvt.s32.f32 %v2524
          %v2526 = vld [vmem:[#allocation5] sm:$0xff]
          %v2527 = vsub.f32 %v2522, %v2526
          %v2528 = vmul.f32 %v2527, %v2525
          %v2529 = vsel %vm2497, %v2528, 0.0
          %2530 = vadd.xlane.f32.xlu0 %v2529
          %v2531 = vpop.xlane.xlu0 %2530
          %v2532 = vrot.slane %v2531, 4
          %v2533 = vadd.f32 %v2531, %v2532
          %v2534 = vrot.slane %v2533, 2
          %v2535 = vadd.f32 %v2533, %v2534
          %v2536 = vrot.slane %v2535, 1
          %v2537 = vadd.f32 %v2535, %v2536
          %s2538 = vtos %v2537
          %v2539 = vsel %vm2497, %v2525, 0.0
          %2540 = vadd.xlane.f32.xlu0 %v2539
          %v2541 = vpop.xlane.xlu0 %2540
          %v2542 = vrot.slane %v2541, 4
          %v2543 = vadd.f32 %v2541, %v2542
          %v2544 = vrot.slane %v2543, 2
          %v2545 = vadd.f32 %v2543, %v2544
          %v2546 = vrot.slane %v2545, 1
          %v2547 = vadd.f32 %v2545, %v2546
          %s2548 = vtos %v2547
          %vm2549 = vcmp.eq.s32.totalorder %v2501, 0
          %v2550 = vstv %s2538
          %v2551 = vsel %vm2549, %v2550, 0.0
          %vm2552 = vcmp.eq.s32.totalorder %v2501, 1
          %v2553 = vstv %s2548
          %v2554 = vsel %vm2552, %v2553, 0.0
          %v2555 = vadd.f32 %v2551, %v2554
          %2556 = vst [vmem:[%s820] sm:$0xff] %v2555
        $region132: #{tpu_custom_call.1} parent=103 // pred_fallthru
          _
        %s2557 = sand.u32 %s533, 1
        %s2558 = scalar_lea.sflag [#allocation8], %s2557
        %s2559 = sand.u32 %s533, 1
        %s2560 = smul.addr %s2559, 8
        %s2561 = scalar_lea.vmem [#allocation15], %s2560
        %s2562 = sand.u32 %s559, 1
        %s2563 = scalar_lea.sflag [#allocation17], %s2562
        %s2564 = sand.u32 %s559, 1
        %s2565 = smul.addr %s2564, 8
        %s2566 = scalar_lea.vmem [#allocation16], %s2565
        // Predicated region
        $region133: #{tpu_custom_call.1} parent=103 // pred_check
          %p2567 = pneg %p543
        $region134: #{tpu_custom_call.1} parent=103 // pred_check_branch
          %2569 = sbr.rel (%p2567) target = $region136
        $region135: #{tpu_custom_call.1} parent=103 // pred_region
          %s2571 = ssub.s32 128, 128
          %2572 = vsyncadd %s2558, %s2571
          %s2573 = sadd.s32 %s50, %s49
          %s2574 = smul.addr %s2573, 128
          %s2575 = scalar_lea.hbm %s21, %s2574
          %s2577 = sshll.u32 %s2561, 4
          %s2578 = int_to_ptr.vmem [resolvable:$true] %s2577
          %2580 = dma.vmem_to_hbm [thread:$0]  %s2578, 128, %s2575, %s2558
        $region136: #{tpu_custom_call.1} parent=103 // pred_fallthru
          _
        // Predicated region
        $region137: #{tpu_custom_call.1} parent=103 // pred_check
          %p2581 = pneg %p569
        $region138: #{tpu_custom_call.1} parent=103 // pred_check_branch
          %2583 = sbr.rel (%p2581) target = $region140
        $region139: #{tpu_custom_call.1} parent=103 // pred_region
          %s2585 = ssub.s32 128, 128
          %2586 = vsyncadd %s2563, %s2585
          %s2587 = smul.addr %s49, 128
          %s2588 = scalar_lea.hbm %s22, %s2587
          %s2590 = sshll.u32 %s2566, 4
          %s2591 = int_to_ptr.vmem [resolvable:$true] %s2590
          %2593 = dma.vmem_to_hbm [thread:$0]  %s2591, 128, %s2588, %s2563
        $region140: #{tpu_custom_call.1} parent=103 // pred_fallthru
          _
      $region104: #{tpu_custom_call.1} parent=5 // pred_fallthru
        _
      %p2594 = scmp.le.s32.totalorder 2, %s40
      // Predicated region
      $region141: #{tpu_custom_call.1} parent=5 // pred_check
        %p2595 = pneg %p2594
      $region142: #{tpu_custom_call.1} parent=5 // pred_check_branch
        %2597 = sbr.rel (%p2595) target = $region144
      $region143: #{tpu_custom_call.1} parent=5 // pred_region
        %s2598 = ssub.s32 %s40, 2
        // Predicated region
        $region145: #{tpu_custom_call.1} parent=143 // pred_check
          %p2599 = pneg %p549
        $region146: #{tpu_custom_call.1} parent=143 // pred_check_branch
          %2601 = sbr.rel (%p2599) target = $region148
        $region147: #{tpu_custom_call.1} parent=143 // pred_region
          %s2602 = sand.u32 %s534, 1
          %s2603 = scalar_lea.sflag [#allocation8], %s2602
          %s2604 = sand.u32 %s534, 1
          %s2605 = smul.addr %s2604, 8
          %s2606 = scalar_lea.vmem [#allocation15], %s2605
          %2607 = dma.done %s2603, 128
        $region148: #{tpu_custom_call.1} parent=143 // pred_fallthru
          _
        // Predicated region
        $region149: #{tpu_custom_call.1} parent=143 // pred_check
          %p2608 = pneg %p575
        $region150: #{tpu_custom_call.1} parent=143 // pred_check_branch
          %2610 = sbr.rel (%p2608) target = $region152
        $region151: #{tpu_custom_call.1} parent=143 // pred_region
          %s2611 = sand.u32 %s560, 1
          %s2612 = scalar_lea.sflag [#allocation17], %s2611
          %s2613 = sand.u32 %s560, 1
          %s2614 = smul.addr %s2613, 8
          %s2615 = scalar_lea.vmem [#allocation16], %s2614
          %2616 = dma.done %s2612, 128
        $region152: #{tpu_custom_call.1} parent=143 // pred_fallthru
          _
      $region144: #{tpu_custom_call.1} parent=5 // pred_fallthru
        _
    $region6: #{tpu_custom_call.1} parent=1 // loop_footer
      %s44 = sadd.s32 1, %s40
    $region7: #{tpu_custom_call.1} parent=1 // loop_footer_branch
      %39 = sbr.rel target = $region3
    $region8: #{tpu_custom_call.1} parent=1 // loop_exit
      _
    %2617 = vsyncpa [#allocation7], 1
    %s2618 = scalar_lea.sflag [#allocation7], 1
    %2619 = vsyncpa %s2618, 1
    %2620 = vsyncpa [#allocation10], 1
    %2621 = vsyncpa [#allocation13], 1
    %2622 = vsyncpa [#allocation8], 1
    %s2623 = scalar_lea.sflag [#allocation8], 1
    %2624 = vsyncpa %s2623, 1
    %2625 = vsyncpa [#allocation17], 1
    %s2626 = scalar_lea.sflag [#allocation17], 1
    %2627 = vsyncpa %s2626, 1

</llo_original>
